<compile_context>
chip_gen: v6e
topology: v6e:2x2x1
jax: 0.10.0
libtpu: 0.0.40
codegen_flags: <defaults>
</compile_context>

<pallas_src>
import math

import jax
import jax.numpy as jnp
from jax.experimental import pallas as pl
from jax.experimental.pallas import tpu as pltpu

# ----------------------------- model dims (small) ---------------------------
NUM_CLASSES = 80                 # as in the torch module
CLS_OUT = NUM_CLASSES + 1        # 81
BOX_OUT = 4 * CLS_OUT            # 324
C_IN = 3                         # RGB images
C_FEAT = 16                      # backbone feature channels (shrunk from 256)
A = 3                            # anchors per location (shrunk from 3*5 FPN)
POOL = 7                         # ROI pool output size (as in torchvision)
REP = 256                        # TwoMLPHead representation size (shrunk 1024)
K_PER_IMG = 8                    # proposals kept per image

K_CONV = 9 * C_IN                # 27 (3x3 im2col contraction)
K_CONV_PAD = 32                  # padded contraction for nicer MXU K
RPN_OUT = A + 4 * A              # 15 (objectness | deltas)
RPN_PAD = 128                    # lane-dense fused RPN head output width
PRED_OUT = CLS_OUT + BOX_OUT     # 405 (logits | box regression)
PRED_PAD = 512                   # lane-dense fused predictor output width
D_POOL = C_FEAT * POOL * POOL    # 784


def _round_up(x, m):
    return ((x + m - 1) // m) * m


# ============================ Pallas kernels ================================

def _conv_rpn_kernel(p_ref, wc_ref, bc_ref, wr_ref, br_ref, wh_ref, bh_ref,
                     feat_ref, rpn_ref):
    """Fused backbone conv (im2col matmul) + ReLU, RPN shared conv + ReLU,
    and the fused (objectness | bbox-delta) head on one M-row tile.

    Matmuls run in bf16 with f32 accumulation; bias/ReLU stay in f32
    (v5e's VPU has no bf16)."""
    f = jnp.dot(p_ref[...], wc_ref[...], preferred_element_type=jnp.float32)
    f = jnp.maximum(f + bc_ref[...], 0.0)
    feat_ref[...] = f                                        # feature map out

    h = jnp.dot(f.astype(jnp.bfloat16), wr_ref[...],
                preferred_element_type=jnp.float32)
    h = jnp.maximum(h + br_ref[...], 0.0)

    # single lane-dense (128-wide) head output -> unmasked stores
    rpn = jnp.dot(h.astype(jnp.bfloat16), wh_ref[...],
                  preferred_element_type=jnp.float32)
    rpn_ref[...] = rpn + bh_ref[...]


def conv_rpn(patches, conv_w, conv_b, rpn_wr, rpn_br, rpn_wh, rpn_bh, *,
             tm=1024):
    """patches: [M, K_CONV_PAD] bf16 -> (feat [M, C_FEAT] f32,
                                         rpn  [M, RPN_PAD] f32)."""
    M = patches.shape[0]
    tm = min(tm, _round_up(M, 8))
    n_blk = pl.cdiv(M, tm)
    M_pad = n_blk * tm
    if M_pad != M:                       # remainder-safe: pad, then slice back
        patches = jnp.pad(patches, ((0, M_pad - M), (0, 0)))

    feat, rpn = pl.pallas_call(
        _conv_rpn_kernel,
        out_shape=(jax.ShapeDtypeStruct((M_pad, C_FEAT), jnp.float32),
                   jax.ShapeDtypeStruct((M_pad, RPN_PAD), jnp.float32)),
        grid=(n_blk,),
        in_specs=[
            pl.BlockSpec((tm, K_CONV_PAD), lambda i: (i, 0)),
            pl.BlockSpec((K_CONV_PAD, C_FEAT), lambda i: (0, 0)),
            pl.BlockSpec((1, C_FEAT), lambda i: (0, 0)),
            pl.BlockSpec((C_FEAT, C_FEAT), lambda i: (0, 0)),
            pl.BlockSpec((1, C_FEAT), lambda i: (0, 0)),
            pl.BlockSpec((C_FEAT, RPN_PAD), lambda i: (0, 0)),
            pl.BlockSpec((1, RPN_PAD), lambda i: (0, 0)),
        ],
        out_specs=(pl.BlockSpec((tm, C_FEAT), lambda i: (i, 0)),
                   pl.BlockSpec((tm, RPN_PAD), lambda i: (i, 0))),
        compiler_params=pltpu.CompilerParams(
            dimension_semantics=("parallel",)),
    )(patches, conv_w, conv_b, rpn_wr, rpn_br, rpn_wh, rpn_bh)
    return feat[:M], rpn[:M]


def _box_head_kernel(p_ref, w6_ref, b6_ref, w7_ref, b7_ref, wp_ref, bp_ref,
                     out_ref, scores_ref):
    """TwoMLPHead (fc6/fc7 + ReLU) + fused FastRCNNPredictor
    (cls_score | bbox_pred, lane-padded) + in-kernel class softmax."""
    h = jnp.dot(p_ref[...].astype(jnp.bfloat16), w6_ref[...],
                preferred_element_type=jnp.float32)
    h = jnp.maximum(h + b6_ref[...], 0.0)
    h = jnp.dot(h.astype(jnp.bfloat16), w7_ref[...],
                preferred_element_type=jnp.float32)
    h = jnp.maximum(h + b7_ref[...], 0.0)

    out = jnp.dot(h.astype(jnp.bfloat16), wp_ref[...],
                  preferred_element_type=jnp.float32) + bp_ref[...]
    out_ref[...] = out                               # [tr, 512] lane-dense

    # softmax over the 81 class logits (first 128-wide lane slab of `out`)
    slab = out[:, :128]
    lane = jax.lax.broadcasted_iota(jnp.int32, slab.shape, 1)
    valid = lane < CLS_OUT
    logits = jnp.where(valid, slab, -jnp.inf)
    m = jnp.max(logits, axis=-1, keepdims=True)
    e = jnp.where(valid, jnp.exp(logits - m), 0.0)
    denom = jnp.sum(e, axis=-1, keepdims=True)
    scores_ref[...] = e * pl.reciprocal(denom, approx=True)


def box_head(pooled, w6, b6, w7, b7, wp, bp, *, tr=8):
    """pooled: [R, D_POOL] f32 -> (logits [R,81], scores [R,81], boxes [R,324])."""
    R = pooled.shape[0]
    tr = min(tr, _round_up(R, 8))
    n_blk = pl.cdiv(R, tr)
    R_pad = n_blk * tr
    if R_pad != R:
        pooled = jnp.pad(pooled, ((0, R_pad - R), (0, 0)))

    fused, scores = pl.pallas_call(
        _box_head_kernel,
        out_shape=(jax.ShapeDtypeStruct((R_pad, PRED_PAD), jnp.float32),
                   jax.ShapeDtypeStruct((R_pad, 128), jnp.float32)),
        grid=(n_blk,),
        in_specs=[
            pl.BlockSpec((tr, D_POOL), lambda i: (i, 0)),
            pl.BlockSpec((D_POOL, REP), lambda i: (0, 0)),
            pl.BlockSpec((1, REP), lambda i: (0, 0)),
            pl.BlockSpec((REP, REP), lambda i: (0, 0)),
            pl.BlockSpec((1, REP), lambda i: (0, 0)),
            pl.BlockSpec((REP, PRED_PAD), lambda i: (0, 0)),
            pl.BlockSpec((1, PRED_PAD), lambda i: (0, 0)),
        ],
        out_specs=(pl.BlockSpec((tr, PRED_PAD), lambda i: (i, 0)),
                   pl.BlockSpec((tr, 128), lambda i: (i, 0))),
        compiler_params=pltpu.CompilerParams(
            dimension_semantics=("parallel",)),
    )(pooled, w6, b6, w7, b7, wp, bp)

    logits = fused[:R, :CLS_OUT]
    boxes = fused[:R, CLS_OUT:CLS_OUT + BOX_OUT]
    return logits, scores[:R, :CLS_OUT], boxes


# ================================ JAX glue ==================================

def extract_patches_3x3(x_nhwc):
    """im2col for a 3x3 / stride 1 / pad 1 conv. Returns [B*H*W, 9*C]."""
    # TODO(synk): at real C_FEAT=256 do the im2col inside the Pallas kernel
    # (9 accumulating matmuls over shifted windows) to avoid the 9x activation
    # expansion through HBM; with C_IN=3 the patch tensor here is tiny.
    B, H, W, C = x_nhwc.shape
    xp = jnp.pad(x_nhwc, ((0, 0), (1, 1), (1, 1), (0, 0)))
    patches = [xp[:, dy:dy + H, dx:dx + W, :]
               for dy in range(3) for dx in range(3)]
    return jnp.concatenate(patches, axis=-1).reshape(B * H * W, 9 * C)


def roi_pool(feat_nhwc, batch_idx, ys, xs):
    """Simplified ROI pooling: gather a POOLxPOOL window around each proposal.
    TODO(synk): real torchvision uses ROIAlign with bilinear sampling."""
    B, H, W, C = feat_nhwc.shape
    pad = POOL // 2
    fp = jnp.pad(feat_nhwc, ((0, 0), (pad, pad), (pad, pad), (0, 0)))

    def one(b, y, x):
        fmap = fp[b]
        return jax.lax.dynamic_slice(fmap, (y, x, 0), (POOL, POOL, C))

    pooled = jax.vmap(one)(batch_idx, ys, xs)       # [R, POOL, POOL, C]
    return pooled.reshape(pooled.shape[0], -1)       # [R, C*POOL*POOL]


def init_linear(key, fan_in, fan_out):
    kw, kb = jax.random.split(key)
    w = jax.random.normal(kw, (fan_in, fan_out), jnp.float32) * (1.0 / math.sqrt(fan_in))
    b = jax.random.normal(kb, (1, fan_out), jnp.float32) * 0.01
    return w, b


def init_params(key):
    ks = jax.random.split(key, 8)
    p = {}
    p["conv_w"], p["conv_b"] = init_linear(ks[0], K_CONV, C_FEAT)
    p["rpn_wr"], p["rpn_br"] = init_linear(ks[1], C_FEAT, C_FEAT)
    p["rpn_wo"], p["rpn_bo"] = init_linear(ks[2], C_FEAT, A)
    p["rpn_wd"], p["rpn_bd"] = init_linear(ks[3], C_FEAT, 4 * A)
    p["fc6_w"], p["fc6_b"] = init_linear(ks[4], D_POOL, REP)
    p["fc7_w"], p["fc7_b"] = init_linear(ks[5], REP, REP)
    p["cls_w"], p["cls_b"] = init_linear(ks[6], REP, CLS_OUT)   # FastRCNNPredictor.cls_score
    p["box_w"], p["box_b"] = init_linear(ks[7], REP, BOX_OUT)   # FastRCNNPredictor.bbox_pred
    return p


def pack_params(p):
    """Fuse / pad weights into lane-dense bf16 slabs for the kernels."""
    q = {}
    # backbone conv: pad contraction 27 -> 32
    q["conv_w"] = jnp.pad(p["conv_w"],
                          ((0, K_CONV_PAD - K_CONV), (0, 0))).astype(jnp.bfloat16)
    q["conv_b"] = p["conv_b"]
    # RPN: shared conv + fused (objectness | delta) head padded 15 -> 128
    q["rpn_wr"] = p["rpn_wr"].astype(jnp.bfloat16)
    q["rpn_br"] = p["rpn_br"]
    wh = jnp.concatenate([p["rpn_wo"], p["rpn_wd"]], axis=1)
    bh = jnp.concatenate([p["rpn_bo"], p["rpn_bd"]], axis=1)
    q["rpn_wh"] = jnp.pad(wh, ((0, 0), (0, RPN_PAD - RPN_OUT))).astype(jnp.bfloat16)
    q["rpn_bh"] = jnp.pad(bh, ((0, 0), (0, RPN_PAD - RPN_OUT)))
    # box head: fc6/fc7 + fused predictor (cls | box) padded 405 -> 512
    q["fc6_w"] = p["fc6_w"].astype(jnp.bfloat16)
    q["fc6_b"] = p["fc6_b"]
    q["fc7_w"] = p["fc7_w"].astype(jnp.bfloat16)
    q["fc7_b"] = p["fc7_b"]
    wp = jnp.concatenate([p["cls_w"], p["box_w"]], axis=1)
    bp = jnp.concatenate([p["cls_b"], p["box_b"]], axis=1)
    q["pred_w"] = jnp.pad(wp, ((0, 0), (0, PRED_PAD - PRED_OUT))).astype(jnp.bfloat16)
    q["pred_b"] = jnp.pad(bp, ((0, 0), (0, PRED_PAD - PRED_OUT)))
    return q


def faster_rcnn_forward(images_nchw, params):
    """images_nchw: [B, 3, H, W] float32 (PyTorch layout)."""
    B, C, H, W = images_nchw.shape
    x = jnp.transpose(images_nchw, (0, 2, 3, 1))          # -> NHWC

    q = pack_params(params)

    # ---- backbone conv + RPN head (fused Pallas call) ----
    patches = extract_patches_3x3(x)                       # [M, 27]
    patches = jnp.pad(patches, ((0, 0), (0, K_CONV_PAD - K_CONV)))
    patches = patches.astype(jnp.bfloat16)
    feat_rows, rpn_out = conv_rpn(
        patches, q["conv_w"], q["conv_b"],
        q["rpn_wr"], q["rpn_br"], q["rpn_wh"], q["rpn_bh"])
    feat = feat_rows.reshape(B, H, W, C_FEAT)
    obj = rpn_out[:, :A]                                   # [M, A]
    deltas = rpn_out[:, A:A + 4 * A]                       # [M, 4A]

    # ---- proposal selection (JAX glue; real model: decode + NMS) ----
    obj_best = obj.reshape(B, H * W, A).max(axis=-1)       # [B, H*W]
    _, idx = jax.lax.top_k(obj_best, K_PER_IMG)            # [B, K]
    ys = (idx // W).reshape(-1)
    xs = (idx % W).reshape(-1)
    batch_idx = jnp.repeat(jnp.arange(B), K_PER_IMG)

    # ---- ROI pooling (JAX glue, simplified) ----
    pooled = roi_pool(feat, batch_idx, ys, xs)             # [R, C_FEAT*49]

    # ---- box head + fused predictor + softmax (Pallas) ----
    logits, scores, box_deltas = box_head(
        pooled,
        q["fc6_w"], q["fc6_b"],
        q["fc7_w"], q["fc7_b"],
        q["pred_w"], q["pred_b"])

    # TODO(synk): per-class box decoding, score_thresh=0.05 filtering and
    #             NMS (iou 0.5) postprocessing are not implemented in Pallas.
    return {
        "proposal_y": ys, "proposal_x": xs, "proposal_batch": batch_idx,
        "class_logits": logits,        # [R, 81]
        "scores": scores,              # [R, 81]
        "box_regression": box_deltas,  # [R, 324]
        "rpn_objectness": obj,         # [B*H*W, A]
        "rpn_deltas": deltas,          # [B*H*W, 4A]
    }


if __name__ == "__main__":
    key = jax.random.PRNGKey(0)
    kimg, kpar = jax.random.split(key)

    B, H, W = 2, 32, 32
    images = jax.random.normal(kimg, (B, C_IN, H, W), jnp.float32)  # NCHW
    params = init_params(kpar)

    out = jax.jit(faster_rcnn_forward)(images, params)
    jax.block_until_ready(out)

    assert out["class_logits"].shape == (B * K_PER_IMG, CLS_OUT)
    assert out["scores"].shape == (B * K_PER_IMG, CLS_OUT)
    assert out["box_regression"].shape == (B * K_PER_IMG, BOX_OUT)
    assert out["rpn_objectness"].shape == (B * H * W, A)
    assert out["rpn_deltas"].shape == (B * H * W, 4 * A)
    print("KERNEL_OK")
</pallas_src>

<mosaic_0001>
module attributes {stable_mosaic.version = 11 : i64} {
  func.func @_conv_rpn_kernel(%arg0: i32, %arg1: memref<1024x32xbf16, #tpu.memory_space<vmem>>, %arg2: memref<32x16xbf16, #tpu.memory_space<vmem>>, %arg3: memref<1x16xf32, #tpu.memory_space<vmem>>, %arg4: memref<16x16xbf16, #tpu.memory_space<vmem>>, %arg5: memref<1x16xf32, #tpu.memory_space<vmem>>, %arg6: memref<16x128xbf16, #tpu.memory_space<vmem>>, %arg7: memref<1x128xf32, #tpu.memory_space<vmem>>, %arg8: memref<1024x16xf32, #tpu.memory_space<vmem>>, %arg9: memref<1024x128xf32, #tpu.memory_space<vmem>>) attributes {dimension_semantics = [#tpu.dimension_semantics<parallel>], iteration_bounds = array<i64: 2>, scalar_prefetch = 0 : i64, scratch_operands = 0 : i64, tpu.core_type = #tpu.core_type<tc>, window_params = [{transform_indices = @transform_0, window_bounds = array<i64: 1024, 32>}, {pipeline_mode = #tpu.pipeline_mode<synchronous>, transform_indices = @transform_1, window_bounds = array<i64: 32, 16>}, {pipeline_mode = #tpu.pipeline_mode<synchronous>, transform_indices = @transform_2, window_bounds = array<i64: 1, 16>}, {pipeline_mode = #tpu.pipeline_mode<synchronous>, transform_indices = @transform_3, window_bounds = array<i64: 16, 16>}, {pipeline_mode = #tpu.pipeline_mode<synchronous>, transform_indices = @transform_4, window_bounds = array<i64: 1, 16>}, {pipeline_mode = #tpu.pipeline_mode<synchronous>, transform_indices = @transform_5, window_bounds = array<i64: 16, 128>}, {pipeline_mode = #tpu.pipeline_mode<synchronous>, transform_indices = @transform_6, window_bounds = array<i64: 1, 128>}, {transform_indices = @transform_7, window_bounds = array<i64: 1024, 16>}, {transform_indices = @transform_8, window_bounds = array<i64: 1024, 128>}]} {
    %c0 = arith.constant 0 : index
    %c0_0 = arith.constant 0 : index
    %0 = vector.load %arg1[%c0, %c0_0] : memref<1024x32xbf16, #tpu.memory_space<vmem>>, vector<1024x32xbf16>
    %c0_1 = arith.constant 0 : index
    %c0_2 = arith.constant 0 : index
    %1 = vector.load %arg2[%c0_1, %c0_2] : memref<32x16xbf16, #tpu.memory_space<vmem>>, vector<32x16xbf16>
    %cst = arith.constant dense<0.000000e+00> : vector<1024x16xf32>
    %2 = tpu.matmul %0, %1, %cst {dimension_numbers = #tpu.dot_dimension_numbers<[1], [0], [0], [1], [0, 0, 1, 1], [], []>} : vector<1024x32xbf16>, vector<32x16xbf16>, vector<1024x16xf32> -> vector<1024x16xf32>
    %c0_3 = arith.constant 0 : index
    %c0_4 = arith.constant 0 : index
    %3 = vector.load %arg3[%c0_3, %c0_4] : memref<1x16xf32, #tpu.memory_space<vmem>>, vector<1x16xf32>
    %4 = vector.broadcast %3 : vector<1x16xf32> to vector<1024x16xf32>
    %5 = arith.addf %2, %4 : vector<1024x16xf32>
    %cst_5 = arith.constant 0.000000e+00 : f32
    %6 = vector.broadcast %cst_5 : f32 to vector<1024x16xf32>
    %7 = arith.maximumf %5, %6 : vector<1024x16xf32>
    %c0_6 = arith.constant 0 : index
    %c0_7 = arith.constant 0 : index
    %8 = vector.load %arg8[%c0_6, %c0_7] : memref<1024x16xf32, #tpu.memory_space<vmem>>, vector<1024x16xf32>
    tpu.vector_store %arg8[%c0_6, %c0_7], %7 {strides = array<i32>} : memref<1024x16xf32, #tpu.memory_space<vmem>>, vector<1024x16xf32>,
    %9 = arith.truncf %7 : vector<1024x16xf32> to vector<1024x16xbf16>
    %c0_8 = arith.constant 0 : index
    %c0_9 = arith.constant 0 : index
    %10 = vector.load %arg4[%c0_8, %c0_9] : memref<16x16xbf16, #tpu.memory_space<vmem>>, vector<16x16xbf16>
    %cst_10 = arith.constant dense<0.000000e+00> : vector<1024x16xf32>
    %11 = tpu.matmul %9, %10, %cst_10 {dimension_numbers = #tpu.dot_dimension_numbers<[1], [0], [0], [1], [0, 0, 1, 1], [], []>} : vector<1024x16xbf16>, vector<16x16xbf16>, vector<1024x16xf32> -> vector<1024x16xf32>
    %c0_11 = arith.constant 0 : index
    %c0_12 = arith.constant 0 : index
    %12 = vector.load %arg5[%c0_11, %c0_12] : memref<1x16xf32, #tpu.memory_space<vmem>>, vector<1x16xf32>
    %13 = vector.broadcast %12 : vector<1x16xf32> to vector<1024x16xf32>
    %14 = arith.addf %11, %13 : vector<1024x16xf32>
    %cst_13 = arith.constant 0.000000e+00 : f32
    %15 = vector.broadcast %cst_13 : f32 to vector<1024x16xf32>
    %16 = arith.maximumf %14, %15 : vector<1024x16xf32>
    %17 = arith.truncf %16 : vector<1024x16xf32> to vector<1024x16xbf16>
    %c0_14 = arith.constant 0 : index
    %c0_15 = arith.constant 0 : index
    %18 = vector.load %arg6[%c0_14, %c0_15] : memref<16x128xbf16, #tpu.memory_space<vmem>>, vector<16x128xbf16>
    %cst_16 = arith.constant dense<0.000000e+00> : vector<1024x128xf32>
    %19 = tpu.matmul %17, %18, %cst_16 {dimension_numbers = #tpu.dot_dimension_numbers<[1], [0], [0], [1], [0, 0, 1, 1], [], []>} : vector<1024x16xbf16>, vector<16x128xbf16>, vector<1024x128xf32> -> vector<1024x128xf32>
    %c0_17 = arith.constant 0 : index
    %c0_18 = arith.constant 0 : index
    %20 = vector.load %arg7[%c0_17, %c0_18] : memref<1x128xf32, #tpu.memory_space<vmem>>, vector<1x128xf32>
    %21 = vector.broadcast %20 : vector<1x128xf32> to vector<1024x128xf32>
    %22 = arith.addf %19, %21 : vector<1024x128xf32>
    %c0_19 = arith.constant 0 : index
    %c0_20 = arith.constant 0 : index
    %23 = vector.load %arg9[%c0_19, %c0_20] : memref<1024x128xf32, #tpu.memory_space<vmem>>, vector<1024x128xf32>
    tpu.vector_store %arg9[%c0_19, %c0_20], %22 {strides = array<i32>} : memref<1024x128xf32, #tpu.memory_space<vmem>>, vector<1024x128xf32>,
    return
  }
  func.func @transform_0(%arg0: i32) -> (i32, i32) {
    %c0_i32 = arith.constant 0 : i32
    %c0_i32_0 = arith.constant 0 : i32
    return %arg0, %c0_i32 : i32, i32
  }
  func.func @transform_1(%arg0: i32) -> (i32, i32) {
    %c0_i32 = arith.constant 0 : i32
    %c0_i32_0 = arith.constant 0 : i32
    %c0_i32_1 = arith.constant 0 : i32
    return %c0_i32, %c0_i32_0 : i32, i32
  }
  func.func @transform_2(%arg0: i32) -> (i32, i32) {
    %c0_i32 = arith.constant 0 : i32
    %c0_i32_0 = arith.constant 0 : i32
    %c0_i32_1 = arith.constant 0 : i32
    return %c0_i32, %c0_i32_0 : i32, i32
  }
  func.func @transform_3(%arg0: i32) -> (i32, i32) {
    %c0_i32 = arith.constant 0 : i32
    %c0_i32_0 = arith.constant 0 : i32
    %c0_i32_1 = arith.constant 0 : i32
    return %c0_i32, %c0_i32_0 : i32, i32
  }
  func.func @transform_4(%arg0: i32) -> (i32, i32) {
    %c0_i32 = arith.constant 0 : i32
    %c0_i32_0 = arith.constant 0 : i32
    %c0_i32_1 = arith.constant 0 : i32
    return %c0_i32, %c0_i32_0 : i32, i32
  }
  func.func @transform_5(%arg0: i32) -> (i32, i32) {
    %c0_i32 = arith.constant 0 : i32
    %c0_i32_0 = arith.constant 0 : i32
    %c0_i32_1 = arith.constant 0 : i32
    return %c0_i32, %c0_i32_0 : i32, i32
  }
  func.func @transform_6(%arg0: i32) -> (i32, i32) {
    %c0_i32 = arith.constant 0 : i32
    %c0_i32_0 = arith.constant 0 : i32
    %c0_i32_1 = arith.constant 0 : i32
    return %c0_i32, %c0_i32_0 : i32, i32
  }
  func.func @transform_7(%arg0: i32) -> (i32, i32) {
    %c0_i32 = arith.constant 0 : i32
    %c0_i32_0 = arith.constant 0 : i32
    return %arg0, %c0_i32 : i32, i32
  }
  func.func @transform_8(%arg0: i32) -> (i32, i32) {
    %c0_i32 = arith.constant 0 : i32
    %c0_i32_0 = arith.constant 0 : i32
    return %arg0, %c0_i32 : i32, i32
  }
}

module attributes {stable_mosaic.version = 11 : i64} {
  func.func @_box_head_kernel(%arg0: i32, %arg1: memref<8x784xf32, #tpu.memory_space<vmem>>, %arg2: memref<784x256xbf16, #tpu.memory_space<vmem>>, %arg3: memref<1x256xf32, #tpu.memory_space<vmem>>, %arg4: memref<256x256xbf16, #tpu.memory_space<vmem>>, %arg5: memref<1x256xf32, #tpu.memory_space<vmem>>, %arg6: memref<256x512xbf16, #tpu.memory_space<vmem>>, %arg7: memref<1x512xf32, #tpu.memory_space<vmem>>, %arg8: memref<8x512xf32, #tpu.memory_space<vmem>>, %arg9: memref<8x128xf32, #tpu.memory_space<vmem>>) attributes {dimension_semantics = [#tpu.dimension_semantics<parallel>], iteration_bounds = array<i64: 2>, scalar_prefetch = 0 : i64, scratch_operands = 0 : i64, tpu.core_type = #tpu.core_type<tc>, window_params = [{transform_indices = @transform_0, window_bounds = array<i64: 8, 784>}, {pipeline_mode = #tpu.pipeline_mode<synchronous>, transform_indices = @transform_1, window_bounds = array<i64: 784, 256>}, {pipeline_mode = #tpu.pipeline_mode<synchronous>, transform_indices = @transform_2, window_bounds = array<i64: 1, 256>}, {pipeline_mode = #tpu.pipeline_mode<synchronous>, transform_indices = @transform_3, window_bounds = array<i64: 256, 256>}, {pipeline_mode = #tpu.pipeline_mode<synchronous>, transform_indices = @transform_4, window_bounds = array<i64: 1, 256>}, {pipeline_mode = #tpu.pipeline_mode<synchronous>, transform_indices = @transform_5, window_bounds = array<i64: 256, 512>}, {pipeline_mode = #tpu.pipeline_mode<synchronous>, transform_indices = @transform_6, window_bounds = array<i64: 1, 512>}, {transform_indices = @transform_7, window_bounds = array<i64: 8, 512>}, {transform_indices = @transform_8, window_bounds = array<i64: 8, 128>}]} {
    %c0 = arith.constant 0 : index
    %c0_0 = arith.constant 0 : index
    %0 = vector.load %arg1[%c0, %c0_0] : memref<8x784xf32, #tpu.memory_space<vmem>>, vector<8x784xf32>
    %1 = arith.truncf %0 : vector<8x784xf32> to vector<8x784xbf16>
    %c0_1 = arith.constant 0 : index
    %c0_2 = arith.constant 0 : index
    %2 = vector.load %arg2[%c0_1, %c0_2] : memref<784x256xbf16, #tpu.memory_space<vmem>>, vector<784x256xbf16>
    %cst = arith.constant dense<0.000000e+00> : vector<8x256xf32>
    %3 = tpu.matmul %1, %2, %cst {dimension_numbers = #tpu.dot_dimension_numbers<[1], [0], [0], [1], [0, 0, 1, 1], [], []>} : vector<8x784xbf16>, vector<784x256xbf16>, vector<8x256xf32> -> vector<8x256xf32>
    %c0_3 = arith.constant 0 : index
    %c0_4 = arith.constant 0 : index
    %4 = vector.load %arg3[%c0_3, %c0_4] : memref<1x256xf32, #tpu.memory_space<vmem>>, vector<1x256xf32>
    %5 = vector.broadcast %4 : vector<1x256xf32> to vector<8x256xf32>
    %6 = arith.addf %3, %5 : vector<8x256xf32>
    %cst_5 = arith.constant 0.000000e+00 : f32
    %7 = vector.broadcast %cst_5 : f32 to vector<8x256xf32>
    %8 = arith.maximumf %6, %7 : vector<8x256xf32>
    %9 = arith.truncf %8 : vector<8x256xf32> to vector<8x256xbf16>
    %c0_6 = arith.constant 0 : index
    %c0_7 = arith.constant 0 : index
    %10 = vector.load %arg4[%c0_6, %c0_7] : memref<256x256xbf16, #tpu.memory_space<vmem>>, vector<256x256xbf16>
    %cst_8 = arith.constant dense<0.000000e+00> : vector<8x256xf32>
    %11 = tpu.matmul %9, %10, %cst_8 {dimension_numbers = #tpu.dot_dimension_numbers<[1], [0], [0], [1], [0, 0, 1, 1], [], []>} : vector<8x256xbf16>, vector<256x256xbf16>, vector<8x256xf32> -> vector<8x256xf32>
    %c0_9 = arith.constant 0 : index
    %c0_10 = arith.constant 0 : index
    %12 = vector.load %arg5[%c0_9, %c0_10] : memref<1x256xf32, #tpu.memory_space<vmem>>, vector<1x256xf32>
    %13 = vector.broadcast %12 : vector<1x256xf32> to vector<8x256xf32>
    %14 = arith.addf %11, %13 : vector<8x256xf32>
    %cst_11 = arith.constant 0.000000e+00 : f32
    %15 = vector.broadcast %cst_11 : f32 to vector<8x256xf32>
    %16 = arith.maximumf %14, %15 : vector<8x256xf32>
    %17 = arith.truncf %16 : vector<8x256xf32> to vector<8x256xbf16>
    %c0_12 = arith.constant 0 : index
    %c0_13 = arith.constant 0 : index
    %18 = vector.load %arg6[%c0_12, %c0_13] : memref<256x512xbf16, #tpu.memory_space<vmem>>, vector<256x512xbf16>
    %cst_14 = arith.constant dense<0.000000e+00> : vector<8x512xf32>
    %19 = tpu.matmul %17, %18, %cst_14 {dimension_numbers = #tpu.dot_dimension_numbers<[1], [0], [0], [1], [0, 0, 1, 1], [], []>} : vector<8x256xbf16>, vector<256x512xbf16>, vector<8x512xf32> -> vector<8x512xf32>
    %c0_15 = arith.constant 0 : index
    %c0_16 = arith.constant 0 : index
    %20 = vector.load %arg7[%c0_15, %c0_16] : memref<1x512xf32, #tpu.memory_space<vmem>>, vector<1x512xf32>
    %21 = vector.broadcast %20 : vector<1x512xf32> to vector<8x512xf32>
    %22 = arith.addf %19, %21 : vector<8x512xf32>
    %c0_17 = arith.constant 0 : index
    %c0_18 = arith.constant 0 : index
    %23 = vector.load %arg8[%c0_17, %c0_18] : memref<8x512xf32, #tpu.memory_space<vmem>>, vector<8x512xf32>
    tpu.vector_store %arg8[%c0_17, %c0_18], %22 {strides = array<i32>} : memref<8x512xf32, #tpu.memory_space<vmem>>, vector<8x512xf32>,
    %24 = vector.extract_strided_slice %22 {offsets = [0, 0], sizes = [8, 128], strides = [1, 1]} : vector<8x512xf32> to vector<8x128xf32>
    %25 = tpu.iota {dimensions = array<i32: 1>} : vector<8x128xi32>
    %c81_i32 = arith.constant 81 : i32
    %26 = vector.broadcast %c81_i32 : i32 to vector<8x128xi32>
    %27 = arith.cmpi slt, %25, %26 : vector<8x128xi32>
    %cst_19 = arith.constant 0xFF800000 : f32
    %28 = vector.broadcast %cst_19 : f32 to vector<8x128xf32>
    %29 = arith.select %27, %24, %28 : vector<8x128xi1>, vector<8x128xf32>
    %cst_20 = arith.constant dense<0xFF800000> : vector<8xf32>
    %30 = vector.multi_reduction <maximumf>, %29, %cst_20 [1] : vector<8x128xf32> to vector<8xf32>
    %31 = vector.shape_cast %30 : vector<8xf32> to vector<8x1xf32>
    %32 = vector.broadcast %31 : vector<8x1xf32> to vector<8x128xf32>
    %33 = arith.subf %29, %32 : vector<8x128xf32>
    %34 = math.exp %33 : vector<8x128xf32>
    %cst_21 = arith.constant 0.000000e+00 : f32
    %35 = vector.broadcast %cst_21 : f32 to vector<8x128xf32>
    %36 = arith.select %27, %34, %35 : vector<8x128xi1>, vector<8x128xf32>
    %cst_22 = arith.constant dense<0.000000e+00> : vector<8xf32>
    %37 = vector.multi_reduction <add>, %36, %cst_22 [1] : vector<8x128xf32> to vector<8xf32>
    %38 = vector.shape_cast %37 : vector<8xf32> to vector<8x1xf32>
    %39 = tpu.reciprocal %38 {approx = true} : vector<8x1xf32> -> vector<8x1xf32>
    %40 = vector.broadcast %39 : vector<8x1xf32> to vector<8x128xf32>
    %41 = arith.mulf %36, %40 : vector<8x128xf32>
    %c0_23 = arith.constant 0 : index
    %c0_24 = arith.constant 0 : index
    %42 = vector.load %arg9[%c0_23, %c0_24] : memref<8x128xf32, #tpu.memory_space<vmem>>, vector<8x128xf32>
    tpu.vector_store %arg9[%c0_23, %c0_24], %41 {strides = array<i32>} : memref<8x128xf32, #tpu.memory_space<vmem>>, vector<8x128xf32>,
    return
  }
  func.func @transform_0(%arg0: i32) -> (i32, i32) {
    %c0_i32 = arith.constant 0 : i32
    %c0_i32_0 = arith.constant 0 : i32
    return %arg0, %c0_i32 : i32, i32
  }
  func.func @transform_1(%arg0: i32) -> (i32, i32) {
    %c0_i32 = arith.constant 0 : i32
    %c0_i32_0 = arith.constant 0 : i32
    %c0_i32_1 = arith.constant 0 : i32
    return %c0_i32, %c0_i32_0 : i32, i32
  }
  func.func @transform_2(%arg0: i32) -> (i32, i32) {
    %c0_i32 = arith.constant 0 : i32
    %c0_i32_0 = arith.constant 0 : i32
    %c0_i32_1 = arith.constant 0 : i32
    return %c0_i32, %c0_i32_0 : i32, i32
  }
  func.func @transform_3(%arg0: i32) -> (i32, i32) {
    %c0_i32 = arith.constant 0 : i32
    %c0_i32_0 = arith.constant 0 : i32
    %c0_i32_1 = arith.constant 0 : i32
    return %c0_i32, %c0_i32_0 : i32, i32
  }
  func.func @transform_4(%arg0: i32) -> (i32, i32) {
    %c0_i32 = arith.constant 0 : i32
    %c0_i32_0 = arith.constant 0 : i32
    %c0_i32_1 = arith.constant 0 : i32
    return %c0_i32, %c0_i32_0 : i32, i32
  }
  func.func @transform_5(%arg0: i32) -> (i32, i32) {
    %c0_i32 = arith.constant 0 : i32
    %c0_i32_0 = arith.constant 0 : i32
    %c0_i32_1 = arith.constant 0 : i32
    return %c0_i32, %c0_i32_0 : i32, i32
  }
  func.func @transform_6(%arg0: i32) -> (i32, i32) {
    %c0_i32 = arith.constant 0 : i32
    %c0_i32_0 = arith.constant 0 : i32
    %c0_i32_1 = arith.constant 0 : i32
    return %c0_i32, %c0_i32_0 : i32, i32
  }
  func.func @transform_7(%arg0: i32) -> (i32, i32) {
    %c0_i32 = arith.constant 0 : i32
    %c0_i32_0 = arith.constant 0 : i32
    return %arg0, %c0_i32 : i32, i32
  }
  func.func @transform_8(%arg0: i32) -> (i32, i32) {
    %c0_i32 = arith.constant 0 : i32
    %c0_i32_0 = arith.constant 0 : i32
    return %arg0, %c0_i32 : i32, i32
  }
}

</mosaic_0001>

<llo_original>
// kernel: custom-call
$region0: #{custom-call}
  #allocation0 [shape = 'u32[8,128]{1,0}', space=vmem, size = 0x1000, scoped, tag = 'scratch']
  #allocation1 [shape = 'u32[8,128]{1,0}', space=vmem, size = 0x1000, scoped, tag = 'scratch']
  #allocation2 [shape = 'u32[8,128]{1,0}', space=vmem, size = 0x1000, scoped, tag = 'scratch']
  #allocation3 [shape = 'u32[8,128]{1,0}', space=vmem, size = 0x1000, scoped, tag = 'scratch']
  #allocation4 [shape = 'u32[8,128]{1,0}', space=vmem, size = 0x1000, scoped, tag = 'scratch']
  #allocation5 [shape = 'u32[8,128]{1,0}', space=vmem, size = 0x1000, scoped, tag = 'scratch']
  #allocation6 [shape = 'u32[8,128]{1,0}', space=vmem, size = 0x1000, scoped, tag = 'scratch']
  %s0 = inlined_call_operand.vmem [shape: f32[2,1024], index: 0, kind: input, shape index: {}]
  %s1 = inlined_call_operand.hbm [shape: f32[2,8], index: 1, kind: output, shape index: {0}]
  %s2 = inlined_call_operand.vmem [shape: s32[2,8], index: 2, kind: output, shape index: {1}]
  %3 = xla_tuple %s1, %s2
  %4 = xla_tuple 2147483648, 2147483647
  $region1: #{custom-call} parent=0
    #allocation7 [shape = 'u8[4096]{0}', space=vmem, size = 0x1000, scoped, tag = 'operand span for operand 1']
    #allocation8 [shape = 'u8[1024]{0}', space=vmem, size = 0x400, scoped, tag = 'packed  for operand 1']
    #allocation9 [shape = 's32[1]{0}', space=sflag, size = 0x4, scoped, tag = 'scoped memory for custom-call']
    #allocation10 [shape = 'u8[4096]{0}', space=vmem, size = 0x1000, scoped, tag = 'operand span for operand 2']
    #allocation11 [shape = 'u8[1024]{0}', space=vmem, size = 0x400, scoped, tag = 'packed  for operand 2']
    #allocation12 [shape = 'f32[8,2]{1,0:T(8,128)}', space=vmem, size = 0x1000, scoped, tag = 'scoped memory for custom-call']
    #allocation13 [shape = 'f32[8,2]{1,0:T(8,128)}', space=vmem, size = 0x1000, scoped, tag = 'scoped memory for custom-call']
    #allocation14 [shape = 's32[8,2]{1,0:T(8,128)}', space=vmem, size = 0x1000, scoped, tag = 'scoped memory for custom-call']
    #allocation15 [shape = 's32[8,2]{1,0:T(8,128)}', space=vmem, size = 0x1000, scoped, tag = 'scoped memory for custom-call']
    %5 = vsyncpa [#allocation9], 0
    %6 = xla_tuple [#allocation7], [#allocation10]
    %7 = vst [vmem:[#allocation12] sm:$0xff] 2147483648
    %8 = vst [vmem:[#allocation14] sm:$0xff] 2147483647
    %9 = xla_tuple [#allocation12], [#allocation14]
    %10 = xla_tuple [#allocation13], [#allocation15]
    $region2: #{custom-call} parent=1
      #allocation16 [shape = 'u8[8192]{0}', space=vmem, size = 0x2000, scoped, tag = 'operand span for operand 0']
      #allocation17 [shape = 's32[2048]{0}', space=vmem, size = 0x2000, scoped, tag = 'scoped memory for custom-call']
      // Predicated region
      $region3: #{custom-call} parent=2 // pred_check
        _
      $region4: #{custom-call} parent=2 // pred_check_branch
        %12 = sbr.rel (0) target = $region6
      $region5: #{custom-call} parent=2 // pred_region
        // Predicated region
        $region7: #{custom-call} parent=5 // pred_check
          _
        $region8: #{custom-call} parent=5 // pred_check_branch
          %14 = sbr.rel (0) target = $region10
        $region9: #{custom-call} parent=5 // pred_region
          // Predicated region
          $region11: #{custom-call} parent=9 // pred_check
            _
          $region12: #{custom-call} parent=9 // pred_check_branch
            %16 = sbr.rel (0) target = $region14
          $region13: #{custom-call} parent=9 // pred_region
            loop: start=0, step=1, limit=1
            $region15: #{custom-call} parent=13 // loop_pre_header
              _
            $region16: #{custom-call} parent=13 // loop_header
              %s18 = sphi 0, %s22
              %p19 = scmp.ge.s32.totalorder %s18, 1
              %s23 = sphi %s0, %s0
              %s24 = sphi [#allocation16], [#allocation16]
            $region17: #{custom-call} parent=13 // loop_header_branch
              %21 = sbr.rel (%p19) target = $region21
            $region18: #{custom-call} parent=13 // loop_body
              %v25 = vld [vmem:[%s23] sm:$0xff]
              %26 = vst [vmem:[%s24] sm:$0xff] %v25
              %v27 = vld [vmem:[%s23 + $0x8] sm:$0xff]
              %28 = vst [vmem:[%s24 + $0x8] sm:$0xff] %v27
            $region19: #{custom-call} parent=13 // loop_footer
              %s22 = sadd.s32 1, %s18
            $region20: #{custom-call} parent=13 // loop_footer_branch
              %17 = sbr.rel target = $region16
            $region21: #{custom-call} parent=13 // loop_exit
              _
          $region14: #{custom-call} parent=9 // pred_fallthru
            _
          // Predicated region
          $region22: #{custom-call} parent=9 // pred_check
            _
          $region23: #{custom-call} parent=9 // pred_check_branch
            %30 = sbr.rel target = $region25
          $region24: #{custom-call} parent=9 // pred_region
            _
          $region25: #{custom-call} parent=9 // pred_fallthru
            _
        $region10: #{custom-call} parent=5 // pred_fallthru
          _
        %31 = vnop
      $region6: #{custom-call} parent=2 // pred_fallthru
        _
      // Predicated region
      $region26: #{custom-call} parent=2 // pred_check
        _
      $region27: #{custom-call} parent=2 // pred_check_branch
        %33 = sbr.rel (0) target = $region29
      $region28: #{custom-call} parent=2 // pred_region
        _
      $region29: #{custom-call} parent=2 // pred_fallthru
        _
      %v34 = vlaneseq
      %v35 = vand.u32 %v34, 127
      %v36 = vlaneseq
      %v37 = vshrl.u32 %v36, 7
      %v38 = vshrl.u32 %v37, 1
      %v39 = vand.u32 %v37, 1
      %v40 = vmul.u32 %v38, 128
      %v41 = vadd.s32 %v35, %v40
      %v43 = vld [vmem:[#allocation16] sm:$0xff]
      %vm44 = vcmp.lt.s32.totalorder %v43, 0
      %v45 = vsub.s32 2147483647, %v43
      %v46 = vsel %vm44, %v45, %v43
      %vm48 = vcmp.lt.s32.totalorder %v41, 1024
      %v49 = vsel %vm48, %v46, 2147483648
      %50 = vst [vmem:[#allocation16] sm:$0xff] %v49
      %s51 = scalar_lea.vmem [#allocation16], 8
      %v52 = vld [vmem:[%s51] sm:$0xff]
      %vm53 = vcmp.lt.s32.totalorder %v52, 0
      %v54 = vsub.s32 2147483647, %v52
      %v55 = vsel %vm53, %v54, %v52
      %v56 = vadd.s32 %v41, 512
      %vm57 = vcmp.lt.s32.totalorder %v56, 1024
      %v58 = vsel %vm57, %v55, 2147483648
      %59 = vst [vmem:[%s51] sm:$0xff] %v58
      %v60 = vlaneseq
      %v61 = vand.u32 %v60, 127
      %v62 = vlaneseq
      %v63 = vshrl.u32 %v62, 7
      %v64 = vshrl.u32 %v63, 1
      %v65 = vand.u32 %v63, 1
      %v66 = vmul.u32 %v64, 128
      %v67 = vadd.s32 %v61, %v66
      %70 = vst [vmem:[#allocation17] sm:$0xff] %v67
      %v71 = vadd.s32 %v67, 512
      %s72 = scalar_lea.vmem [#allocation17], 8
      %73 = vst [vmem:[%s72] sm:$0xff] %v71
      %74 = xla_tuple [#allocation16], [#allocation17]
      %75 = vst [vmem:[#allocation13] sm:$0xff] 2147483648
      %76 = vst [vmem:[#allocation15] sm:$0xff] 2147483647
      %77 = xla_tuple [#allocation13], [#allocation15]
      loop: start=0, step=1, limit=8
      $region30: #{custom-call} parent=2 // loop_pre_header
        _
      $region31: #{custom-call} parent=2 // loop_header
        %s79 = sphi 0, %s83
        %p80 = scmp.ge.s32.totalorder %s79, 8
      $region32: #{custom-call} parent=2 // loop_header_branch
        %82 = sbr.rel (%p80) target = $region36
      $region33: #{custom-call} parent=2 // loop_body
        %v84 = vld [vmem:[#allocation16] sm:$0xff]
        %v85 = vld [vmem:[#allocation17] sm:$0xff]
        %86 = xla_tuple %v84, %v85
        %s87 = scalar_lea.vmem [#allocation16], 8
        %v88 = vld [vmem:[%s87] sm:$0xff]
        %s89 = scalar_lea.vmem [#allocation17], 8
        %v90 = vld [vmem:[%s89] sm:$0xff]
        %91 = xla_tuple %v88, %v90
        %vm92 = vcmp.gt.s32.totalorder %v88, %v84
        %vm93 = vcmp.eq.s32.totalorder %v88, %v84
        %vm94 = vcmp.lt.s32.totalorder %v90, %v85
        %vm95 = vmand %vm93, %vm94
        %vm96 = vmor %vm92, %vm95
        %v97 = vsel %vm96, %v88, %v84
        %v98 = vsel %vm96, %v90, %v85
        %99 = xla_tuple %v97, %v98
        %v100 = vrot.slane %v97, 2
        %v101 = vrot.slane %v98, 2
        %102 = xla_tuple %v100, %v101
        %vm103 = vcmp.gt.s32.totalorder %v100, %v97
        %vm104 = vcmp.eq.s32.totalorder %v100, %v97
        %vm105 = vcmp.lt.s32.totalorder %v101, %v98
        %vm106 = vmand %vm104, %vm105
        %vm107 = vmor %vm103, %vm106
        %v108 = vsel %vm107, %v100, %v97
        %v109 = vsel %vm107, %v101, %v98
        %110 = xla_tuple %v108, %v109
        %v111 = vrot.slane %v108, 2
        %v112 = vrot.slane %v109, 2
        %113 = xla_tuple %v111, %v112
        %vm114 = vcmp.gt.s32.totalorder %v111, %v108
        %vm115 = vcmp.eq.s32.totalorder %v111, %v108
        %vm116 = vcmp.lt.s32.totalorder %v112, %v109
        %vm117 = vmand %vm115, %vm116
        %vm118 = vmor %vm114, %vm117
        %v119 = vsel %vm118, %v111, %v108
        %v120 = vsel %vm118, %v112, %v109
        %121 = xla_tuple %v119, %v120
        %v122 = vrot.slane %v119, 2
        %v123 = vrot.slane %v120, 2
        %124 = xla_tuple %v122, %v123
        %vm125 = vcmp.gt.s32.totalorder %v122, %v119
        %vm126 = vcmp.eq.s32.totalorder %v122, %v119
        %vm127 = vcmp.lt.s32.totalorder %v123, %v120
        %vm128 = vmand %vm126, %vm127
        %vm129 = vmor %vm125, %vm128
        %v130 = vsel %vm129, %v122, %v119
        %v131 = vsel %vm129, %v123, %v120
        %132 = xla_tuple %v130, %v131
        %133 = vxpose.xlu0.b32.start [1/16] %v130, 128
        %134 = vxpose.xlu0.b32.cont [2/16] %v130, 128
        %135 = vxpose.xlu0.b32.cont [3/16] %v130, 128
        %136 = vxpose.xlu0.b32.cont [4/16] %v130, 128
        %137 = vxpose.xlu0.b32.cont [5/16] %v130, 128
        %138 = vxpose.xlu0.b32.cont [6/16] %v130, 128
        %139 = vxpose.xlu0.b32.cont [7/16] %v130, 128
        %140 = vxpose.xlu0.b32.cont [8/16] %v130, 128
        %141 = vxpose.xlu0.b32.cont [9/16] %v130, 128
        %142 = vxpose.xlu0.b32.cont [10/16] %v130, 128
        %143 = vxpose.xlu0.b32.cont [11/16] %v130, 128
        %144 = vxpose.xlu0.b32.cont [12/16] %v130, 128
        %145 = vxpose.xlu0.b32.cont [13/16] %v130, 128
        %146 = vxpose.xlu0.b32.cont [14/16] %v130, 128
        %147 = vxpose.xlu0.b32.cont [15/16] %v130, 128
        %148 = vxpose.xlu0.b32.end [16/16] %v130, 128
        %v149 = vpop.trf.xlu0
        %v150 = vpop.trf.xlu0
        %v151 = vpop.trf.xlu0
        %v152 = vpop.trf.xlu0
        %v153 = vpop.trf.xlu0
        %v154 = vpop.trf.xlu0
        %v155 = vpop.trf.xlu0
        %v156 = vpop.trf.xlu0
        %v157 = vpop.trf.xlu0
        %v158 = vpop.trf.xlu0
        %v159 = vpop.trf.xlu0
        %v160 = vpop.trf.xlu0
        %v161 = vpop.trf.xlu0
        %v162 = vpop.trf.xlu0
        %v163 = vpop.trf.xlu0
        %v164 = vpop.trf.xlu0
        %165 = vxpose.xlu0.b32.start [1/16] %v131, 128
        %166 = vxpose.xlu0.b32.cont [2/16] %v131, 128
        %167 = vxpose.xlu0.b32.cont [3/16] %v131, 128
        %168 = vxpose.xlu0.b32.cont [4/16] %v131, 128
        %169 = vxpose.xlu0.b32.cont [5/16] %v131, 128
        %170 = vxpose.xlu0.b32.cont [6/16] %v131, 128
        %171 = vxpose.xlu0.b32.cont [7/16] %v131, 128
        %172 = vxpose.xlu0.b32.cont [8/16] %v131, 128
        %173 = vxpose.xlu0.b32.cont [9/16] %v131, 128
        %174 = vxpose.xlu0.b32.cont [10/16] %v131, 128
        %175 = vxpose.xlu0.b32.cont [11/16] %v131, 128
        %176 = vxpose.xlu0.b32.cont [12/16] %v131, 128
        %177 = vxpose.xlu0.b32.cont [13/16] %v131, 128
        %178 = vxpose.xlu0.b32.cont [14/16] %v131, 128
        %179 = vxpose.xlu0.b32.cont [15/16] %v131, 128
        %180 = vxpose.xlu0.b32.end [16/16] %v131, 128
        %v181 = vpop.trf.xlu0
        %v182 = vpop.trf.xlu0
        %v183 = vpop.trf.xlu0
        %v184 = vpop.trf.xlu0
        %v185 = vpop.trf.xlu0
        %v186 = vpop.trf.xlu0
        %v187 = vpop.trf.xlu0
        %v188 = vpop.trf.xlu0
        %v189 = vpop.trf.xlu0
        %v190 = vpop.trf.xlu0
        %v191 = vpop.trf.xlu0
        %v192 = vpop.trf.xlu0
        %v193 = vpop.trf.xlu0
        %v194 = vpop.trf.xlu0
        %v195 = vpop.trf.xlu0
        %v196 = vpop.trf.xlu0
        %197 = xla_tuple %v149, %v181
        %198 = xla_tuple %v150, %v182
        %vm199 = vcmp.gt.s32.totalorder %v150, %v149
        %vm200 = vcmp.eq.s32.totalorder %v150, %v149
        %vm201 = vcmp.lt.s32.totalorder %v182, %v181
        %vm202 = vmand %vm200, %vm201
        %vm203 = vmor %vm199, %vm202
        %v204 = vsel %vm203, %v150, %v149
        %v205 = vsel %vm203, %v182, %v181
        %206 = xla_tuple %v204, %v205
        %207 = xla_tuple %v151, %v183
        %vm208 = vcmp.gt.s32.totalorder %v151, %v204
        %vm209 = vcmp.eq.s32.totalorder %v151, %v204
        %vm210 = vcmp.lt.s32.totalorder %v183, %v205
        %vm211 = vmand %vm209, %vm210
        %vm212 = vmor %vm208, %vm211
        %v213 = vsel %vm212, %v151, %v204
        %v214 = vsel %vm212, %v183, %v205
        %215 = xla_tuple %v213, %v214
        %216 = xla_tuple %v152, %v184
        %vm217 = vcmp.gt.s32.totalorder %v152, %v213
        %vm218 = vcmp.eq.s32.totalorder %v152, %v213
        %vm219 = vcmp.lt.s32.totalorder %v184, %v214
        %vm220 = vmand %vm218, %vm219
        %vm221 = vmor %vm217, %vm220
        %v222 = vsel %vm221, %v152, %v213
        %v223 = vsel %vm221, %v184, %v214
        %224 = xla_tuple %v222, %v223
        %225 = xla_tuple %v153, %v185
        %vm226 = vcmp.gt.s32.totalorder %v153, %v222
        %vm227 = vcmp.eq.s32.totalorder %v153, %v222
        %vm228 = vcmp.lt.s32.totalorder %v185, %v223
        %vm229 = vmand %vm227, %vm228
        %vm230 = vmor %vm226, %vm229
        %v231 = vsel %vm230, %v153, %v222
        %v232 = vsel %vm230, %v185, %v223
        %233 = xla_tuple %v231, %v232
        %234 = xla_tuple %v154, %v186
        %vm235 = vcmp.gt.s32.totalorder %v154, %v231
        %vm236 = vcmp.eq.s32.totalorder %v154, %v231
        %vm237 = vcmp.lt.s32.totalorder %v186, %v232
        %vm238 = vmand %vm236, %vm237
        %vm239 = vmor %vm235, %vm238
        %v240 = vsel %vm239, %v154, %v231
        %v241 = vsel %vm239, %v186, %v232
        %242 = xla_tuple %v240, %v241
        %243 = xla_tuple %v155, %v187
        %vm244 = vcmp.gt.s32.totalorder %v155, %v240
        %vm245 = vcmp.eq.s32.totalorder %v155, %v240
        %vm246 = vcmp.lt.s32.totalorder %v187, %v241
        %vm247 = vmand %vm245, %vm246
        %vm248 = vmor %vm244, %vm247
        %v249 = vsel %vm248, %v155, %v240
        %v250 = vsel %vm248, %v187, %v241
        %251 = xla_tuple %v249, %v250
        %252 = xla_tuple %v156, %v188
        %vm253 = vcmp.gt.s32.totalorder %v156, %v249
        %vm254 = vcmp.eq.s32.totalorder %v156, %v249
        %vm255 = vcmp.lt.s32.totalorder %v188, %v250
        %vm256 = vmand %vm254, %vm255
        %vm257 = vmor %vm253, %vm256
        %v258 = vsel %vm257, %v156, %v249
        %v259 = vsel %vm257, %v188, %v250
        %260 = xla_tuple %v258, %v259
        %261 = xla_tuple %v157, %v189
        %vm262 = vcmp.gt.s32.totalorder %v157, %v258
        %vm263 = vcmp.eq.s32.totalorder %v157, %v258
        %vm264 = vcmp.lt.s32.totalorder %v189, %v259
        %vm265 = vmand %vm263, %vm264
        %vm266 = vmor %vm262, %vm265
        %v267 = vsel %vm266, %v157, %v258
        %v268 = vsel %vm266, %v189, %v259
        %269 = xla_tuple %v267, %v268
        %270 = xla_tuple %v158, %v190
        %vm271 = vcmp.gt.s32.totalorder %v158, %v267
        %vm272 = vcmp.eq.s32.totalorder %v158, %v267
        %vm273 = vcmp.lt.s32.totalorder %v190, %v268
        %vm274 = vmand %vm272, %vm273
        %vm275 = vmor %vm271, %vm274
        %v276 = vsel %vm275, %v158, %v267
        %v277 = vsel %vm275, %v190, %v268
        %278 = xla_tuple %v276, %v277
        %279 = xla_tuple %v159, %v191
        %vm280 = vcmp.gt.s32.totalorder %v159, %v276
        %vm281 = vcmp.eq.s32.totalorder %v159, %v276
        %vm282 = vcmp.lt.s32.totalorder %v191, %v277
        %vm283 = vmand %vm281, %vm282
        %vm284 = vmor %vm280, %vm283
        %v285 = vsel %vm284, %v159, %v276
        %v286 = vsel %vm284, %v191, %v277
        %287 = xla_tuple %v285, %v286
        %288 = xla_tuple %v160, %v192
        %vm289 = vcmp.gt.s32.totalorder %v160, %v285
        %vm290 = vcmp.eq.s32.totalorder %v160, %v285
        %vm291 = vcmp.lt.s32.totalorder %v192, %v286
        %vm292 = vmand %vm290, %vm291
        %vm293 = vmor %vm289, %vm292
        %v294 = vsel %vm293, %v160, %v285
        %v295 = vsel %vm293, %v192, %v286
        %296 = xla_tuple %v294, %v295
        %297 = xla_tuple %v161, %v193
        %vm298 = vcmp.gt.s32.totalorder %v161, %v294
        %vm299 = vcmp.eq.s32.totalorder %v161, %v294
        %vm300 = vcmp.lt.s32.totalorder %v193, %v295
        %vm301 = vmand %vm299, %vm300
        %vm302 = vmor %vm298, %vm301
        %v303 = vsel %vm302, %v161, %v294
        %v304 = vsel %vm302, %v193, %v295
        %305 = xla_tuple %v303, %v304
        %306 = xla_tuple %v162, %v194
        %vm307 = vcmp.gt.s32.totalorder %v162, %v303
        %vm308 = vcmp.eq.s32.totalorder %v162, %v303
        %vm309 = vcmp.lt.s32.totalorder %v194, %v304
        %vm310 = vmand %vm308, %vm309
        %vm311 = vmor %vm307, %vm310
        %v312 = vsel %vm311, %v162, %v303
        %v313 = vsel %vm311, %v194, %v304
        %314 = xla_tuple %v312, %v313
        %315 = xla_tuple %v163, %v195
        %vm316 = vcmp.gt.s32.totalorder %v163, %v312
        %vm317 = vcmp.eq.s32.totalorder %v163, %v312
        %vm318 = vcmp.lt.s32.totalorder %v195, %v313
        %vm319 = vmand %vm317, %vm318
        %vm320 = vmor %vm316, %vm319
        %v321 = vsel %vm320, %v163, %v312
        %v322 = vsel %vm320, %v195, %v313
        %323 = xla_tuple %v321, %v322
        %324 = xla_tuple %v164, %v196
        %vm325 = vcmp.gt.s32.totalorder %v164, %v321
        %vm326 = vcmp.eq.s32.totalorder %v164, %v321
        %vm327 = vcmp.lt.s32.totalorder %v196, %v322
        %vm328 = vmand %vm326, %vm327
        %vm329 = vmor %vm325, %vm328
        %v330 = vsel %vm329, %v164, %v321
        %v331 = vsel %vm329, %v196, %v322
        %332 = xla_tuple %v330, %v331
        %v333 = vrot.slane %v330, 1
        %v334 = vrot.slane %v331, 1
        %335 = xla_tuple %v333, %v334
        %vm336 = vcmp.gt.s32.totalorder %v333, %v330
        %vm337 = vcmp.eq.s32.totalorder %v333, %v330
        %vm338 = vcmp.lt.s32.totalorder %v334, %v331
        %vm339 = vmand %vm337, %vm338
        %vm340 = vmor %vm336, %vm339
        %v341 = vsel %vm340, %v333, %v330
        %v342 = vsel %vm340, %v334, %v331
        %343 = xla_tuple %v341, %v342
        %v344 = vrot.slane %v341, 1
        %v345 = vrot.slane %v342, 1
        %346 = xla_tuple %v344, %v345
        %vm347 = vcmp.gt.s32.totalorder %v344, %v341
        %vm348 = vcmp.eq.s32.totalorder %v344, %v341
        %vm349 = vcmp.lt.s32.totalorder %v345, %v342
        %vm350 = vmand %vm348, %vm349
        %vm351 = vmor %vm347, %vm350
        %v352 = vsel %vm351, %v344, %v341
        %v353 = vsel %vm351, %v345, %v342
        %354 = xla_tuple %v352, %v353
        %v355 = vrot.slane %v352, 1
        %v356 = vrot.slane %v353, 1
        %357 = xla_tuple %v355, %v356
        %vm358 = vcmp.gt.s32.totalorder %v355, %v352
        %vm359 = vcmp.eq.s32.totalorder %v355, %v352
        %vm360 = vcmp.lt.s32.totalorder %v356, %v353
        %vm361 = vmand %vm359, %vm360
        %vm362 = vmor %vm358, %vm361
        %v363 = vsel %vm362, %v355, %v352
        %v364 = vsel %vm362, %v356, %v353
        %365 = xla_tuple %v363, %v364
        %v366 = vrot.slane %v363, 1
        %v367 = vrot.slane %v364, 1
        %368 = xla_tuple %v366, %v367
        %vm369 = vcmp.gt.s32.totalorder %v366, %v363
        %vm370 = vcmp.eq.s32.totalorder %v366, %v363
        %vm371 = vcmp.lt.s32.totalorder %v367, %v364
        %vm372 = vmand %vm370, %vm371
        %vm373 = vmor %vm369, %vm372
        %v374 = vsel %vm373, %v366, %v363
        %v375 = vsel %vm373, %v367, %v364
        %376 = xla_tuple %v374, %v375
        %v377 = vrot.slane %v374, 1
        %v378 = vrot.slane %v375, 1
        %379 = xla_tuple %v377, %v378
        %vm380 = vcmp.gt.s32.totalorder %v377, %v374
        %vm381 = vcmp.eq.s32.totalorder %v377, %v374
        %vm382 = vcmp.lt.s32.totalorder %v378, %v375
        %vm383 = vmand %vm381, %vm382
        %vm384 = vmor %vm380, %vm383
        %v385 = vsel %vm384, %v377, %v374
        %v386 = vsel %vm384, %v378, %v375
        %387 = xla_tuple %v385, %v386
        %v388 = vrot.slane %v385, 1
        %v389 = vrot.slane %v386, 1
        %390 = xla_tuple %v388, %v389
        %vm391 = vcmp.gt.s32.totalorder %v388, %v385
        %vm392 = vcmp.eq.s32.totalorder %v388, %v385
        %vm393 = vcmp.lt.s32.totalorder %v389, %v386
        %vm394 = vmand %vm392, %vm393
        %vm395 = vmor %vm391, %vm394
        %v396 = vsel %vm395, %v388, %v385
        %v397 = vsel %vm395, %v389, %v386
        %398 = xla_tuple %v396, %v397
        %v399 = vrot.slane %v396, 1
        %v400 = vrot.slane %v397, 1
        %401 = xla_tuple %v399, %v400
        %vm402 = vcmp.gt.s32.totalorder %v399, %v396
        %vm403 = vcmp.eq.s32.totalorder %v399, %v396
        %vm404 = vcmp.lt.s32.totalorder %v400, %v397
        %vm405 = vmand %vm403, %vm404
        %vm406 = vmor %vm402, %vm405
        %v407 = vsel %vm406, %v399, %v396
        %v408 = vsel %vm406, %v400, %v397
        %409 = xla_tuple %v407, %v408
        %s410 = scalar_lea.vmem [#allocation13], %s79
        %411 = vst [vmem:[%s410] sm:$0x1] %v407
        %s412 = scalar_lea.vmem [#allocation15], %s79
        %413 = vst [vmem:[%s412] sm:$0x1] %v408
        %414 = xla_tuple %411, %413
        %415 = vxpose.xlu0.b32.start [1/16] %v408, 128
        %416 = vxpose.xlu0.b32.cont [2/16] 0.0, 128
        %417 = vxpose.xlu0.b32.cont [3/16] 0.0, 128
        %418 = vxpose.xlu0.b32.cont [4/16] 0.0, 128
        %419 = vxpose.xlu0.b32.cont [5/16] 0.0, 128
        %420 = vxpose.xlu0.b32.cont [6/16] 0.0, 128
        %421 = vxpose.xlu0.b32.cont [7/16] 0.0, 128
        %422 = vxpose.xlu0.b32.cont [8/16] 0.0, 128
        %423 = vxpose.xlu0.b32.cont [9/16] 0.0, 128
        %424 = vxpose.xlu0.b32.cont [10/16] 0.0, 128
        %425 = vxpose.xlu0.b32.cont [11/16] 0.0, 128
        %426 = vxpose.xlu0.b32.cont [12/16] 0.0, 128
        %427 = vxpose.xlu0.b32.cont [13/16] 0.0, 128
        %428 = vxpose.xlu0.b32.cont [14/16] 0.0, 128
        %429 = vxpose.xlu0.b32.cont [15/16] 0.0, 128
        %430 = vxpose.xlu0.b32.end [16/16] 0.0, 128
        %v431 = vpop.trf.xlu0
        %v432 = vpop.trf.xlu0
        %v433 = vpop.trf.xlu0
        %v434 = vpop.trf.xlu0
        %v435 = vpop.trf.xlu0
        %v436 = vpop.trf.xlu0
        %v437 = vpop.trf.xlu0
        %v438 = vpop.trf.xlu0
        %v439 = vpop.trf.xlu0
        %v440 = vpop.trf.xlu0
        %v441 = vpop.trf.xlu0
        %v442 = vpop.trf.xlu0
        %v443 = vpop.trf.xlu0
        %v444 = vpop.trf.xlu0
        %v445 = vpop.trf.xlu0
        %v446 = vpop.trf.xlu0
        %s447 = vtos %v431
        %s448 = sshrl.u32 %s447, 9
        %p449 = scmp.lt.s32.totalorder %s447, 0
        %s450 = ssub.s32 0, %s447
        %s451 = scalar_select %p449, %s450, %s447
        %s452 = sand.u32 %s451, 511
        %s453 = ssub.s32 0, %s452
        %s454 = scalar_select %p449, %s453, %s452
        %s455 = sshrl.u32 %s454, 7
        %s456 = smul.u32 %s455, 256
        %s457 = sand.u32 %s454, 127
        %s458 = sadd.s32 %s456, %s457
        %v459 = vlaneseq
        %v460 = vstv %s458
        %vm462 = vcmp.eq.s32.totalorder %v459, %v460
        %s463 = smul.addr %s448, 8
        %s464 = scalar_lea.vmem [#allocation16], %s463
        %465 = vst.msk [vmem:[%s464] sm:$0xff] %vm462, 2147483648
        %s466 = smul.addr %s448, 8
        %s467 = scalar_lea.vmem [#allocation17], %s466
        %468 = vst.msk [vmem:[%s467] sm:$0xff] %vm462, 2147483647
        %469 = xla_tuple %465, %468
        %v470 = vrot.slane %v431, 1
        %s471 = vtos %v470
        %s472 = sshrl.u32 %s471, 9
        %p473 = scmp.lt.s32.totalorder %s471, 0
        %s474 = ssub.s32 0, %s471
        %s475 = scalar_select %p473, %s474, %s471
        %s476 = sand.u32 %s475, 511
        %s477 = ssub.s32 0, %s476
        %s478 = scalar_select %p473, %s477, %s476
        %s479 = sshrl.u32 %s478, 7
        %s480 = smul.u32 %s479, 256
        %s481 = sand.u32 %s478, 127
        %s482 = sadd.s32 %s480, %s481
        %v483 = vlaneseq
        %v484 = vstv %s482
        %v485 = vadd.s32 %v484, 128
        %vm486 = vcmp.eq.s32.totalorder %v483, %v485
        %s487 = smul.addr %s472, 8
        %s488 = scalar_lea.vmem [#allocation16], %s487
        %489 = vst.msk [vmem:[%s488] sm:$0xff] %vm486, 2147483648
        %s490 = smul.addr %s472, 8
        %s491 = scalar_lea.vmem [#allocation17], %s490
        %492 = vst.msk [vmem:[%s491] sm:$0xff] %vm486, 2147483647
        %493 = xla_tuple %489, %492
        %v494 = vrot.slane %v470, 1
      $region34: #{custom-call} parent=2 // loop_footer
        %s83 = sadd.s32 1, %s79
      $region35: #{custom-call} parent=2 // loop_footer_branch
        %78 = sbr.rel target = $region31
      $region36: #{custom-call} parent=2 // loop_exit
        _
      %s495 = scalar_lea.vmem [#allocation13], 7
      %v496 = vld [vmem:[%s495] ss:$-1 sm:$0xff]
      %s497 = scalar_lea.vmem [#allocation13], 7
      %v498 = vld [vmem:[%s497] ss:$-1 sm:$0xff]
      %499 = vst [vmem:[#allocation13] sm:$0xff] %v498
      %500 = vst [vmem:[#allocation13] sm:$0xff] %v496
      %s501 = scalar_lea.vmem [#allocation15], 7
      %v502 = vld [vmem:[%s501] ss:$-1 sm:$0xff]
      %s503 = scalar_lea.vmem [#allocation15], 7
      %v504 = vld [vmem:[%s503] ss:$-1 sm:$0xff]
      %505 = vst [vmem:[#allocation15] sm:$0xff] %v504
      %506 = vst [vmem:[#allocation15] sm:$0xff] %v502
      %507 = xla_tuple %500, %506
      %v508 = vld [vmem:[#allocation12] sm:$0xff]
      %v509 = vld [vmem:[#allocation14] sm:$0xff]
      %510 = xla_tuple %v508, %v509
      %v511 = vld [vmem:[#allocation13] sm:$0xff]
      %v512 = vld [vmem:[#allocation15] sm:$0xff]
      %513 = xla_tuple %v511, %v512
      %vm514 = vcmp.gt.s32.totalorder %v508, %v511
      %vm515 = vcmp.eq.s32.totalorder %v508, %v511
      %vm516 = vcmp.lt.s32.totalorder %v509, %v512
      %vm517 = vmand %vm515, %vm516
      %vm518 = vmor %vm514, %vm517
      %v519 = vsel %vm518, %v508, %v511
      %520 = vst [vmem:[#allocation12] sm:$0xff] %v519
      %v521 = vsel %vm518, %v511, %v508
      %522 = vst [vmem:[#allocation13] sm:$0xff] %v521
      %v523 = vsel %vm518, %v509, %v512
      %524 = vst [vmem:[#allocation14] sm:$0xff] %v523
      %v525 = vsel %vm518, %v512, %v509
      %526 = vst [vmem:[#allocation15] sm:$0xff] %v525
      %527 = xla_tuple %522, %526
      %528 = xla_tuple [#allocation12], [#allocation14]
      %v529 = vld [vmem:[#allocation12] sm:$0xff]
      %v530 = vld [vmem:[#allocation14] sm:$0xff]
      %531 = xla_tuple %v529, %v530
      %v533 = vunpack.c.l.s4 839939668
      %v534 = vunpack.c.0.s8 %v533
      %v535 = vlaneseq
      %v536 = vshrl.u32 %v535, 7
      %v537 = vsub.s32 %v534, %v536
      %v538 = vrot.slane %v529, %v537
      %v540 = vunpack.c.l.s4 839939668
      %v541 = vunpack.c.0.s8 %v540
      %v542 = vlaneseq
      %v543 = vshrl.u32 %v542, 7
      %v544 = vsub.s32 %v541, %v543
      %v545 = vrot.slane %v530, %v544
      %546 = xla_tuple %v538, %v545
      %vm547 = vcmp.gt.s32.totalorder %v529, %v538
      %vm548 = vcmp.eq.s32.totalorder %v529, %v538
      %vm549 = vcmp.lt.s32.totalorder %v530, %v545
      %vm550 = vmand %vm548, %vm549
      %vm551 = vmor %vm547, %vm550
      %v552 = vlaneseq
      %v553 = vshrl.u32 %v552, 7
      %v554 = vand.u32 %v553, 4
      %vm555 = vcmp.ne.s32.totalorder %v554, 0
      %vm556 = vmxor %vm551, %vm555
      %v557 = vsel %vm556, %v529, %v538
      %v558 = vsel %vm556, %v530, %v545
      %559 = xla_tuple %v557, %v558
      %v561 = vunpack.c.l.s4 1417023538
      %v562 = vunpack.c.0.s8 %v561
      %v563 = vlaneseq
      %v564 = vshrl.u32 %v563, 7
      %v565 = vsub.s32 %v562, %v564
      %v566 = vrot.slane %v557, %v565
      %v568 = vunpack.c.l.s4 1417023538
      %v569 = vunpack.c.0.s8 %v568
      %v570 = vlaneseq
      %v571 = vshrl.u32 %v570, 7
      %v572 = vsub.s32 %v569, %v571
      %v573 = vrot.slane %v558, %v572
      %574 = xla_tuple %v566, %v573
      %vm575 = vcmp.gt.s32.totalorder %v557, %v566
      %vm576 = vcmp.eq.s32.totalorder %v557, %v566
      %vm577 = vcmp.lt.s32.totalorder %v558, %v573
      %vm578 = vmand %vm576, %vm577
      %vm579 = vmor %vm575, %vm578
      %v580 = vlaneseq
      %v581 = vshrl.u32 %v580, 7
      %v582 = vand.u32 %v581, 2
      %vm583 = vcmp.ne.s32.totalorder %v582, 0
      %vm584 = vmxor %vm579, %vm583
      %v585 = vsel %vm584, %v557, %v566
      %v586 = vsel %vm584, %v558, %v573
      %587 = xla_tuple %v585, %v586
      %v589 = vunpack.c.l.s4 1732584193
      %v590 = vunpack.c.0.s8 %v589
      %v591 = vlaneseq
      %v592 = vshrl.u32 %v591, 7
      %v593 = vsub.s32 %v590, %v592
      %v594 = vrot.slane %v585, %v593
      %v596 = vunpack.c.l.s4 1732584193
      %v597 = vunpack.c.0.s8 %v596
      %v598 = vlaneseq
      %v599 = vshrl.u32 %v598, 7
      %v600 = vsub.s32 %v597, %v599
      %v601 = vrot.slane %v586, %v600
      %602 = xla_tuple %v594, %v601
      %vm603 = vcmp.gt.s32.totalorder %v585, %v594
      %vm604 = vcmp.eq.s32.totalorder %v585, %v594
      %vm605 = vcmp.lt.s32.totalorder %v586, %v601
      %vm606 = vmand %vm604, %vm605
      %vm607 = vmor %vm603, %vm606
      %v608 = vlaneseq
      %v609 = vshrl.u32 %v608, 7
      %v610 = vand.u32 %v609, 1
      %vm611 = vcmp.ne.s32.totalorder %v610, 0
      %vm612 = vmxor %vm607, %vm611
      %v613 = vsel %vm612, %v585, %v594
      %v614 = vsel %vm612, %v586, %v601
      %615 = xla_tuple %v613, %v614
      %616 = vst [vmem:[#allocation12] sm:$0xff] %v613
      %617 = vst [vmem:[#allocation14] sm:$0xff] %v614
      %618 = xla_tuple %616, %617
      %v619 = vld [vmem:[#allocation12] sm:$0xff]
      %v620 = vld [vmem:[#allocation14] sm:$0xff]
      %621 = xla_tuple %v619, %v620
      %v623 = vunpack.c.l.s4 839939668
      %v624 = vunpack.c.0.s8 %v623
      %v625 = vlaneseq
      %v626 = vshrl.u32 %v625, 7
      %v627 = vsub.s32 %v624, %v626
      %v628 = vrot.slane %v619, %v627
      %v630 = vunpack.c.l.s4 839939668
      %v631 = vunpack.c.0.s8 %v630
      %v632 = vlaneseq
      %v633 = vshrl.u32 %v632, 7
      %v634 = vsub.s32 %v631, %v633
      %v635 = vrot.slane %v620, %v634
      %636 = xla_tuple %v628, %v635
      %vm637 = vcmp.gt.s32.totalorder %v619, %v628
      %vm638 = vcmp.eq.s32.totalorder %v619, %v628
      %vm639 = vcmp.lt.s32.totalorder %v620, %v635
      %vm640 = vmand %vm638, %vm639
      %vm641 = vmor %vm637, %vm640
      %v642 = vlaneseq
      %v643 = vshrl.u32 %v642, 7
      %v644 = vand.u32 %v643, 4
      %vm645 = vcmp.ne.s32.totalorder %v644, 0
      %vm646 = vmxor %vm641, %vm645
      %v647 = vsel %vm646, %v619, %v628
      %v648 = vsel %vm646, %v620, %v635
      %649 = xla_tuple %v647, %v648
      %v651 = vunpack.c.l.s4 1417023538
      %v652 = vunpack.c.0.s8 %v651
      %v653 = vlaneseq
      %v654 = vshrl.u32 %v653, 7
      %v655 = vsub.s32 %v652, %v654
      %v656 = vrot.slane %v647, %v655
      %v658 = vunpack.c.l.s4 1417023538
      %v659 = vunpack.c.0.s8 %v658
      %v660 = vlaneseq
      %v661 = vshrl.u32 %v660, 7
      %v662 = vsub.s32 %v659, %v661
      %v663 = vrot.slane %v648, %v662
      %664 = xla_tuple %v656, %v663
      %vm665 = vcmp.gt.s32.totalorder %v647, %v656
      %vm666 = vcmp.eq.s32.totalorder %v647, %v656
      %vm667 = vcmp.lt.s32.totalorder %v648, %v663
      %vm668 = vmand %vm666, %vm667
      %vm669 = vmor %vm665, %vm668
      %v670 = vlaneseq
      %v671 = vshrl.u32 %v670, 7
      %v672 = vand.u32 %v671, 2
      %vm673 = vcmp.ne.s32.totalorder %v672, 0
      %vm674 = vmxor %vm669, %vm673
      %v675 = vsel %vm674, %v647, %v656
      %v676 = vsel %vm674, %v648, %v663
      %677 = xla_tuple %v675, %v676
      %v679 = vunpack.c.l.s4 1732584193
      %v680 = vunpack.c.0.s8 %v679
      %v681 = vlaneseq
      %v682 = vshrl.u32 %v681, 7
      %v683 = vsub.s32 %v680, %v682
      %v684 = vrot.slane %v675, %v683
      %v686 = vunpack.c.l.s4 1732584193
      %v687 = vunpack.c.0.s8 %v686
      %v688 = vlaneseq
      %v689 = vshrl.u32 %v688, 7
      %v690 = vsub.s32 %v687, %v689
      %v691 = vrot.slane %v676, %v690
      %692 = xla_tuple %v684, %v691
      %vm693 = vcmp.gt.s32.totalorder %v675, %v684
      %vm694 = vcmp.eq.s32.totalorder %v675, %v684
      %vm695 = vcmp.lt.s32.totalorder %v676, %v691
      %vm696 = vmand %vm694, %vm695
      %vm697 = vmor %vm693, %vm696
      %v698 = vlaneseq
      %v699 = vshrl.u32 %v698, 7
      %v700 = vand.u32 %v699, 1
      %vm701 = vcmp.ne.s32.totalorder %v700, 0
      %vm702 = vmxor %vm697, %vm701
      %v703 = vsel %vm702, %v675, %v684
      %v704 = vsel %vm702, %v676, %v691
      %705 = xla_tuple %v703, %v704
      %706 = vst [vmem:[#allocation12] sm:$0xff] %v703
      %707 = vst [vmem:[#allocation14] sm:$0xff] %v704
      %708 = xla_tuple %706, %707
      %709 = xla_tuple [#allocation13], [#allocation15]
      %v710 = vld [vmem:[#allocation13] sm:$0xff]
      %v711 = vld [vmem:[#allocation15] sm:$0xff]
      %712 = xla_tuple %v710, %v711
      %v714 = vunpack.c.l.s4 839939668
      %v715 = vunpack.c.0.s8 %v714
      %v716 = vlaneseq
      %v717 = vshrl.u32 %v716, 7
      %v718 = vsub.s32 %v715, %v717
      %v719 = vrot.slane %v710, %v718
      %v721 = vunpack.c.l.s4 839939668
      %v722 = vunpack.c.0.s8 %v721
      %v723 = vlaneseq
      %v724 = vshrl.u32 %v723, 7
      %v725 = vsub.s32 %v722, %v724
      %v726 = vrot.slane %v711, %v725
      %727 = xla_tuple %v719, %v726
      %vm728 = vcmp.gt.s32.totalorder %v710, %v719
      %vm729 = vcmp.eq.s32.totalorder %v710, %v719
      %vm730 = vcmp.lt.s32.totalorder %v711, %v726
      %vm731 = vmand %vm729, %vm730
      %vm732 = vmor %vm728, %vm731
      %v733 = vlaneseq
      %v734 = vshrl.u32 %v733, 7
      %v735 = vand.u32 %v734, 4
      %vm736 = vcmp.ne.s32.totalorder %v735, 0
      %vm737 = vmxor %vm732, %vm736
      %v738 = vsel %vm737, %v710, %v719
      %v739 = vsel %vm737, %v711, %v726
      %740 = xla_tuple %v738, %v739
      %v742 = vunpack.c.l.s4 1417023538
      %v743 = vunpack.c.0.s8 %v742
      %v744 = vlaneseq
      %v745 = vshrl.u32 %v744, 7
      %v746 = vsub.s32 %v743, %v745
      %v747 = vrot.slane %v738, %v746
      %v749 = vunpack.c.l.s4 1417023538
      %v750 = vunpack.c.0.s8 %v749
      %v751 = vlaneseq
      %v752 = vshrl.u32 %v751, 7
      %v753 = vsub.s32 %v750, %v752
      %v754 = vrot.slane %v739, %v753
      %755 = xla_tuple %v747, %v754
      %vm756 = vcmp.gt.s32.totalorder %v738, %v747
      %vm757 = vcmp.eq.s32.totalorder %v738, %v747
      %vm758 = vcmp.lt.s32.totalorder %v739, %v754
      %vm759 = vmand %vm757, %vm758
      %vm760 = vmor %vm756, %vm759
      %v761 = vlaneseq
      %v762 = vshrl.u32 %v761, 7
      %v763 = vand.u32 %v762, 2
      %vm764 = vcmp.ne.s32.totalorder %v763, 0
      %vm765 = vmxor %vm760, %vm764
      %v766 = vsel %vm765, %v738, %v747
      %v767 = vsel %vm765, %v739, %v754
      %768 = xla_tuple %v766, %v767
      %v770 = vunpack.c.l.s4 1732584193
      %v771 = vunpack.c.0.s8 %v770
      %v772 = vlaneseq
      %v773 = vshrl.u32 %v772, 7
      %v774 = vsub.s32 %v771, %v773
      %v775 = vrot.slane %v766, %v774
      %v777 = vunpack.c.l.s4 1732584193
      %v778 = vunpack.c.0.s8 %v777
      %v779 = vlaneseq
      %v780 = vshrl.u32 %v779, 7
      %v781 = vsub.s32 %v778, %v780
      %v782 = vrot.slane %v767, %v781
      %783 = xla_tuple %v775, %v782
      %vm784 = vcmp.gt.s32.totalorder %v766, %v775
      %vm785 = vcmp.eq.s32.totalorder %v766, %v775
      %vm786 = vcmp.lt.s32.totalorder %v767, %v782
      %vm787 = vmand %vm785, %vm786
      %vm788 = vmor %vm784, %vm787
      %v789 = vlaneseq
      %v790 = vshrl.u32 %v789, 7
      %v791 = vand.u32 %v790, 1
      %vm792 = vcmp.ne.s32.totalorder %v791, 0
      %vm793 = vmxor %vm788, %vm792
      %v794 = vsel %vm793, %v766, %v775
      %v795 = vsel %vm793, %v767, %v782
      %796 = xla_tuple %v794, %v795
      %797 = vst [vmem:[#allocation13] sm:$0xff] %v794
      %798 = vst [vmem:[#allocation15] sm:$0xff] %v795
      %799 = xla_tuple %797, %798
      %v800 = vld [vmem:[#allocation13] sm:$0xff]
      %v801 = vld [vmem:[#allocation15] sm:$0xff]
      %802 = xla_tuple %v800, %v801
      %v804 = vunpack.c.l.s4 839939668
      %v805 = vunpack.c.0.s8 %v804
      %v806 = vlaneseq
      %v807 = vshrl.u32 %v806, 7
      %v808 = vsub.s32 %v805, %v807
      %v809 = vrot.slane %v800, %v808
      %v811 = vunpack.c.l.s4 839939668
      %v812 = vunpack.c.0.s8 %v811
      %v813 = vlaneseq
      %v814 = vshrl.u32 %v813, 7
      %v815 = vsub.s32 %v812, %v814
      %v816 = vrot.slane %v801, %v815
      %817 = xla_tuple %v809, %v816
      %vm818 = vcmp.gt.s32.totalorder %v800, %v809
      %vm819 = vcmp.eq.s32.totalorder %v800, %v809
      %vm820 = vcmp.lt.s32.totalorder %v801, %v816
      %vm821 = vmand %vm819, %vm820
      %vm822 = vmor %vm818, %vm821
      %v823 = vlaneseq
      %v824 = vshrl.u32 %v823, 7
      %v825 = vand.u32 %v824, 4
      %vm826 = vcmp.ne.s32.totalorder %v825, 0
      %vm827 = vmxor %vm822, %vm826
      %v828 = vsel %vm827, %v800, %v809
      %v829 = vsel %vm827, %v801, %v816
      %830 = xla_tuple %v828, %v829
      %v832 = vunpack.c.l.s4 1417023538
      %v833 = vunpack.c.0.s8 %v832
      %v834 = vlaneseq
      %v835 = vshrl.u32 %v834, 7
      %v836 = vsub.s32 %v833, %v835
      %v837 = vrot.slane %v828, %v836
      %v839 = vunpack.c.l.s4 1417023538
      %v840 = vunpack.c.0.s8 %v839
      %v841 = vlaneseq
      %v842 = vshrl.u32 %v841, 7
      %v843 = vsub.s32 %v840, %v842
      %v844 = vrot.slane %v829, %v843
      %845 = xla_tuple %v837, %v844
      %vm846 = vcmp.gt.s32.totalorder %v828, %v837
      %vm847 = vcmp.eq.s32.totalorder %v828, %v837
      %vm848 = vcmp.lt.s32.totalorder %v829, %v844
      %vm849 = vmand %vm847, %vm848
      %vm850 = vmor %vm846, %vm849
      %v851 = vlaneseq
      %v852 = vshrl.u32 %v851, 7
      %v853 = vand.u32 %v852, 2
      %vm854 = vcmp.ne.s32.totalorder %v853, 0
      %vm855 = vmxor %vm850, %vm854
      %v856 = vsel %vm855, %v828, %v837
      %v857 = vsel %vm855, %v829, %v844
      %858 = xla_tuple %v856, %v857
      %v860 = vunpack.c.l.s4 1732584193
      %v861 = vunpack.c.0.s8 %v860
      %v862 = vlaneseq
      %v863 = vshrl.u32 %v862, 7
      %v864 = vsub.s32 %v861, %v863
      %v865 = vrot.slane %v856, %v864
      %v867 = vunpack.c.l.s4 1732584193
      %v868 = vunpack.c.0.s8 %v867
      %v869 = vlaneseq
      %v870 = vshrl.u32 %v869, 7
      %v871 = vsub.s32 %v868, %v870
      %v872 = vrot.slane %v857, %v871
      %873 = xla_tuple %v865, %v872
      %vm874 = vcmp.gt.s32.totalorder %v856, %v865
      %vm875 = vcmp.eq.s32.totalorder %v856, %v865
      %vm876 = vcmp.lt.s32.totalorder %v857, %v872
      %vm877 = vmand %vm875, %vm876
      %vm878 = vmor %vm874, %vm877
      %v879 = vlaneseq
      %v880 = vshrl.u32 %v879, 7
      %v881 = vand.u32 %v880, 1
      %vm882 = vcmp.ne.s32.totalorder %v881, 0
      %vm883 = vmxor %vm878, %vm882
      %v884 = vsel %vm883, %v856, %v865
      %v885 = vsel %vm883, %v857, %v872
      %886 = xla_tuple %v884, %v885
      %887 = vst [vmem:[#allocation13] sm:$0xff] %v884
      %888 = vst [vmem:[#allocation15] sm:$0xff] %v885
      %889 = xla_tuple %887, %888
    %v890 = vld [vmem:[#allocation12] sm:$0xff]
    %vm891 = vcmp.lt.s32.totalorder %v890, 0
    %v892 = vsub.s32 2147483647, %v890
    %v893 = vsel %vm891, %v892, %v890
    %894 = vst [vmem:[#allocation12] sm:$0xff] %v893
    %v895 = vld [vmem:[#allocation12] sm:$0xff]
    %896 = vxpose.xlu0.b32.start.end [1/1] (short) %v895, 128
    %v897 = vpop.trf.xlu0
    %v898 = vpop.trf.xlu0
    %v899 = vpop.trf.xlu0
    %v900 = vpop.trf.xlu0
    %v901 = vpop.trf.xlu0
    %v902 = vpop.trf.xlu0
    %v903 = vpop.trf.xlu0
    %v904 = vpop.trf.xlu0
    %v905 = vpop.trf.xlu0
    %v906 = vpop.trf.xlu0
    %v907 = vpop.trf.xlu0
    %v908 = vpop.trf.xlu0
    %v909 = vpop.trf.xlu0
    %v910 = vpop.trf.xlu0
    %v911 = vpop.trf.xlu0
    %v912 = vpop.trf.xlu0
    %913 = vst [vmem:[#allocation7] sm:$0xff] %v897
    %v914 = vld [vmem:[#allocation14] sm:$0xff]
    %915 = vxpose.xlu0.b32.start.end [1/1] (short) %v914, 128
    %v916 = vpop.trf.xlu0
    %v917 = vpop.trf.xlu0
    %v918 = vpop.trf.xlu0
    %v919 = vpop.trf.xlu0
    %v920 = vpop.trf.xlu0
    %v921 = vpop.trf.xlu0
    %v922 = vpop.trf.xlu0
    %v923 = vpop.trf.xlu0
    %v924 = vpop.trf.xlu0
    %v925 = vpop.trf.xlu0
    %v926 = vpop.trf.xlu0
    %v927 = vpop.trf.xlu0
    %v928 = vpop.trf.xlu0
    %v929 = vpop.trf.xlu0
    %v930 = vpop.trf.xlu0
    %v931 = vpop.trf.xlu0
    %932 = vst [vmem:[#allocation10] sm:$0xff] %v916
    %s934 = sshll.u32 1, 2
    %s935 = ssub.s32 %s934, 1
    %v937 = vld [vmem:[#allocation7] sm:%s935]
    %s938 = sshll.u32 1, 2
    %s939 = ssub.s32 %s938, 1
    %940 = vst [vmem:[#allocation8] sm:%s939] %v937
    %s942 = sshll.u32 1, 2
    %s943 = ssub.s32 %s942, 1
    %v945 = vld [vmem:[#allocation10] sm:%s943]
    %s946 = sshll.u32 1, 2
    %s947 = ssub.s32 %s946, 1
    %948 = vst [vmem:[#allocation11] sm:%s947] %v945
    %s950 = ssub.s32 32, 32
    %951 = vsyncadd [#allocation9], %s950
    %s953 = sshll.u32 [#allocation8], 4
    %s954 = int_to_ptr.vmem [resolvable:$true] %s953
    %956 = dma.vmem_to_hbm [thread:$0]  %s954, 32, %s1, [#allocation9]
    // Predicated region
    $region37: #{custom-call} parent=1 // pred_check
      _
    $region38: #{custom-call} parent=1 // pred_check_branch
      %958 = sbr.rel (0) target = $region40
    $region39: #{custom-call} parent=1 // pred_region
      // Predicated region
      $region41: #{custom-call} parent=39 // pred_check
        _
      $region42: #{custom-call} parent=39 // pred_check_branch
        %960 = sbr.rel target = $region44
      $region43: #{custom-call} parent=39 // pred_region
        // Predicated region
        $region56: #{custom-call} parent=43 // pred_check
          _
        $region57: #{custom-call} parent=43 // pred_check_branch
          %976 = sbr.rel (0) target = $region59
        $region58: #{custom-call} parent=43 // pred_region
          %s978 = ssub.s32 4, 1
          loop: start=0, step=1, limit=1
          $region60: #{custom-call} parent=58 // loop_pre_header
            _
          $region61: #{custom-call} parent=58 // loop_header
            %s980 = sphi 0, %s984
            %p981 = scmp.ge.s32.totalorder %s980, 1
            %s985 = sphi [#allocation11], [#allocation11]
            %s986 = sphi %s2, %s2
          $region62: #{custom-call} parent=58 // loop_header_branch
            %983 = sbr.rel (%p981) target = $region66
          $region63: #{custom-call} parent=58 // loop_body
            %v987 = vld [vmem:[%s985] sm:%s978]
            %988 = vst [vmem:[%s986] sm:%s978] %v987
          $region64: #{custom-call} parent=58 // loop_footer
            %s984 = sadd.s32 1, %s980
          $region65: #{custom-call} parent=58 // loop_footer_branch
            %979 = sbr.rel target = $region61
          $region66: #{custom-call} parent=58 // loop_exit
            _
        $region59: #{custom-call} parent=43 // pred_fallthru
          _
      $region44: #{custom-call} parent=39 // pred_fallthru
        _
      // Predicated region
      $region45: #{custom-call} parent=39 // pred_check
        _
      $region46: #{custom-call} parent=39 // pred_check_branch
        %962 = sbr.rel (0) target = $region48
      $region47: #{custom-call} parent=39 // pred_region
        %s964 = ssub.s32 4, 1
        loop: start=0, step=1, limit=1
        $region49: #{custom-call} parent=47 // loop_pre_header
          _
        $region50: #{custom-call} parent=47 // loop_header
          %s966 = sphi 0, %s970
          %p967 = scmp.ge.s32.totalorder %s966, 1
          %s971 = sphi [#allocation11], [#allocation11]
          %s972 = sphi %s2, %s2
        $region51: #{custom-call} parent=47 // loop_header_branch
          %969 = sbr.rel (%p967) target = $region55
        $region52: #{custom-call} parent=47 // loop_body
          %v973 = vld [vmem:[%s971] sm:%s964]
          %974 = vst [vmem:[%s972] sm:%s964] %v973
        $region53: #{custom-call} parent=47 // loop_footer
          %s970 = sadd.s32 1, %s966
        $region54: #{custom-call} parent=47 // loop_footer_branch
          %965 = sbr.rel target = $region50
        $region55: #{custom-call} parent=47 // loop_exit
          _
      $region48: #{custom-call} parent=39 // pred_fallthru
        _
    $region40: #{custom-call} parent=1 // pred_fallthru
      _
    %989 = vnop
    %990 = dma.done [#allocation9], 32
    %991 = vsyncpa [#allocation9], 1

// kernel: faster_rcnn_forward.2
$region0: #{faster_rcnn_forward.2}
  #allocation0 [shape = 'u32[]', space=smem, size = 0x4, offset = 0x4, fixed_abs, tag = 'smem constant byte address 0x4 - core index']
  #allocation1 [shape = 'u32[144,128]{1,0:T(1,128)}', space=vmem, size = 0x12000, scoped, tag = 'internal scratch']
  %s0 = inlined_call_operand.vmem [shape: bf16[2048,32], index: 0, kind: input, shape index: {}]
  %s1 = inlined_call_operand.vmem [shape: bf16[32,16], index: 1, kind: input, shape index: {}]
  %s2 = inlined_call_operand.vmem [shape: f32[1,16], index: 2, kind: input, shape index: {}]
  %s3 = inlined_call_operand.vmem [shape: bf16[16,16], index: 3, kind: input, shape index: {}]
  %s4 = inlined_call_operand.vmem [shape: f32[1,16], index: 4, kind: input, shape index: {}]
  %s5 = inlined_call_operand.vmem [shape: bf16[16,128], index: 5, kind: input, shape index: {}]
  %s6 = inlined_call_operand.vmem [shape: f32[1,128], index: 6, kind: input, shape index: {}]
  %s7 = inlined_call_operand.vmem [shape: f32[2048,16], index: 7, kind: output, shape index: {0}]
  %s8 = inlined_call_operand.vmem [shape: f32[2048,128], index: 8, kind: output, shape index: {1}]
  %9 = xla_tuple %s7, %s8
  %s10 = sld [smem:[#allocation0]]
  $region69: #{faster_rcnn_forward.2} parent=0
    _
  %s12 = ssub.s32 1, %s10
  %s13 = scalar_select 0, %s12, %s10
  loop: start=0, step=1, limit=4
  $region2: #{faster_rcnn_forward.2} parent=0 // loop_pre_header
    _
  $region3: #{faster_rcnn_forward.2} parent=0 // loop_header
    %s15 = sphi 0, %s19
    %p16 = scmp.ge.s32.totalorder %s15, 4
    %s25 = sphi 0, %s27
    %s28 = sphi 0, %s25
    %s29 = sphi 0, %s28
    %s45 = sphi 0, %s29
    %s49 = sphi 0, %s49
    %s51 = sphi 0, %s49
    %s52 = sphi 0, %s51
    %s66 = sphi 0, %s52
    %s70 = sphi 0, %s70
    %s72 = sphi 0, %s70
    %s73 = sphi 0, %s72
    %s87 = sphi 0, %s73
    %s91 = sphi 0, %s91
    %s93 = sphi 0, %s91
    %s94 = sphi 0, %s93
    %s108 = sphi 0, %s94
    %s112 = sphi 0, %s112
    %s114 = sphi 0, %s112
    %s115 = sphi 0, %s114
    %s129 = sphi 0, %s115
    %s133 = sphi 0, %s133
    %s135 = sphi 0, %s133
    %s136 = sphi 0, %s135
    %s150 = sphi 0, %s136
    %s154 = sphi 0, %s154
    %s156 = sphi 0, %s154
    %s157 = sphi 0, %s156
    %s171 = sphi 0, %s157
    %s177 = sphi 0, %s179
    %s180 = sphi 0, %s177
    %s181 = sphi 0, %s180
    %s197 = sphi 0, %s181
    %s203 = sphi 0, %s205
    %s206 = sphi 0, %s203
    %s207 = sphi 0, %s206
    %s223 = sphi 0, %s207
  $region4: #{faster_rcnn_forward.2} parent=0 // loop_header_branch
    %18 = sbr.rel (%p16) target = $region8
  $region5: #{faster_rcnn_forward.2} parent=0 // loop_body
    %s20 = ssub.s32 %s15, 1
    %s21 = ssub.s32 %s15, 2
    %s22 = sadd.s32 %s15, 1
    %s23 = ssub.s32 %s15, %s22
    %p24 = scmp.eq.s32.totalorder %s23, 0
    %s26 = sadd.s32 %s25, 1
    %s27 = scalar_select %p24, %s25, %s26
    %p30 = pneg %p24
    %p31 = scmp.eq.s32.totalorder %s15, 1
    %p32 = por %p30, %p31
    %p33 = scmp.ne.s32.totalorder %s25, %s28
    %p34 = scmp.eq.s32.totalorder %s15, 0
    %p35 = por %p33, %p34
    %p36 = scmp.ne.s32.totalorder %s25, %s28
    %p37 = scmp.eq.s32.totalorder %s20, 1
    %p38 = por %p36, %p37
    %p39 = scmp.ne.s32.totalorder %s28, %s29
    %p40 = scmp.eq.s32.totalorder %s20, 0
    %p41 = por %p39, %p40
    %p42 = scmp.ne.s32.totalorder %s28, %s29
    %p43 = scmp.eq.s32.totalorder %s21, 1
    %p44 = por %p42, %p43
    %p46 = scmp.ne.s32.totalorder %s29, %s45
    %p47 = scmp.eq.s32.totalorder %s21, 0
    %p48 = por %p46, %p47
    %s50 = sadd.s32 %s49, 1
    %p53 = scmp.eq.s32.totalorder %s15, 1
    %p54 = scmp.ne.s32.totalorder %s49, %s51
    %p55 = scmp.eq.s32.totalorder %s15, 0
    %p56 = por %p54, %p55
    %p57 = scmp.ne.s32.totalorder %s49, %s51
    %p58 = scmp.eq.s32.totalorder %s20, 1
    %p59 = por %p57, %p58
    %p60 = scmp.ne.s32.totalorder %s51, %s52
    %p61 = scmp.eq.s32.totalorder %s20, 0
    %p62 = por %p60, %p61
    %p63 = scmp.ne.s32.totalorder %s51, %s52
    %p64 = scmp.eq.s32.totalorder %s21, 1
    %p65 = por %p63, %p64
    %p67 = scmp.ne.s32.totalorder %s52, %s66
    %p68 = scmp.eq.s32.totalorder %s21, 0
    %p69 = por %p67, %p68
    %s71 = sadd.s32 %s70, 1
    %p74 = scmp.eq.s32.totalorder %s15, 1
    %p75 = scmp.ne.s32.totalorder %s70, %s72
    %p76 = scmp.eq.s32.totalorder %s15, 0
    %p77 = por %p75, %p76
    %p78 = scmp.ne.s32.totalorder %s70, %s72
    %p79 = scmp.eq.s32.totalorder %s20, 1
    %p80 = por %p78, %p79
    %p81 = scmp.ne.s32.totalorder %s72, %s73
    %p82 = scmp.eq.s32.totalorder %s20, 0
    %p83 = por %p81, %p82
    %p84 = scmp.ne.s32.totalorder %s72, %s73
    %p85 = scmp.eq.s32.totalorder %s21, 1
    %p86 = por %p84, %p85
    %p88 = scmp.ne.s32.totalorder %s73, %s87
    %p89 = scmp.eq.s32.totalorder %s21, 0
    %p90 = por %p88, %p89
    %s92 = sadd.s32 %s91, 1
    %p95 = scmp.eq.s32.totalorder %s15, 1
    %p96 = scmp.ne.s32.totalorder %s91, %s93
    %p97 = scmp.eq.s32.totalorder %s15, 0
    %p98 = por %p96, %p97
    %p99 = scmp.ne.s32.totalorder %s91, %s93
    %p100 = scmp.eq.s32.totalorder %s20, 1
    %p101 = por %p99, %p100
    %p102 = scmp.ne.s32.totalorder %s93, %s94
    %p103 = scmp.eq.s32.totalorder %s20, 0
    %p104 = por %p102, %p103
    %p105 = scmp.ne.s32.totalorder %s93, %s94
    %p106 = scmp.eq.s32.totalorder %s21, 1
    %p107 = por %p105, %p106
    %p109 = scmp.ne.s32.totalorder %s94, %s108
    %p110 = scmp.eq.s32.totalorder %s21, 0
    %p111 = por %p109, %p110
    %s113 = sadd.s32 %s112, 1
    %p116 = scmp.eq.s32.totalorder %s15, 1
    %p117 = scmp.ne.s32.totalorder %s112, %s114
    %p118 = scmp.eq.s32.totalorder %s15, 0
    %p119 = por %p117, %p118
    %p120 = scmp.ne.s32.totalorder %s112, %s114
    %p121 = scmp.eq.s32.totalorder %s20, 1
    %p122 = por %p120, %p121
    %p123 = scmp.ne.s32.totalorder %s114, %s115
    %p124 = scmp.eq.s32.totalorder %s20, 0
    %p125 = por %p123, %p124
    %p126 = scmp.ne.s32.totalorder %s114, %s115
    %p127 = scmp.eq.s32.totalorder %s21, 1
    %p128 = por %p126, %p127
    %p130 = scmp.ne.s32.totalorder %s115, %s129
    %p131 = scmp.eq.s32.totalorder %s21, 0
    %p132 = por %p130, %p131
    %s134 = sadd.s32 %s133, 1
    %p137 = scmp.eq.s32.totalorder %s15, 1
    %p138 = scmp.ne.s32.totalorder %s133, %s135
    %p139 = scmp.eq.s32.totalorder %s15, 0
    %p140 = por %p138, %p139
    %p141 = scmp.ne.s32.totalorder %s133, %s135
    %p142 = scmp.eq.s32.totalorder %s20, 1
    %p143 = por %p141, %p142
    %p144 = scmp.ne.s32.totalorder %s135, %s136
    %p145 = scmp.eq.s32.totalorder %s20, 0
    %p146 = por %p144, %p145
    %p147 = scmp.ne.s32.totalorder %s135, %s136
    %p148 = scmp.eq.s32.totalorder %s21, 1
    %p149 = por %p147, %p148
    %p151 = scmp.ne.s32.totalorder %s136, %s150
    %p152 = scmp.eq.s32.totalorder %s21, 0
    %p153 = por %p151, %p152
    %s155 = sadd.s32 %s154, 1
    %p158 = scmp.eq.s32.totalorder %s15, 1
    %p159 = scmp.ne.s32.totalorder %s154, %s156
    %p160 = scmp.eq.s32.totalorder %s15, 0
    %p161 = por %p159, %p160
    %p162 = scmp.ne.s32.totalorder %s154, %s156
    %p163 = scmp.eq.s32.totalorder %s20, 1
    %p164 = por %p162, %p163
    %p165 = scmp.ne.s32.totalorder %s156, %s157
    %p166 = scmp.eq.s32.totalorder %s20, 0
    %p167 = por %p165, %p166
    %p168 = scmp.ne.s32.totalorder %s156, %s157
    %p169 = scmp.eq.s32.totalorder %s21, 1
    %p170 = por %p168, %p169
    %p172 = scmp.ne.s32.totalorder %s157, %s171
    %p173 = scmp.eq.s32.totalorder %s21, 0
    %p174 = por %p172, %p173
    %s175 = ssub.s32 %s15, %s22
    %p176 = scmp.eq.s32.totalorder %s175, 0
    %s178 = sadd.s32 %s177, 1
    %s179 = scalar_select %p176, %s177, %s178
    %p182 = pneg %p176
    %p183 = scmp.eq.s32.totalorder %s15, 1
    %p184 = por %p182, %p183
    %p185 = scmp.ne.s32.totalorder %s177, %s180
    %p186 = scmp.eq.s32.totalorder %s15, 0
    %p187 = por %p185, %p186
    %p188 = scmp.ne.s32.totalorder %s177, %s180
    %p189 = scmp.eq.s32.totalorder %s20, 1
    %p190 = por %p188, %p189
    %p191 = scmp.ne.s32.totalorder %s180, %s181
    %p192 = scmp.eq.s32.totalorder %s20, 0
    %p193 = por %p191, %p192
    %p194 = scmp.ne.s32.totalorder %s180, %s181
    %p195 = scmp.eq.s32.totalorder %s21, 1
    %p196 = por %p194, %p195
    %p198 = scmp.ne.s32.totalorder %s181, %s197
    %p199 = scmp.eq.s32.totalorder %s21, 0
    %p200 = por %p198, %p199
    %s201 = ssub.s32 %s15, %s22
    %p202 = scmp.eq.s32.totalorder %s201, 0
    %s204 = sadd.s32 %s203, 1
    %s205 = scalar_select %p202, %s203, %s204
    %p208 = pneg %p202
    %p209 = scmp.eq.s32.totalorder %s15, 1
    %p210 = por %p208, %p209
    %p211 = scmp.ne.s32.totalorder %s203, %s206
    %p212 = scmp.eq.s32.totalorder %s15, 0
    %p213 = por %p211, %p212
    %p214 = scmp.ne.s32.totalorder %s203, %s206
    %p215 = scmp.eq.s32.totalorder %s20, 1
    %p216 = por %p214, %p215
    %p217 = scmp.ne.s32.totalorder %s206, %s207
    %p218 = scmp.eq.s32.totalorder %s20, 0
    %p219 = por %p217, %p218
    %p220 = scmp.ne.s32.totalorder %s206, %s207
    %p221 = scmp.eq.s32.totalorder %s21, 1
    %p222 = por %p220, %p221
    %p224 = scmp.ne.s32.totalorder %s207, %s223
    %p225 = scmp.eq.s32.totalorder %s21, 0
    %p226 = por %p224, %p225
    %p227 = scmp.le.s32.totalorder 1, %s15
    %p228 = scmp.lt.s32.totalorder %s15, 3
    %p229 = pnand %p227, %p228
    %p230 = pneg %p229
    // Predicated region
    $region9: #{faster_rcnn_forward.2} parent=5 // pred_check
      _
    $region10: #{faster_rcnn_forward.2} parent=5 // pred_check_branch
      %232 = sbr.rel (%p229) target = $region12
    $region11: #{faster_rcnn_forward.2} parent=5 // pred_region
      %s233 = ssub.s32 %s15, 1
      // Predicated region
      $region13: #{faster_rcnn_forward.2} parent=11 // pred_check
        %p234 = pneg %p62
      $region14: #{faster_rcnn_forward.2} parent=11 // pred_check_branch
        %236 = sbr.rel (%p234) target = $region16
      $region15: #{faster_rcnn_forward.2} parent=11 // pred_region
        _
      $region16: #{faster_rcnn_forward.2} parent=11 // pred_fallthru
        _
      // Predicated region
      $region17: #{faster_rcnn_forward.2} parent=11 // pred_check
        %p237 = pneg %p83
      $region18: #{faster_rcnn_forward.2} parent=11 // pred_check_branch
        %239 = sbr.rel (%p237) target = $region20
      $region19: #{faster_rcnn_forward.2} parent=11 // pred_region
        _
      $region20: #{faster_rcnn_forward.2} parent=11 // pred_fallthru
        _
      // Predicated region
      $region21: #{faster_rcnn_forward.2} parent=11 // pred_check
        %p240 = pneg %p104
      $region22: #{faster_rcnn_forward.2} parent=11 // pred_check_branch
        %242 = sbr.rel (%p240) target = $region24
      $region23: #{faster_rcnn_forward.2} parent=11 // pred_region
        _
      $region24: #{faster_rcnn_forward.2} parent=11 // pred_fallthru
        _
      // Predicated region
      $region25: #{faster_rcnn_forward.2} parent=11 // pred_check
        %p243 = pneg %p125
      $region26: #{faster_rcnn_forward.2} parent=11 // pred_check_branch
        %245 = sbr.rel (%p243) target = $region28
      $region27: #{faster_rcnn_forward.2} parent=11 // pred_region
        _
      $region28: #{faster_rcnn_forward.2} parent=11 // pred_fallthru
        _
      // Predicated region
      $region29: #{faster_rcnn_forward.2} parent=11 // pred_check
        %p246 = pneg %p146
      $region30: #{faster_rcnn_forward.2} parent=11 // pred_check_branch
        %248 = sbr.rel (%p246) target = $region32
      $region31: #{faster_rcnn_forward.2} parent=11 // pred_region
        _
      $region32: #{faster_rcnn_forward.2} parent=11 // pred_fallthru
        _
      // Predicated region
      $region33: #{faster_rcnn_forward.2} parent=11 // pred_check
        %p249 = pneg %p167
      $region34: #{faster_rcnn_forward.2} parent=11 // pred_check_branch
        %251 = sbr.rel (%p249) target = $region36
      $region35: #{faster_rcnn_forward.2} parent=11 // pred_region
        _
      $region36: #{faster_rcnn_forward.2} parent=11 // pred_fallthru
        _
    $region12: #{faster_rcnn_forward.2} parent=5 // pred_fallthru
      _
    %p252 = scmp.lt.s32.totalorder %s15, 2
    // Predicated region
    $region37: #{faster_rcnn_forward.2} parent=5 // pred_check
      %p253 = pneg %p252
    $region38: #{faster_rcnn_forward.2} parent=5 // pred_check_branch
      %255 = sbr.rel (%p253) target = $region40
    $region39: #{faster_rcnn_forward.2} parent=5 // pred_region
      // Predicated region
      $region41: #{faster_rcnn_forward.2} parent=39 // pred_check
        %p256 = pneg %p35
      $region42: #{faster_rcnn_forward.2} parent=39 // pred_check_branch
        %258 = sbr.rel (%p256) target = $region44
      $region43: #{faster_rcnn_forward.2} parent=39 // pred_region
        %s259 = smul.u32 128, %s15
        %p260 = scmp.lt.s32.totalorder %s259, 255
        %s261 = scalar_select %p260, %s259, 255
        %s262 = smul.addr %s261, 4
        %s263 = scalar_lea.vmem %s0, %s262
        %s264 = smul.u32 128, %s15
      $region44: #{faster_rcnn_forward.2} parent=39 // pred_fallthru
        _
    $region40: #{faster_rcnn_forward.2} parent=5 // pred_fallthru
      _
    %p265 = scmp.le.s32.totalorder 1, %s15
    %p266 = scmp.lt.s32.totalorder %s15, 3
    %p267 = pnand %p265, %p266
    %p268 = pneg %p267
    // Predicated region
    $region45: #{faster_rcnn_forward.2} parent=5 // pred_check
      _
    $region46: #{faster_rcnn_forward.2} parent=5 // pred_check_branch
      %270 = sbr.rel (%p267) target = $region48
    $region47: #{faster_rcnn_forward.2} parent=5 // pred_region
      %s271 = ssub.s32 %s15, 1
      %s272 = smul.u32 128, %s20
      %p273 = scmp.lt.s32.totalorder %s272, 255
      %s274 = scalar_select %p273, %s272, 255
      %s275 = smul.addr %s274, 4
      %s276 = scalar_lea.vmem %s0, %s275
      %p277 = pneg %p41
      %p278 = pneg %p38
      %p279 = pneg %p62
      %p280 = pneg %p59
      %p281 = pneg %p83
      %p282 = pneg %p80
      %p283 = pneg %p104
      %p284 = pneg %p101
      %p285 = pneg %p125
      %p286 = pneg %p122
      %p287 = pneg %p146
      %p288 = pneg %p143
      %p289 = pneg %p167
      %p290 = pneg %p164
      %p291 = pneg %p193
      %p292 = pneg %p190
      %s293 = smul.u32 128, %s20
      %p294 = scmp.lt.s32.totalorder %s293, 255
      %s295 = scalar_select %p294, %s293, 255
      %s296 = smul.addr %s295, 8
      %s297 = scalar_lea.vmem %s7, %s296
      %p298 = pneg %p219
      %p299 = pneg %p216
      %s300 = smul.u32 128, %s20
      %p301 = scmp.lt.s32.totalorder %s300, 255
      %s302 = scalar_select %p301, %s300, 255
      %s303 = smul.addr %s302, 8
      %s304 = scalar_lea.vmem %s8, %s303
      %s305 = smul.u32 128, %s20
      %p306 = scmp.lt.s32.totalorder %s305, 255
      %s307 = scalar_select %p306, %s305, 255
      %s308 = smul.addr %s307, 4
      %s309 = scalar_lea.vmem %s0, %s308
      %s310 = smul.u32 128, %s20
      %s311 = smul.u32 128, %s20
      %p312 = scmp.lt.s32.totalorder %s311, 255
      %s313 = scalar_select %p312, %s311, 255
      %s314 = smul.addr %s313, 8
      %s315 = scalar_lea.vmem %s7, %s314
      %s316 = smul.u32 128, %s20
      %s317 = smul.u32 128, %s20
      %p318 = scmp.lt.s32.totalorder %s317, 255
      %s319 = scalar_select %p318, %s317, 255
      %s320 = smul.addr %s319, 8
      %s321 = scalar_lea.vmem %s8, %s320
      %s322 = smul.u32 128, %s20
      %v324 = vld [vmem:[%s309] sm:$0xf]
      %v325 = vld [vmem:[%s309 + $0x4] sm:$0xf]
      %v326 = vld [vmem:[%s309 + $0x8] sm:$0xf]
      %v327 = vld [vmem:[%s309 + $0xc] sm:$0xf]
      %v328 = vld [vmem:[%s309 + $0x10] sm:$0xf]
      %v329 = vld [vmem:[%s309 + $0x14] sm:$0xf]
      %v330 = vld [vmem:[%s309 + $0x18] sm:$0xf]
      %v331 = vld [vmem:[%s309 + $0x1c] sm:$0xf]
      %v332 = vld [vmem:[%s309 + $0x20] sm:$0xf]
      %v333 = vld [vmem:[%s309 + $0x24] sm:$0xf]
      %v334 = vld [vmem:[%s309 + $0x28] sm:$0xf]
      %v335 = vld [vmem:[%s309 + $0x2c] sm:$0xf]
      %v336 = vld [vmem:[%s309 + $0x30] sm:$0xf]
      %v337 = vld [vmem:[%s309 + $0x34] sm:$0xf]
      %v338 = vld [vmem:[%s309 + $0x38] sm:$0xf]
      %v339 = vld [vmem:[%s309 + $0x3c] sm:$0xf]
      %v340 = vld [vmem:[%s309 + $0x40] sm:$0xf]
      %v341 = vld [vmem:[%s309 + $0x44] sm:$0xf]
      %v342 = vld [vmem:[%s309 + $0x48] sm:$0xf]
      %v343 = vld [vmem:[%s309 + $0x4c] sm:$0xf]
      %v344 = vld [vmem:[%s309 + $0x50] sm:$0xf]
      %v345 = vld [vmem:[%s309 + $0x54] sm:$0xf]
      %v346 = vld [vmem:[%s309 + $0x58] sm:$0xf]
      %v347 = vld [vmem:[%s309 + $0x5c] sm:$0xf]
      %v348 = vld [vmem:[%s309 + $0x60] sm:$0xf]
      %v349 = vld [vmem:[%s309 + $0x64] sm:$0xf]
      %v350 = vld [vmem:[%s309 + $0x68] sm:$0xf]
      %v351 = vld [vmem:[%s309 + $0x6c] sm:$0xf]
      %v352 = vld [vmem:[%s309 + $0x70] sm:$0xf]
      %v353 = vld [vmem:[%s309 + $0x74] sm:$0xf]
      %v354 = vld [vmem:[%s309 + $0x78] sm:$0xf]
      %v355 = vld [vmem:[%s309 + $0x7c] sm:$0xf]
      %v356 = vld [vmem:[%s309 + $0x80] sm:$0xf]
      %v357 = vld [vmem:[%s309 + $0x84] sm:$0xf]
      %v358 = vld [vmem:[%s309 + $0x88] sm:$0xf]
      %v359 = vld [vmem:[%s309 + $0x8c] sm:$0xf]
      %v360 = vld [vmem:[%s309 + $0x90] sm:$0xf]
      %v361 = vld [vmem:[%s309 + $0x94] sm:$0xf]
      %v362 = vld [vmem:[%s309 + $0x98] sm:$0xf]
      %v363 = vld [vmem:[%s309 + $0x9c] sm:$0xf]
      %v364 = vld [vmem:[%s309 + $0xa0] sm:$0xf]
      %v365 = vld [vmem:[%s309 + $0xa4] sm:$0xf]
      %v366 = vld [vmem:[%s309 + $0xa8] sm:$0xf]
      %v367 = vld [vmem:[%s309 + $0xac] sm:$0xf]
      %v368 = vld [vmem:[%s309 + $0xb0] sm:$0xf]
      %v369 = vld [vmem:[%s309 + $0xb4] sm:$0xf]
      %v370 = vld [vmem:[%s309 + $0xb8] sm:$0xf]
      %v371 = vld [vmem:[%s309 + $0xbc] sm:$0xf]
      %v372 = vld [vmem:[%s309 + $0xc0] sm:$0xf]
      %v373 = vld [vmem:[%s309 + $0xc4] sm:$0xf]
      %v374 = vld [vmem:[%s309 + $0xc8] sm:$0xf]
      %v375 = vld [vmem:[%s309 + $0xcc] sm:$0xf]
      %v376 = vld [vmem:[%s309 + $0xd0] sm:$0xf]
      %v377 = vld [vmem:[%s309 + $0xd4] sm:$0xf]
      %v378 = vld [vmem:[%s309 + $0xd8] sm:$0xf]
      %v379 = vld [vmem:[%s309 + $0xdc] sm:$0xf]
      %v380 = vld [vmem:[%s309 + $0xe0] sm:$0xf]
      %v381 = vld [vmem:[%s309 + $0xe4] sm:$0xf]
      %v382 = vld [vmem:[%s309 + $0xe8] sm:$0xf]
      %v383 = vld [vmem:[%s309 + $0xec] sm:$0xf]
      %v384 = vld [vmem:[%s309 + $0xf0] sm:$0xf]
      %v385 = vld [vmem:[%s309 + $0xf4] sm:$0xf]
      %v386 = vld [vmem:[%s309 + $0xf8] sm:$0xf]
      %v387 = vld [vmem:[%s309 + $0xfc] sm:$0xf]
      %v388 = vld [vmem:[%s309 + $0x100] sm:$0xf]
      %v389 = vld [vmem:[%s309 + $0x104] sm:$0xf]
      %v390 = vld [vmem:[%s309 + $0x108] sm:$0xf]
      %v391 = vld [vmem:[%s309 + $0x10c] sm:$0xf]
      %v392 = vld [vmem:[%s309 + $0x110] sm:$0xf]
      %v393 = vld [vmem:[%s309 + $0x114] sm:$0xf]
      %v394 = vld [vmem:[%s309 + $0x118] sm:$0xf]
      %v395 = vld [vmem:[%s309 + $0x11c] sm:$0xf]
      %v396 = vld [vmem:[%s309 + $0x120] sm:$0xf]
      %v397 = vld [vmem:[%s309 + $0x124] sm:$0xf]
      %v398 = vld [vmem:[%s309 + $0x128] sm:$0xf]
      %v399 = vld [vmem:[%s309 + $0x12c] sm:$0xf]
      %v400 = vld [vmem:[%s309 + $0x130] sm:$0xf]
      %v401 = vld [vmem:[%s309 + $0x134] sm:$0xf]
      %v402 = vld [vmem:[%s309 + $0x138] sm:$0xf]
      %v403 = vld [vmem:[%s309 + $0x13c] sm:$0xf]
      %v404 = vld [vmem:[%s309 + $0x140] sm:$0xf]
      %v405 = vld [vmem:[%s309 + $0x144] sm:$0xf]
      %v406 = vld [vmem:[%s309 + $0x148] sm:$0xf]
      %v407 = vld [vmem:[%s309 + $0x14c] sm:$0xf]
      %v408 = vld [vmem:[%s309 + $0x150] sm:$0xf]
      %v409 = vld [vmem:[%s309 + $0x154] sm:$0xf]
      %v410 = vld [vmem:[%s309 + $0x158] sm:$0xf]
      %v411 = vld [vmem:[%s309 + $0x15c] sm:$0xf]
      %v412 = vld [vmem:[%s309 + $0x160] sm:$0xf]
      %v413 = vld [vmem:[%s309 + $0x164] sm:$0xf]
      %v414 = vld [vmem:[%s309 + $0x168] sm:$0xf]
      %v415 = vld [vmem:[%s309 + $0x16c] sm:$0xf]
      %v416 = vld [vmem:[%s309 + $0x170] sm:$0xf]
      %v417 = vld [vmem:[%s309 + $0x174] sm:$0xf]
      %v418 = vld [vmem:[%s309 + $0x178] sm:$0xf]
      %v419 = vld [vmem:[%s309 + $0x17c] sm:$0xf]
      %v420 = vld [vmem:[%s309 + $0x180] sm:$0xf]
      %v421 = vld [vmem:[%s309 + $0x184] sm:$0xf]
      %v422 = vld [vmem:[%s309 + $0x188] sm:$0xf]
      %v423 = vld [vmem:[%s309 + $0x18c] sm:$0xf]
      %v424 = vld [vmem:[%s309 + $0x190] sm:$0xf]
      %v425 = vld [vmem:[%s309 + $0x194] sm:$0xf]
      %v426 = vld [vmem:[%s309 + $0x198] sm:$0xf]
      %v427 = vld [vmem:[%s309 + $0x19c] sm:$0xf]
      %v428 = vld [vmem:[%s309 + $0x1a0] sm:$0xf]
      %v429 = vld [vmem:[%s309 + $0x1a4] sm:$0xf]
      %v430 = vld [vmem:[%s309 + $0x1a8] sm:$0xf]
      %v431 = vld [vmem:[%s309 + $0x1ac] sm:$0xf]
      %v432 = vld [vmem:[%s309 + $0x1b0] sm:$0xf]
      %v433 = vld [vmem:[%s309 + $0x1b4] sm:$0xf]
      %v434 = vld [vmem:[%s309 + $0x1b8] sm:$0xf]
      %v435 = vld [vmem:[%s309 + $0x1bc] sm:$0xf]
      %v436 = vld [vmem:[%s309 + $0x1c0] sm:$0xf]
      %v437 = vld [vmem:[%s309 + $0x1c4] sm:$0xf]
      %v438 = vld [vmem:[%s309 + $0x1c8] sm:$0xf]
      %v439 = vld [vmem:[%s309 + $0x1cc] sm:$0xf]
      %v440 = vld [vmem:[%s309 + $0x1d0] sm:$0xf]
      %v441 = vld [vmem:[%s309 + $0x1d4] sm:$0xf]
      %v442 = vld [vmem:[%s309 + $0x1d8] sm:$0xf]
      %v443 = vld [vmem:[%s309 + $0x1dc] sm:$0xf]
      %v444 = vld [vmem:[%s309 + $0x1e0] sm:$0xf]
      %v445 = vld [vmem:[%s309 + $0x1e4] sm:$0xf]
      %v446 = vld [vmem:[%s309 + $0x1e8] sm:$0xf]
      %v447 = vld [vmem:[%s309 + $0x1ec] sm:$0xf]
      %v448 = vld [vmem:[%s309 + $0x1f0] sm:$0xf]
      %v449 = vld [vmem:[%s309 + $0x1f4] sm:$0xf]
      %v450 = vld [vmem:[%s309 + $0x1f8] sm:$0xf]
      %v451 = vld [vmem:[%s309 + $0x1fc] sm:$0xf]
      %v452 = vld [vmem:[%s1] sm:$0xf]
      %v453 = vld [vmem:[%s1 + $0x4] sm:$0xf]
      %v454 = vld [vmem:[%s1 + $0x8] sm:$0xf]
      %v455 = vld [vmem:[%s1 + $0xc] sm:$0xf]
      %v456 = vld [vmem:[%s2] sm:$0x1]
      %v458 = vlaneseq
      %v459 = vshrl.u32 %v458, 7
      %v460 = vsub.s32 0, %v459
      %v461 = vrot.slane %v456, %v460
      %v591 = vunpack.c.l.b16 %v324
      %v592 = vunpack.c.l.b16 %v325
      %v593 = vunpack.c.l.b16 %v326
      %v594 = vunpack.c.l.b16 %v327
      %v595 = vunpack.c.l.b16 %v328
      %v596 = vunpack.c.l.b16 %v329
      %v597 = vunpack.c.l.b16 %v330
      %v598 = vunpack.c.l.b16 %v331
      %v599 = vunpack.c.l.b16 %v332
      %v600 = vunpack.c.l.b16 %v333
      %v601 = vunpack.c.l.b16 %v334
      %v602 = vunpack.c.l.b16 %v335
      %v603 = vunpack.c.l.b16 %v336
      %v604 = vunpack.c.l.b16 %v337
      %v605 = vunpack.c.l.b16 %v338
      %v606 = vunpack.c.l.b16 %v339
      %v607 = vunpack.c.l.b16 %v340
      %v608 = vunpack.c.l.b16 %v341
      %v609 = vunpack.c.l.b16 %v342
      %v610 = vunpack.c.l.b16 %v343
      %v611 = vunpack.c.l.b16 %v344
      %v612 = vunpack.c.l.b16 %v345
      %v613 = vunpack.c.l.b16 %v346
      %v614 = vunpack.c.l.b16 %v347
      %v615 = vunpack.c.l.b16 %v348
      %v616 = vunpack.c.l.b16 %v349
      %v617 = vunpack.c.l.b16 %v350
      %v618 = vunpack.c.l.b16 %v351
      %v619 = vunpack.c.l.b16 %v352
      %v620 = vunpack.c.l.b16 %v353
      %v621 = vunpack.c.l.b16 %v354
      %v622 = vunpack.c.l.b16 %v355
      %v623 = vunpack.c.l.b16 %v356
      %v624 = vunpack.c.l.b16 %v357
      %v625 = vunpack.c.l.b16 %v358
      %v626 = vunpack.c.l.b16 %v359
      %v627 = vunpack.c.l.b16 %v360
      %v628 = vunpack.c.l.b16 %v361
      %v629 = vunpack.c.l.b16 %v362
      %v630 = vunpack.c.l.b16 %v363
      %v631 = vunpack.c.l.b16 %v364
      %v632 = vunpack.c.l.b16 %v365
      %v633 = vunpack.c.l.b16 %v366
      %v634 = vunpack.c.l.b16 %v367
      %v635 = vunpack.c.l.b16 %v368
      %v636 = vunpack.c.l.b16 %v369
      %v637 = vunpack.c.l.b16 %v370
      %v638 = vunpack.c.l.b16 %v371
      %v639 = vunpack.c.l.b16 %v372
      %v640 = vunpack.c.l.b16 %v373
      %v641 = vunpack.c.l.b16 %v374
      %v642 = vunpack.c.l.b16 %v375
      %v643 = vunpack.c.l.b16 %v376
      %v644 = vunpack.c.l.b16 %v377
      %v645 = vunpack.c.l.b16 %v378
      %v646 = vunpack.c.l.b16 %v379
      %v647 = vunpack.c.l.b16 %v380
      %v648 = vunpack.c.l.b16 %v381
      %v649 = vunpack.c.l.b16 %v382
      %v650 = vunpack.c.l.b16 %v383
      %v651 = vunpack.c.l.b16 %v384
      %v652 = vunpack.c.l.b16 %v385
      %v653 = vunpack.c.l.b16 %v386
      %v654 = vunpack.c.l.b16 %v387
      %v655 = vunpack.c.l.b16 %v388
      %v656 = vunpack.c.l.b16 %v389
      %v657 = vunpack.c.l.b16 %v390
      %v658 = vunpack.c.l.b16 %v391
      %v659 = vunpack.c.l.b16 %v392
      %v660 = vunpack.c.l.b16 %v393
      %v661 = vunpack.c.l.b16 %v394
      %v662 = vunpack.c.l.b16 %v395
      %v663 = vunpack.c.l.b16 %v396
      %v664 = vunpack.c.l.b16 %v397
      %v665 = vunpack.c.l.b16 %v398
      %v666 = vunpack.c.l.b16 %v399
      %v667 = vunpack.c.l.b16 %v400
      %v668 = vunpack.c.l.b16 %v401
      %v669 = vunpack.c.l.b16 %v402
      %v670 = vunpack.c.l.b16 %v403
      %v671 = vunpack.c.l.b16 %v404
      %v672 = vunpack.c.l.b16 %v405
      %v673 = vunpack.c.l.b16 %v406
      %v674 = vunpack.c.l.b16 %v407
      %v675 = vunpack.c.l.b16 %v408
      %v676 = vunpack.c.l.b16 %v409
      %v677 = vunpack.c.l.b16 %v410
      %v678 = vunpack.c.l.b16 %v411
      %v679 = vunpack.c.l.b16 %v412
      %v680 = vunpack.c.l.b16 %v413
      %v681 = vunpack.c.l.b16 %v414
      %v682 = vunpack.c.l.b16 %v415
      %v683 = vunpack.c.l.b16 %v416
      %v684 = vunpack.c.l.b16 %v417
      %v685 = vunpack.c.l.b16 %v418
      %v686 = vunpack.c.l.b16 %v419
      %v687 = vunpack.c.l.b16 %v420
      %v688 = vunpack.c.l.b16 %v421
      %v689 = vunpack.c.l.b16 %v422
      %v690 = vunpack.c.l.b16 %v423
      %v691 = vunpack.c.l.b16 %v424
      %v692 = vunpack.c.l.b16 %v425
      %v693 = vunpack.c.l.b16 %v426
      %v694 = vunpack.c.l.b16 %v427
      %v695 = vunpack.c.l.b16 %v428
      %v696 = vunpack.c.l.b16 %v429
      %v697 = vunpack.c.l.b16 %v430
      %v698 = vunpack.c.l.b16 %v431
      %v699 = vunpack.c.l.b16 %v432
      %v700 = vunpack.c.l.b16 %v433
      %v701 = vunpack.c.l.b16 %v434
      %v702 = vunpack.c.l.b16 %v435
      %v703 = vunpack.c.l.b16 %v436
      %v704 = vunpack.c.l.b16 %v437
      %v705 = vunpack.c.l.b16 %v438
      %v706 = vunpack.c.l.b16 %v439
      %v707 = vunpack.c.l.b16 %v440
      %v708 = vunpack.c.l.b16 %v441
      %v709 = vunpack.c.l.b16 %v442
      %v710 = vunpack.c.l.b16 %v443
      %v711 = vunpack.c.l.b16 %v444
      %v712 = vunpack.c.l.b16 %v445
      %v713 = vunpack.c.l.b16 %v446
      %v714 = vunpack.c.l.b16 %v447
      %v715 = vunpack.c.l.b16 %v448
      %v716 = vunpack.c.l.b16 %v449
      %v717 = vunpack.c.l.b16 %v450
      %v718 = vunpack.c.l.b16 %v451
      %v719 = vpack.c.b16 %v592, %v591
      %v720 = vpack.c.b16 %v594, %v593
      %v721 = vpack.c.b16 %v596, %v595
      %v722 = vpack.c.b16 %v598, %v597
      %v723 = vpack.c.b16 %v600, %v599
      %v724 = vpack.c.b16 %v602, %v601
      %v725 = vpack.c.b16 %v604, %v603
      %v726 = vpack.c.b16 %v606, %v605
      %v727 = vpack.c.b16 %v608, %v607
      %v728 = vpack.c.b16 %v610, %v609
      %v729 = vpack.c.b16 %v612, %v611
      %v730 = vpack.c.b16 %v614, %v613
      %v731 = vpack.c.b16 %v616, %v615
      %v732 = vpack.c.b16 %v618, %v617
      %v733 = vpack.c.b16 %v620, %v619
      %v734 = vpack.c.b16 %v622, %v621
      %v735 = vpack.c.b16 %v624, %v623
      %v736 = vpack.c.b16 %v626, %v625
      %v737 = vpack.c.b16 %v628, %v627
      %v738 = vpack.c.b16 %v630, %v629
      %v739 = vpack.c.b16 %v632, %v631
      %v740 = vpack.c.b16 %v634, %v633
      %v741 = vpack.c.b16 %v636, %v635
      %v742 = vpack.c.b16 %v638, %v637
      %v743 = vpack.c.b16 %v640, %v639
      %v744 = vpack.c.b16 %v642, %v641
      %v745 = vpack.c.b16 %v644, %v643
      %v746 = vpack.c.b16 %v646, %v645
      %v747 = vpack.c.b16 %v648, %v647
      %v748 = vpack.c.b16 %v650, %v649
      %v749 = vpack.c.b16 %v652, %v651
      %v750 = vpack.c.b16 %v654, %v653
      %v751 = vpack.c.b16 %v656, %v655
      %v752 = vpack.c.b16 %v658, %v657
      %v753 = vpack.c.b16 %v660, %v659
      %v754 = vpack.c.b16 %v662, %v661
      %v755 = vpack.c.b16 %v664, %v663
      %v756 = vpack.c.b16 %v666, %v665
      %v757 = vpack.c.b16 %v668, %v667
      %v758 = vpack.c.b16 %v670, %v669
      %v759 = vpack.c.b16 %v672, %v671
      %v760 = vpack.c.b16 %v674, %v673
      %v761 = vpack.c.b16 %v676, %v675
      %v762 = vpack.c.b16 %v678, %v677
      %v763 = vpack.c.b16 %v680, %v679
      %v764 = vpack.c.b16 %v682, %v681
      %v765 = vpack.c.b16 %v684, %v683
      %v766 = vpack.c.b16 %v686, %v685
      %v767 = vpack.c.b16 %v688, %v687
      %v768 = vpack.c.b16 %v690, %v689
      %v769 = vpack.c.b16 %v692, %v691
      %v770 = vpack.c.b16 %v694, %v693
      %v771 = vpack.c.b16 %v696, %v695
      %v772 = vpack.c.b16 %v698, %v697
      %v773 = vpack.c.b16 %v700, %v699
      %v774 = vpack.c.b16 %v702, %v701
      %v775 = vpack.c.b16 %v704, %v703
      %v776 = vpack.c.b16 %v706, %v705
      %v777 = vpack.c.b16 %v708, %v707
      %v778 = vpack.c.b16 %v710, %v709
      %v779 = vpack.c.b16 %v712, %v711
      %v780 = vpack.c.b16 %v714, %v713
      %v781 = vpack.c.b16 %v716, %v715
      %v782 = vpack.c.b16 %v718, %v717
      %v787 = vunpack.c.l.b16 %v452
      %v788 = vunpack.c.l.b16 %v453
      %v789 = vunpack.c.l.b16 %v454
      %v790 = vunpack.c.l.b16 %v455
      %v791 = vpack.c.b16 %v788, %v787
      %v792 = vpack.c.b16 %v790, %v789
      %vm795 = vcmask 261120
      %v797 = vsel %vm795, %v719, 0
      %v800 = vsel %vm795, %v720, 0
      %v803 = vsel %vm795, %v721, 0
      %v806 = vsel %vm795, %v722, 0
      %v809 = vsel %vm795, %v723, 0
      %v812 = vsel %vm795, %v724, 0
      %v815 = vsel %vm795, %v725, 0
      %v818 = vsel %vm795, %v726, 0
      %v821 = vsel %vm795, %v727, 0
      %v824 = vsel %vm795, %v728, 0
      %v827 = vsel %vm795, %v729, 0
      %v830 = vsel %vm795, %v730, 0
      %v833 = vsel %vm795, %v731, 0
      %v836 = vsel %vm795, %v732, 0
      %v839 = vsel %vm795, %v733, 0
      %v842 = vsel %vm795, %v734, 0
      %v845 = vsel %vm795, %v735, 0
      %v848 = vsel %vm795, %v736, 0
      %v851 = vsel %vm795, %v737, 0
      %v854 = vsel %vm795, %v738, 0
      %v857 = vsel %vm795, %v739, 0
      %v860 = vsel %vm795, %v740, 0
      %v863 = vsel %vm795, %v741, 0
      %v866 = vsel %vm795, %v742, 0
      %v869 = vsel %vm795, %v743, 0
      %v872 = vsel %vm795, %v744, 0
      %v875 = vsel %vm795, %v745, 0
      %v878 = vsel %vm795, %v746, 0
      %v881 = vsel %vm795, %v747, 0
      %v884 = vsel %vm795, %v748, 0
      %v887 = vsel %vm795, %v749, 0
      %v890 = vsel %vm795, %v750, 0
      %v893 = vsel %vm795, %v751, 0
      %v896 = vsel %vm795, %v752, 0
      %v899 = vsel %vm795, %v753, 0
      %v902 = vsel %vm795, %v754, 0
      %v905 = vsel %vm795, %v755, 0
      %v908 = vsel %vm795, %v756, 0
      %v911 = vsel %vm795, %v757, 0
      %v914 = vsel %vm795, %v758, 0
      %v917 = vsel %vm795, %v759, 0
      %v920 = vsel %vm795, %v760, 0
      %v923 = vsel %vm795, %v761, 0
      %v926 = vsel %vm795, %v762, 0
      %v929 = vsel %vm795, %v763, 0
      %v932 = vsel %vm795, %v764, 0
      %v935 = vsel %vm795, %v765, 0
      %v938 = vsel %vm795, %v766, 0
      %v941 = vsel %vm795, %v767, 0
      %v944 = vsel %vm795, %v768, 0
      %v947 = vsel %vm795, %v769, 0
      %v950 = vsel %vm795, %v770, 0
      %v953 = vsel %vm795, %v771, 0
      %v956 = vsel %vm795, %v772, 0
      %v959 = vsel %vm795, %v773, 0
      %v962 = vsel %vm795, %v774, 0
      %v965 = vsel %vm795, %v775, 0
      %v968 = vsel %vm795, %v776, 0
      %v971 = vsel %vm795, %v777, 0
      %v974 = vsel %vm795, %v778, 0
      %v977 = vsel %vm795, %v779, 0
      %v980 = vsel %vm795, %v780, 0
      %v983 = vsel %vm795, %v781, 0
      %v986 = vsel %vm795, %v782, 0
      %988 = vmatprep.subr.bf16.mxu0 0
      %989 = vmatpush1.bf16.msra.mxu0 0
      %990 = vmatprep.subr.bf16.mxu0 0
      %991 = vmatpush1.bf16.msra.mxu0 0
      %992 = vmatprep.subr.bf16.mxu0 0
      %993 = vmatpush1.bf16.msra.mxu0 0
      %994 = vmatprep.subr.bf16.mxu0 0
      %995 = vmatpush1.bf16.msra.mxu0 0
      %996 = vmatprep.subr.bf16.mxu0 0
      %997 = vmatpush1.bf16.msra.mxu0 0
      %998 = vmatprep.subr.bf16.mxu0 0
      %999 = vmatpush1.bf16.msra.mxu0 0
      %1000 = vmatprep.subr.bf16.mxu0 0
      %1001 = vmatpush1.bf16.msra.mxu0 %v792
      %1002 = vmatprep.subr.bf16.mxu0 0
      %1003 = vmatpush1.bf16.msra.mxu0 %v791
      %1004 = vmatprep.subr.bf16.mxu0 0
      %1005 = vmatpush2.bf16.msra.mxu0 0
      %1006 = vmatprep.subr.bf16.mxu0 0
      %1007 = vmatpush2.bf16.msra.mxu0 0
      %1008 = vmatprep.subr.bf16.mxu0 0
      %1009 = vmatpush2.bf16.msra.mxu0 0
      %1010 = vmatprep.subr.bf16.mxu0 0
      %1011 = vmatpush2.bf16.msra.mxu0 0
      %1012 = vmatprep.subr.bf16.mxu0 0
      %1013 = vmatpush2.bf16.msra.mxu0 0
      %1014 = vmatprep.subr.bf16.mxu0 0
      %1015 = vmatpush2.bf16.msra.mxu0 0
      %1016 = vmatprep.subr.bf16.mxu0 0
      %1017 = vmatpush2.bf16.msra.mxu0 0
      %1018 = vmatprep.subr.bf16.mxu0 0
      %1019 = vmatpush2.bf16.msra.mxu0 0
      %1020 = vmatprep.mubr.bf16.mxu0 0
      %1021 = vmatmul.mubr.bf16.gmra.mxu0 %v797
      %v1022 = vpop.f32.mrf.mxu0
      %v1023 = vadd.f32 %v461, %v1022
      %v1024 = vpop.f32.mrf.mxu0
      %v1025 = vpop.f32.mrf.mxu0
      %v1026 = vadd.f32 %v461, %v1025
      %v1027 = vpop.f32.mrf.mxu0
      %1028 = vmatprep.mubr.bf16.mxu0 0
      %1029 = vmatmul.mubr.bf16.gmra.mxu0 %v800
      %v1030 = vpop.f32.mrf.mxu0
      %v1031 = vadd.f32 %v461, %v1030
      %v1032 = vpop.f32.mrf.mxu0
      %v1033 = vpop.f32.mrf.mxu0
      %v1034 = vadd.f32 %v461, %v1033
      %v1035 = vpop.f32.mrf.mxu0
      %1036 = vmatprep.mubr.bf16.mxu0 0
      %1037 = vmatmul.mubr.bf16.gmra.mxu0 %v803
      %v1038 = vpop.f32.mrf.mxu0
      %v1039 = vadd.f32 %v461, %v1038
      %v1040 = vpop.f32.mrf.mxu0
      %v1041 = vpop.f32.mrf.mxu0
      %v1042 = vadd.f32 %v461, %v1041
      %v1043 = vpop.f32.mrf.mxu0
      %1044 = vmatprep.mubr.bf16.mxu0 0
      %1045 = vmatmul.mubr.bf16.gmra.mxu0 %v806
      %v1046 = vpop.f32.mrf.mxu0
      %v1047 = vadd.f32 %v461, %v1046
      %v1048 = vpop.f32.mrf.mxu0
      %v1049 = vpop.f32.mrf.mxu0
      %v1050 = vadd.f32 %v461, %v1049
      %v1051 = vpop.f32.mrf.mxu0
      %1052 = vmatprep.mubr.bf16.mxu0 0
      %1053 = vmatmul.mubr.bf16.gmra.mxu0 %v809
      %v1054 = vpop.f32.mrf.mxu0
      %v1055 = vadd.f32 %v461, %v1054
      %v1056 = vpop.f32.mrf.mxu0
      %v1057 = vpop.f32.mrf.mxu0
      %v1058 = vadd.f32 %v461, %v1057
      %v1059 = vpop.f32.mrf.mxu0
      %1060 = vmatprep.mubr.bf16.mxu0 0
      %1061 = vmatmul.mubr.bf16.gmra.mxu0 %v812
      %v1062 = vpop.f32.mrf.mxu0
      %v1063 = vadd.f32 %v461, %v1062
      %v1064 = vpop.f32.mrf.mxu0
      %v1065 = vpop.f32.mrf.mxu0
      %v1066 = vadd.f32 %v461, %v1065
      %v1067 = vpop.f32.mrf.mxu0
      %1068 = vmatprep.mubr.bf16.mxu0 0
      %1069 = vmatmul.mubr.bf16.gmra.mxu0 %v815
      %v1070 = vpop.f32.mrf.mxu0
      %v1071 = vadd.f32 %v461, %v1070
      %v1072 = vpop.f32.mrf.mxu0
      %v1073 = vpop.f32.mrf.mxu0
      %v1074 = vadd.f32 %v461, %v1073
      %v1075 = vpop.f32.mrf.mxu0
      %1076 = vmatprep.mubr.bf16.mxu0 0
      %1077 = vmatmul.mubr.bf16.gmra.mxu0 %v818
      %v1078 = vpop.f32.mrf.mxu0
      %v1079 = vadd.f32 %v461, %v1078
      %v1080 = vpop.f32.mrf.mxu0
      %v1081 = vpop.f32.mrf.mxu0
      %v1082 = vadd.f32 %v461, %v1081
      %v1083 = vpop.f32.mrf.mxu0
      %1084 = vmatprep.mubr.bf16.mxu0 0
      %1085 = vmatmul.mubr.bf16.gmra.mxu0 %v821
      %v1086 = vpop.f32.mrf.mxu0
      %v1087 = vadd.f32 %v461, %v1086
      %v1088 = vpop.f32.mrf.mxu0
      %v1089 = vpop.f32.mrf.mxu0
      %v1090 = vadd.f32 %v461, %v1089
      %v1091 = vpop.f32.mrf.mxu0
      %1092 = vmatprep.mubr.bf16.mxu0 0
      %1093 = vmatmul.mubr.bf16.gmra.mxu0 %v824
      %v1094 = vpop.f32.mrf.mxu0
      %v1095 = vadd.f32 %v461, %v1094
      %v1096 = vpop.f32.mrf.mxu0
      %v1097 = vpop.f32.mrf.mxu0
      %v1098 = vadd.f32 %v461, %v1097
      %v1099 = vpop.f32.mrf.mxu0
      %1100 = vmatprep.mubr.bf16.mxu0 0
      %1101 = vmatmul.mubr.bf16.gmra.mxu0 %v827
      %v1102 = vpop.f32.mrf.mxu0
      %v1103 = vadd.f32 %v461, %v1102
      %v1104 = vpop.f32.mrf.mxu0
      %v1105 = vpop.f32.mrf.mxu0
      %v1106 = vadd.f32 %v461, %v1105
      %v1107 = vpop.f32.mrf.mxu0
      %1108 = vmatprep.mubr.bf16.mxu0 0
      %1109 = vmatmul.mubr.bf16.gmra.mxu0 %v830
      %v1110 = vpop.f32.mrf.mxu0
      %v1111 = vadd.f32 %v461, %v1110
      %v1112 = vpop.f32.mrf.mxu0
      %v1113 = vpop.f32.mrf.mxu0
      %v1114 = vadd.f32 %v461, %v1113
      %v1115 = vpop.f32.mrf.mxu0
      %1116 = vmatprep.mubr.bf16.mxu0 0
      %1117 = vmatmul.mubr.bf16.gmra.mxu0 %v833
      %v1118 = vpop.f32.mrf.mxu0
      %v1119 = vadd.f32 %v461, %v1118
      %v1120 = vpop.f32.mrf.mxu0
      %v1121 = vpop.f32.mrf.mxu0
      %v1122 = vadd.f32 %v461, %v1121
      %v1123 = vpop.f32.mrf.mxu0
      %1124 = vmatprep.mubr.bf16.mxu0 0
      %1125 = vmatmul.mubr.bf16.gmra.mxu0 %v836
      %v1126 = vpop.f32.mrf.mxu0
      %v1127 = vadd.f32 %v461, %v1126
      %v1128 = vpop.f32.mrf.mxu0
      %v1129 = vpop.f32.mrf.mxu0
      %v1130 = vadd.f32 %v461, %v1129
      %v1131 = vpop.f32.mrf.mxu0
      %1132 = vmatprep.mubr.bf16.mxu0 0
      %1133 = vmatmul.mubr.bf16.gmra.mxu0 %v839
      %v1134 = vpop.f32.mrf.mxu0
      %v1135 = vadd.f32 %v461, %v1134
      %v1136 = vpop.f32.mrf.mxu0
      %v1137 = vpop.f32.mrf.mxu0
      %v1138 = vadd.f32 %v461, %v1137
      %v1139 = vpop.f32.mrf.mxu0
      %1140 = vmatprep.mubr.bf16.mxu0 0
      %1141 = vmatmul.mubr.bf16.gmra.mxu0 %v842
      %v1142 = vpop.f32.mrf.mxu0
      %v1143 = vadd.f32 %v461, %v1142
      %v1144 = vpop.f32.mrf.mxu0
      %v1145 = vpop.f32.mrf.mxu0
      %v1146 = vadd.f32 %v461, %v1145
      %v1147 = vpop.f32.mrf.mxu0
      %1148 = vmatprep.mubr.bf16.mxu0 0
      %1149 = vmatmul.mubr.bf16.gmra.mxu0 %v845
      %v1150 = vpop.f32.mrf.mxu0
      %v1151 = vadd.f32 %v461, %v1150
      %v1152 = vpop.f32.mrf.mxu0
      %v1153 = vpop.f32.mrf.mxu0
      %v1154 = vadd.f32 %v461, %v1153
      %v1155 = vpop.f32.mrf.mxu0
      %1156 = vmatprep.mubr.bf16.mxu0 0
      %1157 = vmatmul.mubr.bf16.gmra.mxu0 %v848
      %v1158 = vpop.f32.mrf.mxu0
      %v1159 = vadd.f32 %v461, %v1158
      %v1160 = vpop.f32.mrf.mxu0
      %v1161 = vpop.f32.mrf.mxu0
      %v1162 = vadd.f32 %v461, %v1161
      %v1163 = vpop.f32.mrf.mxu0
      %1164 = vmatprep.mubr.bf16.mxu0 0
      %1165 = vmatmul.mubr.bf16.gmra.mxu0 %v851
      %v1166 = vpop.f32.mrf.mxu0
      %v1167 = vadd.f32 %v461, %v1166
      %v1168 = vpop.f32.mrf.mxu0
      %v1169 = vpop.f32.mrf.mxu0
      %v1170 = vadd.f32 %v461, %v1169
      %v1171 = vpop.f32.mrf.mxu0
      %1172 = vmatprep.mubr.bf16.mxu0 0
      %1173 = vmatmul.mubr.bf16.gmra.mxu0 %v854
      %v1174 = vpop.f32.mrf.mxu0
      %v1175 = vadd.f32 %v461, %v1174
      %v1176 = vpop.f32.mrf.mxu0
      %v1177 = vpop.f32.mrf.mxu0
      %v1178 = vadd.f32 %v461, %v1177
      %v1179 = vpop.f32.mrf.mxu0
      %1180 = vmatprep.mubr.bf16.mxu0 0
      %1181 = vmatmul.mubr.bf16.gmra.mxu0 %v857
      %v1182 = vpop.f32.mrf.mxu0
      %v1183 = vadd.f32 %v461, %v1182
      %v1184 = vpop.f32.mrf.mxu0
      %v1185 = vpop.f32.mrf.mxu0
      %v1186 = vadd.f32 %v461, %v1185
      %v1187 = vpop.f32.mrf.mxu0
      %1188 = vmatprep.mubr.bf16.mxu0 0
      %1189 = vmatmul.mubr.bf16.gmra.mxu0 %v860
      %v1190 = vpop.f32.mrf.mxu0
      %v1191 = vadd.f32 %v461, %v1190
      %v1192 = vpop.f32.mrf.mxu0
      %v1193 = vpop.f32.mrf.mxu0
      %v1194 = vadd.f32 %v461, %v1193
      %v1195 = vpop.f32.mrf.mxu0
      %1196 = vmatprep.mubr.bf16.mxu0 0
      %1197 = vmatmul.mubr.bf16.gmra.mxu0 %v863
      %v1198 = vpop.f32.mrf.mxu0
      %v1199 = vadd.f32 %v461, %v1198
      %v1200 = vpop.f32.mrf.mxu0
      %v1201 = vpop.f32.mrf.mxu0
      %v1202 = vadd.f32 %v461, %v1201
      %v1203 = vpop.f32.mrf.mxu0
      %1204 = vmatprep.mubr.bf16.mxu0 0
      %1205 = vmatmul.mubr.bf16.gmra.mxu0 %v866
      %v1206 = vpop.f32.mrf.mxu0
      %v1207 = vadd.f32 %v461, %v1206
      %v1208 = vpop.f32.mrf.mxu0
      %v1209 = vpop.f32.mrf.mxu0
      %v1210 = vadd.f32 %v461, %v1209
      %v1211 = vpop.f32.mrf.mxu0
      %1212 = vmatprep.mubr.bf16.mxu0 0
      %1213 = vmatmul.mubr.bf16.gmra.mxu0 %v869
      %v1214 = vpop.f32.mrf.mxu0
      %v1215 = vadd.f32 %v461, %v1214
      %v1216 = vpop.f32.mrf.mxu0
      %v1217 = vpop.f32.mrf.mxu0
      %v1218 = vadd.f32 %v461, %v1217
      %v1219 = vpop.f32.mrf.mxu0
      %1220 = vmatprep.mubr.bf16.mxu0 0
      %1221 = vmatmul.mubr.bf16.gmra.mxu0 %v872
      %v1222 = vpop.f32.mrf.mxu0
      %v1223 = vadd.f32 %v461, %v1222
      %v1224 = vpop.f32.mrf.mxu0
      %v1225 = vpop.f32.mrf.mxu0
      %v1226 = vadd.f32 %v461, %v1225
      %v1227 = vpop.f32.mrf.mxu0
      %1228 = vmatprep.mubr.bf16.mxu0 0
      %1229 = vmatmul.mubr.bf16.gmra.mxu0 %v875
      %v1230 = vpop.f32.mrf.mxu0
      %v1231 = vadd.f32 %v461, %v1230
      %v1232 = vpop.f32.mrf.mxu0
      %v1233 = vpop.f32.mrf.mxu0
      %v1234 = vadd.f32 %v461, %v1233
      %v1235 = vpop.f32.mrf.mxu0
      %1236 = vmatprep.mubr.bf16.mxu0 0
      %1237 = vmatmul.mubr.bf16.gmra.mxu0 %v878
      %v1238 = vpop.f32.mrf.mxu0
      %v1239 = vadd.f32 %v461, %v1238
      %v1240 = vpop.f32.mrf.mxu0
      %v1241 = vpop.f32.mrf.mxu0
      %v1242 = vadd.f32 %v461, %v1241
      %v1243 = vpop.f32.mrf.mxu0
      %1244 = vmatprep.mubr.bf16.mxu0 0
      %1245 = vmatmul.mubr.bf16.gmra.mxu0 %v881
      %v1246 = vpop.f32.mrf.mxu0
      %v1247 = vadd.f32 %v461, %v1246
      %v1248 = vpop.f32.mrf.mxu0
      %v1249 = vpop.f32.mrf.mxu0
      %v1250 = vadd.f32 %v461, %v1249
      %v1251 = vpop.f32.mrf.mxu0
      %1252 = vmatprep.mubr.bf16.mxu0 0
      %1253 = vmatmul.mubr.bf16.gmra.mxu0 %v884
      %v1254 = vpop.f32.mrf.mxu0
      %v1255 = vadd.f32 %v461, %v1254
      %v1256 = vpop.f32.mrf.mxu0
      %v1257 = vpop.f32.mrf.mxu0
      %v1258 = vadd.f32 %v461, %v1257
      %v1259 = vpop.f32.mrf.mxu0
      %1260 = vmatprep.mubr.bf16.mxu0 0
      %1261 = vmatmul.mubr.bf16.gmra.mxu0 %v887
      %v1262 = vpop.f32.mrf.mxu0
      %v1263 = vadd.f32 %v461, %v1262
      %v1264 = vpop.f32.mrf.mxu0
      %v1265 = vpop.f32.mrf.mxu0
      %v1266 = vadd.f32 %v461, %v1265
      %v1267 = vpop.f32.mrf.mxu0
      %1268 = vmatprep.mubr.bf16.mxu0 0
      %1269 = vmatmul.mubr.bf16.gmra.mxu0 %v890
      %v1270 = vpop.f32.mrf.mxu0
      %v1271 = vadd.f32 %v461, %v1270
      %v1272 = vpop.f32.mrf.mxu0
      %v1273 = vpop.f32.mrf.mxu0
      %v1274 = vadd.f32 %v461, %v1273
      %v1275 = vpop.f32.mrf.mxu0
      %1276 = vmatprep.mubr.bf16.mxu0 0
      %1277 = vmatmul.mubr.bf16.gmra.mxu0 %v893
      %v1278 = vpop.f32.mrf.mxu0
      %v1279 = vadd.f32 %v461, %v1278
      %v1280 = vpop.f32.mrf.mxu0
      %v1281 = vpop.f32.mrf.mxu0
      %v1282 = vadd.f32 %v461, %v1281
      %v1283 = vpop.f32.mrf.mxu0
      %1284 = vmatprep.mubr.bf16.mxu0 0
      %1285 = vmatmul.mubr.bf16.gmra.mxu0 %v896
      %v1286 = vpop.f32.mrf.mxu0
      %v1287 = vadd.f32 %v461, %v1286
      %v1288 = vpop.f32.mrf.mxu0
      %v1289 = vpop.f32.mrf.mxu0
      %v1290 = vadd.f32 %v461, %v1289
      %v1291 = vpop.f32.mrf.mxu0
      %1292 = vmatprep.mubr.bf16.mxu0 0
      %1293 = vmatmul.mubr.bf16.gmra.mxu0 %v899
      %v1294 = vpop.f32.mrf.mxu0
      %v1295 = vadd.f32 %v461, %v1294
      %v1296 = vpop.f32.mrf.mxu0
      %v1297 = vpop.f32.mrf.mxu0
      %v1298 = vadd.f32 %v461, %v1297
      %v1299 = vpop.f32.mrf.mxu0
      %1300 = vmatprep.mubr.bf16.mxu0 0
      %1301 = vmatmul.mubr.bf16.gmra.mxu0 %v902
      %v1302 = vpop.f32.mrf.mxu0
      %v1303 = vadd.f32 %v461, %v1302
      %v1304 = vpop.f32.mrf.mxu0
      %v1305 = vpop.f32.mrf.mxu0
      %v1306 = vadd.f32 %v461, %v1305
      %v1307 = vpop.f32.mrf.mxu0
      %1308 = vmatprep.mubr.bf16.mxu0 0
      %1309 = vmatmul.mubr.bf16.gmra.mxu0 %v905
      %v1310 = vpop.f32.mrf.mxu0
      %v1311 = vadd.f32 %v461, %v1310
      %v1312 = vpop.f32.mrf.mxu0
      %v1313 = vpop.f32.mrf.mxu0
      %v1314 = vadd.f32 %v461, %v1313
      %v1315 = vpop.f32.mrf.mxu0
      %1316 = vmatprep.mubr.bf16.mxu0 0
      %1317 = vmatmul.mubr.bf16.gmra.mxu0 %v908
      %v1318 = vpop.f32.mrf.mxu0
      %v1319 = vadd.f32 %v461, %v1318
      %v1320 = vpop.f32.mrf.mxu0
      %v1321 = vpop.f32.mrf.mxu0
      %v1322 = vadd.f32 %v461, %v1321
      %v1323 = vpop.f32.mrf.mxu0
      %1324 = vmatprep.mubr.bf16.mxu0 0
      %1325 = vmatmul.mubr.bf16.gmra.mxu0 %v911
      %v1326 = vpop.f32.mrf.mxu0
      %v1327 = vadd.f32 %v461, %v1326
      %v1328 = vpop.f32.mrf.mxu0
      %v1329 = vpop.f32.mrf.mxu0
      %v1330 = vadd.f32 %v461, %v1329
      %v1331 = vpop.f32.mrf.mxu0
      %1332 = vmatprep.mubr.bf16.mxu0 0
      %1333 = vmatmul.mubr.bf16.gmra.mxu0 %v914
      %v1334 = vpop.f32.mrf.mxu0
      %v1335 = vadd.f32 %v461, %v1334
      %v1336 = vpop.f32.mrf.mxu0
      %v1337 = vpop.f32.mrf.mxu0
      %v1338 = vadd.f32 %v461, %v1337
      %v1339 = vpop.f32.mrf.mxu0
      %1340 = vmatprep.mubr.bf16.mxu0 0
      %1341 = vmatmul.mubr.bf16.gmra.mxu0 %v917
      %v1342 = vpop.f32.mrf.mxu0
      %v1343 = vadd.f32 %v461, %v1342
      %v1344 = vpop.f32.mrf.mxu0
      %v1345 = vpop.f32.mrf.mxu0
      %v1346 = vadd.f32 %v461, %v1345
      %v1347 = vpop.f32.mrf.mxu0
      %1348 = vmatprep.mubr.bf16.mxu0 0
      %1349 = vmatmul.mubr.bf16.gmra.mxu0 %v920
      %v1350 = vpop.f32.mrf.mxu0
      %v1351 = vadd.f32 %v461, %v1350
      %v1352 = vpop.f32.mrf.mxu0
      %v1353 = vpop.f32.mrf.mxu0
      %v1354 = vadd.f32 %v461, %v1353
      %v1355 = vpop.f32.mrf.mxu0
      %1356 = vmatprep.mubr.bf16.mxu0 0
      %1357 = vmatmul.mubr.bf16.gmra.mxu0 %v923
      %v1358 = vpop.f32.mrf.mxu0
      %v1359 = vadd.f32 %v461, %v1358
      %v1360 = vpop.f32.mrf.mxu0
      %v1361 = vpop.f32.mrf.mxu0
      %v1362 = vadd.f32 %v461, %v1361
      %v1363 = vpop.f32.mrf.mxu0
      %1364 = vmatprep.mubr.bf16.mxu0 0
      %1365 = vmatmul.mubr.bf16.gmra.mxu0 %v926
      %v1366 = vpop.f32.mrf.mxu0
      %v1367 = vadd.f32 %v461, %v1366
      %v1368 = vpop.f32.mrf.mxu0
      %v1369 = vpop.f32.mrf.mxu0
      %v1370 = vadd.f32 %v461, %v1369
      %v1371 = vpop.f32.mrf.mxu0
      %1372 = vmatprep.mubr.bf16.mxu0 0
      %1373 = vmatmul.mubr.bf16.gmra.mxu0 %v929
      %v1374 = vpop.f32.mrf.mxu0
      %v1375 = vadd.f32 %v461, %v1374
      %v1376 = vpop.f32.mrf.mxu0
      %v1377 = vpop.f32.mrf.mxu0
      %v1378 = vadd.f32 %v461, %v1377
      %v1379 = vpop.f32.mrf.mxu0
      %1380 = vmatprep.mubr.bf16.mxu0 0
      %1381 = vmatmul.mubr.bf16.gmra.mxu0 %v932
      %v1382 = vpop.f32.mrf.mxu0
      %v1383 = vadd.f32 %v461, %v1382
      %v1384 = vpop.f32.mrf.mxu0
      %v1385 = vpop.f32.mrf.mxu0
      %v1386 = vadd.f32 %v461, %v1385
      %v1387 = vpop.f32.mrf.mxu0
      %1388 = vmatprep.mubr.bf16.mxu0 0
      %1389 = vmatmul.mubr.bf16.gmra.mxu0 %v935
      %v1390 = vpop.f32.mrf.mxu0
      %v1391 = vadd.f32 %v461, %v1390
      %v1392 = vpop.f32.mrf.mxu0
      %v1393 = vpop.f32.mrf.mxu0
      %v1394 = vadd.f32 %v461, %v1393
      %v1395 = vpop.f32.mrf.mxu0
      %1396 = vmatprep.mubr.bf16.mxu0 0
      %1397 = vmatmul.mubr.bf16.gmra.mxu0 %v938
      %v1398 = vpop.f32.mrf.mxu0
      %v1399 = vadd.f32 %v461, %v1398
      %v1400 = vpop.f32.mrf.mxu0
      %v1401 = vpop.f32.mrf.mxu0
      %v1402 = vadd.f32 %v461, %v1401
      %v1403 = vpop.f32.mrf.mxu0
      %1404 = vmatprep.mubr.bf16.mxu0 0
      %1405 = vmatmul.mubr.bf16.gmra.mxu0 %v941
      %v1406 = vpop.f32.mrf.mxu0
      %v1407 = vadd.f32 %v461, %v1406
      %v1408 = vpop.f32.mrf.mxu0
      %v1409 = vpop.f32.mrf.mxu0
      %v1410 = vadd.f32 %v461, %v1409
      %v1411 = vpop.f32.mrf.mxu0
      %1412 = vmatprep.mubr.bf16.mxu0 0
      %1413 = vmatmul.mubr.bf16.gmra.mxu0 %v944
      %v1414 = vpop.f32.mrf.mxu0
      %v1415 = vadd.f32 %v461, %v1414
      %v1416 = vpop.f32.mrf.mxu0
      %v1417 = vpop.f32.mrf.mxu0
      %v1418 = vadd.f32 %v461, %v1417
      %v1419 = vpop.f32.mrf.mxu0
      %1420 = vmatprep.mubr.bf16.mxu0 0
      %1421 = vmatmul.mubr.bf16.gmra.mxu0 %v947
      %v1422 = vpop.f32.mrf.mxu0
      %v1423 = vadd.f32 %v461, %v1422
      %v1424 = vpop.f32.mrf.mxu0
      %v1425 = vpop.f32.mrf.mxu0
      %v1426 = vadd.f32 %v461, %v1425
      %v1427 = vpop.f32.mrf.mxu0
      %1428 = vmatprep.mubr.bf16.mxu0 0
      %1429 = vmatmul.mubr.bf16.gmra.mxu0 %v950
      %v1430 = vpop.f32.mrf.mxu0
      %v1431 = vadd.f32 %v461, %v1430
      %v1432 = vpop.f32.mrf.mxu0
      %v1433 = vpop.f32.mrf.mxu0
      %v1434 = vadd.f32 %v461, %v1433
      %v1435 = vpop.f32.mrf.mxu0
      %1436 = vmatprep.mubr.bf16.mxu0 0
      %1437 = vmatmul.mubr.bf16.gmra.mxu0 %v953
      %v1438 = vpop.f32.mrf.mxu0
      %v1439 = vadd.f32 %v461, %v1438
      %v1440 = vpop.f32.mrf.mxu0
      %v1441 = vpop.f32.mrf.mxu0
      %v1442 = vadd.f32 %v461, %v1441
      %v1443 = vpop.f32.mrf.mxu0
      %1444 = vmatprep.mubr.bf16.mxu0 0
      %1445 = vmatmul.mubr.bf16.gmra.mxu0 %v956
      %v1446 = vpop.f32.mrf.mxu0
      %v1447 = vadd.f32 %v461, %v1446
      %v1448 = vpop.f32.mrf.mxu0
      %v1449 = vpop.f32.mrf.mxu0
      %v1450 = vadd.f32 %v461, %v1449
      %v1451 = vpop.f32.mrf.mxu0
      %1452 = vmatprep.mubr.bf16.mxu0 0
      %1453 = vmatmul.mubr.bf16.gmra.mxu0 %v959
      %v1454 = vpop.f32.mrf.mxu0
      %v1455 = vadd.f32 %v461, %v1454
      %v1456 = vpop.f32.mrf.mxu0
      %v1457 = vpop.f32.mrf.mxu0
      %v1458 = vadd.f32 %v461, %v1457
      %v1459 = vpop.f32.mrf.mxu0
      %1460 = vmatprep.mubr.bf16.mxu0 0
      %1461 = vmatmul.mubr.bf16.gmra.mxu0 %v962
      %v1462 = vpop.f32.mrf.mxu0
      %v1463 = vadd.f32 %v461, %v1462
      %v1464 = vpop.f32.mrf.mxu0
      %v1465 = vpop.f32.mrf.mxu0
      %v1466 = vadd.f32 %v461, %v1465
      %v1467 = vpop.f32.mrf.mxu0
      %1468 = vmatprep.mubr.bf16.mxu0 0
      %1469 = vmatmul.mubr.bf16.gmra.mxu0 %v965
      %v1470 = vpop.f32.mrf.mxu0
      %v1471 = vadd.f32 %v461, %v1470
      %v1472 = vpop.f32.mrf.mxu0
      %v1473 = vpop.f32.mrf.mxu0
      %v1474 = vadd.f32 %v461, %v1473
      %v1475 = vpop.f32.mrf.mxu0
      %1476 = vmatprep.mubr.bf16.mxu0 0
      %1477 = vmatmul.mubr.bf16.gmra.mxu0 %v968
      %v1478 = vpop.f32.mrf.mxu0
      %v1479 = vadd.f32 %v461, %v1478
      %v1480 = vpop.f32.mrf.mxu0
      %v1481 = vpop.f32.mrf.mxu0
      %v1482 = vadd.f32 %v461, %v1481
      %v1483 = vpop.f32.mrf.mxu0
      %1484 = vmatprep.mubr.bf16.mxu0 0
      %1485 = vmatmul.mubr.bf16.gmra.mxu0 %v971
      %v1486 = vpop.f32.mrf.mxu0
      %v1487 = vadd.f32 %v461, %v1486
      %v1488 = vpop.f32.mrf.mxu0
      %v1489 = vpop.f32.mrf.mxu0
      %v1490 = vadd.f32 %v461, %v1489
      %v1491 = vpop.f32.mrf.mxu0
      %1492 = vmatprep.mubr.bf16.mxu0 0
      %1493 = vmatmul.mubr.bf16.gmra.mxu0 %v974
      %v1494 = vpop.f32.mrf.mxu0
      %v1495 = vadd.f32 %v461, %v1494
      %v1496 = vpop.f32.mrf.mxu0
      %v1497 = vpop.f32.mrf.mxu0
      %v1498 = vadd.f32 %v461, %v1497
      %v1499 = vpop.f32.mrf.mxu0
      %1500 = vmatprep.mubr.bf16.mxu0 0
      %1501 = vmatmul.mubr.bf16.gmra.mxu0 %v977
      %v1502 = vpop.f32.mrf.mxu0
      %v1503 = vadd.f32 %v461, %v1502
      %v1504 = vpop.f32.mrf.mxu0
      %v1505 = vpop.f32.mrf.mxu0
      %v1506 = vadd.f32 %v461, %v1505
      %v1507 = vpop.f32.mrf.mxu0
      %1508 = vmatprep.mubr.bf16.mxu0 0
      %1509 = vmatmul.mubr.bf16.gmra.mxu0 %v980
      %v1510 = vpop.f32.mrf.mxu0
      %v1511 = vadd.f32 %v461, %v1510
      %v1512 = vpop.f32.mrf.mxu0
      %v1513 = vpop.f32.mrf.mxu0
      %v1514 = vadd.f32 %v461, %v1513
      %v1515 = vpop.f32.mrf.mxu0
      %1516 = vmatprep.mubr.bf16.mxu0 0
      %1517 = vmatmul.mubr.bf16.gmra.mxu0 %v983
      %v1518 = vpop.f32.mrf.mxu0
      %v1519 = vadd.f32 %v461, %v1518
      %v1520 = vpop.f32.mrf.mxu0
      %v1521 = vpop.f32.mrf.mxu0
      %v1522 = vadd.f32 %v461, %v1521
      %v1523 = vpop.f32.mrf.mxu0
      %1524 = vmatprep.mubr.bf16.mxu0 0
      %1525 = vmatmul.mubr.bf16.gmra.mxu0 %v986
      %v1526 = vpop.f32.mrf.mxu0
      %v1527 = vadd.f32 %v461, %v1526
      %v1528 = vpop.f32.mrf.mxu0
      %v1529 = vpop.f32.mrf.mxu0
      %v1530 = vadd.f32 %v461, %v1529
      %v1531 = vpop.f32.mrf.mxu0
      %1532 = vdwg.mxu0
      %v1533 = vmax.f32 %v1023, 0.0
      %v1534 = vmax.f32 %v1026, 0.0
      %v1535 = vmax.f32 %v1031, 0.0
      %v1536 = vmax.f32 %v1034, 0.0
      %v1537 = vmax.f32 %v1039, 0.0
      %v1538 = vmax.f32 %v1042, 0.0
      %v1539 = vmax.f32 %v1047, 0.0
      %v1540 = vmax.f32 %v1050, 0.0
      %v1541 = vmax.f32 %v1055, 0.0
      %v1542 = vmax.f32 %v1058, 0.0
      %v1543 = vmax.f32 %v1063, 0.0
      %v1544 = vmax.f32 %v1066, 0.0
      %v1545 = vmax.f32 %v1071, 0.0
      %v1546 = vmax.f32 %v1074, 0.0
      %v1547 = vmax.f32 %v1079, 0.0
      %v1548 = vmax.f32 %v1082, 0.0
      %v1549 = vmax.f32 %v1087, 0.0
      %v1550 = vmax.f32 %v1090, 0.0
      %v1551 = vmax.f32 %v1095, 0.0
      %v1552 = vmax.f32 %v1098, 0.0
      %v1553 = vmax.f32 %v1103, 0.0
      %v1554 = vmax.f32 %v1106, 0.0
      %v1555 = vmax.f32 %v1111, 0.0
      %v1556 = vmax.f32 %v1114, 0.0
      %v1557 = vmax.f32 %v1119, 0.0
      %v1558 = vmax.f32 %v1122, 0.0
      %v1559 = vmax.f32 %v1127, 0.0
      %v1560 = vmax.f32 %v1130, 0.0
      %v1561 = vmax.f32 %v1135, 0.0
      %v1562 = vmax.f32 %v1138, 0.0
      %v1563 = vmax.f32 %v1143, 0.0
      %v1564 = vmax.f32 %v1146, 0.0
      %v1565 = vmax.f32 %v1151, 0.0
      %v1566 = vmax.f32 %v1154, 0.0
      %v1567 = vmax.f32 %v1159, 0.0
      %v1568 = vmax.f32 %v1162, 0.0
      %v1569 = vmax.f32 %v1167, 0.0
      %v1570 = vmax.f32 %v1170, 0.0
      %v1571 = vmax.f32 %v1175, 0.0
      %v1572 = vmax.f32 %v1178, 0.0
      %v1573 = vmax.f32 %v1183, 0.0
      %v1574 = vmax.f32 %v1186, 0.0
      %v1575 = vmax.f32 %v1191, 0.0
      %v1576 = vmax.f32 %v1194, 0.0
      %v1577 = vmax.f32 %v1199, 0.0
      %v1578 = vmax.f32 %v1202, 0.0
      %v1579 = vmax.f32 %v1207, 0.0
      %v1580 = vmax.f32 %v1210, 0.0
      %v1581 = vmax.f32 %v1215, 0.0
      %v1582 = vmax.f32 %v1218, 0.0
      %v1583 = vmax.f32 %v1223, 0.0
      %v1584 = vmax.f32 %v1226, 0.0
      %v1585 = vmax.f32 %v1231, 0.0
      %v1586 = vmax.f32 %v1234, 0.0
      %v1587 = vmax.f32 %v1239, 0.0
      %v1588 = vmax.f32 %v1242, 0.0
      %v1589 = vmax.f32 %v1247, 0.0
      %v1590 = vmax.f32 %v1250, 0.0
      %v1591 = vmax.f32 %v1255, 0.0
      %v1592 = vmax.f32 %v1258, 0.0
      %v1593 = vmax.f32 %v1263, 0.0
      %v1594 = vmax.f32 %v1266, 0.0
      %v1595 = vmax.f32 %v1271, 0.0
      %v1596 = vmax.f32 %v1274, 0.0
      %v1597 = vmax.f32 %v1279, 0.0
      %v1598 = vmax.f32 %v1282, 0.0
      %v1599 = vmax.f32 %v1287, 0.0
      %v1600 = vmax.f32 %v1290, 0.0
      %v1601 = vmax.f32 %v1295, 0.0
      %v1602 = vmax.f32 %v1298, 0.0
      %v1603 = vmax.f32 %v1303, 0.0
      %v1604 = vmax.f32 %v1306, 0.0
      %v1605 = vmax.f32 %v1311, 0.0
      %v1606 = vmax.f32 %v1314, 0.0
      %v1607 = vmax.f32 %v1319, 0.0
      %v1608 = vmax.f32 %v1322, 0.0
      %v1609 = vmax.f32 %v1327, 0.0
      %v1610 = vmax.f32 %v1330, 0.0
      %v1611 = vmax.f32 %v1335, 0.0
      %v1612 = vmax.f32 %v1338, 0.0
      %v1613 = vmax.f32 %v1343, 0.0
      %v1614 = vmax.f32 %v1346, 0.0
      %v1615 = vmax.f32 %v1351, 0.0
      %v1616 = vmax.f32 %v1354, 0.0
      %v1617 = vmax.f32 %v1359, 0.0
      %v1618 = vmax.f32 %v1362, 0.0
      %v1619 = vmax.f32 %v1367, 0.0
      %v1620 = vmax.f32 %v1370, 0.0
      %v1621 = vmax.f32 %v1375, 0.0
      %v1622 = vmax.f32 %v1378, 0.0
      %v1623 = vmax.f32 %v1383, 0.0
      %v1624 = vmax.f32 %v1386, 0.0
      %v1625 = vmax.f32 %v1391, 0.0
      %v1626 = vmax.f32 %v1394, 0.0
      %v1627 = vmax.f32 %v1399, 0.0
      %v1628 = vmax.f32 %v1402, 0.0
      %v1629 = vmax.f32 %v1407, 0.0
      %v1630 = vmax.f32 %v1410, 0.0
      %v1631 = vmax.f32 %v1415, 0.0
      %v1632 = vmax.f32 %v1418, 0.0
      %v1633 = vmax.f32 %v1423, 0.0
      %v1634 = vmax.f32 %v1426, 0.0
      %v1635 = vmax.f32 %v1431, 0.0
      %v1636 = vmax.f32 %v1434, 0.0
      %v1637 = vmax.f32 %v1439, 0.0
      %v1638 = vmax.f32 %v1442, 0.0
      %v1639 = vmax.f32 %v1447, 0.0
      %v1640 = vmax.f32 %v1450, 0.0
      %v1641 = vmax.f32 %v1455, 0.0
      %v1642 = vmax.f32 %v1458, 0.0
      %v1643 = vmax.f32 %v1463, 0.0
      %v1644 = vmax.f32 %v1466, 0.0
      %v1645 = vmax.f32 %v1471, 0.0
      %v1646 = vmax.f32 %v1474, 0.0
      %v1647 = vmax.f32 %v1479, 0.0
      %v1648 = vmax.f32 %v1482, 0.0
      %v1649 = vmax.f32 %v1487, 0.0
      %v1650 = vmax.f32 %v1490, 0.0
      %v1651 = vmax.f32 %v1495, 0.0
      %v1652 = vmax.f32 %v1498, 0.0
      %v1653 = vmax.f32 %v1503, 0.0
      %v1654 = vmax.f32 %v1506, 0.0
      %v1655 = vmax.f32 %v1511, 0.0
      %v1656 = vmax.f32 %v1514, 0.0
      %v1657 = vmax.f32 %v1519, 0.0
      %v1658 = vmax.f32 %v1522, 0.0
      %v1659 = vmax.f32 %v1527, 0.0
      %v1660 = vmax.f32 %v1530, 0.0
      %vm1661 = vcmask 130048
      %1662 = vst.msk [vmem:[%s315] sm:$0xff] %vm1661, %v1533
      %1663 = vst.msk [vmem:[%s315 + $0x8] sm:$0xff] %vm1661, %v1534
      %1664 = vst.msk [vmem:[%s315 + $0x10] sm:$0xff] %vm1661, %v1535
      %1665 = vst.msk [vmem:[%s315 + $0x18] sm:$0xff] %vm1661, %v1536
      %1666 = vst.msk [vmem:[%s315 + $0x20] sm:$0xff] %vm1661, %v1537
      %1667 = vst.msk [vmem:[%s315 + $0x28] sm:$0xff] %vm1661, %v1538
      %1668 = vst.msk [vmem:[%s315 + $0x30] sm:$0xff] %vm1661, %v1539
      %1669 = vst.msk [vmem:[%s315 + $0x38] sm:$0xff] %vm1661, %v1540
      %1670 = vst.msk [vmem:[%s315 + $0x40] sm:$0xff] %vm1661, %v1541
      %1671 = vst.msk [vmem:[%s315 + $0x48] sm:$0xff] %vm1661, %v1542
      %1672 = vst.msk [vmem:[%s315 + $0x50] sm:$0xff] %vm1661, %v1543
      %1673 = vst.msk [vmem:[%s315 + $0x58] sm:$0xff] %vm1661, %v1544
      %1674 = vst.msk [vmem:[%s315 + $0x60] sm:$0xff] %vm1661, %v1545
      %1675 = vst.msk [vmem:[%s315 + $0x68] sm:$0xff] %vm1661, %v1546
      %1676 = vst.msk [vmem:[%s315 + $0x70] sm:$0xff] %vm1661, %v1547
      %1677 = vst.msk [vmem:[%s315 + $0x78] sm:$0xff] %vm1661, %v1548
      %1678 = vst.msk [vmem:[%s315 + $0x80] sm:$0xff] %vm1661, %v1549
      %1679 = vst.msk [vmem:[%s315 + $0x88] sm:$0xff] %vm1661, %v1550
      %1680 = vst.msk [vmem:[%s315 + $0x90] sm:$0xff] %vm1661, %v1551
      %1681 = vst.msk [vmem:[%s315 + $0x98] sm:$0xff] %vm1661, %v1552
      %1682 = vst.msk [vmem:[%s315 + $0xa0] sm:$0xff] %vm1661, %v1553
      %1683 = vst.msk [vmem:[%s315 + $0xa8] sm:$0xff] %vm1661, %v1554
      %1684 = vst.msk [vmem:[%s315 + $0xb0] sm:$0xff] %vm1661, %v1555
      %1685 = vst.msk [vmem:[%s315 + $0xb8] sm:$0xff] %vm1661, %v1556
      %1686 = vst.msk [vmem:[%s315 + $0xc0] sm:$0xff] %vm1661, %v1557
      %1687 = vst.msk [vmem:[%s315 + $0xc8] sm:$0xff] %vm1661, %v1558
      %1688 = vst.msk [vmem:[%s315 + $0xd0] sm:$0xff] %vm1661, %v1559
      %1689 = vst.msk [vmem:[%s315 + $0xd8] sm:$0xff] %vm1661, %v1560
      %1690 = vst.msk [vmem:[%s315 + $0xe0] sm:$0xff] %vm1661, %v1561
      %1691 = vst.msk [vmem:[%s315 + $0xe8] sm:$0xff] %vm1661, %v1562
      %1692 = vst.msk [vmem:[%s315 + $0xf0] sm:$0xff] %vm1661, %v1563
      %1693 = vst.msk [vmem:[%s315 + $0xf8] sm:$0xff] %vm1661, %v1564
      %1694 = vst.msk [vmem:[%s315 + $0x100] sm:$0xff] %vm1661, %v1565
      %1695 = vst.msk [vmem:[%s315 + $0x108] sm:$0xff] %vm1661, %v1566
      %1696 = vst.msk [vmem:[%s315 + $0x110] sm:$0xff] %vm1661, %v1567
      %1697 = vst.msk [vmem:[%s315 + $0x118] sm:$0xff] %vm1661, %v1568
      %1698 = vst.msk [vmem:[%s315 + $0x120] sm:$0xff] %vm1661, %v1569
      %1699 = vst.msk [vmem:[%s315 + $0x128] sm:$0xff] %vm1661, %v1570
      %1700 = vst.msk [vmem:[%s315 + $0x130] sm:$0xff] %vm1661, %v1571
      %1701 = vst.msk [vmem:[%s315 + $0x138] sm:$0xff] %vm1661, %v1572
      %1702 = vst.msk [vmem:[%s315 + $0x140] sm:$0xff] %vm1661, %v1573
      %1703 = vst.msk [vmem:[%s315 + $0x148] sm:$0xff] %vm1661, %v1574
      %1704 = vst.msk [vmem:[%s315 + $0x150] sm:$0xff] %vm1661, %v1575
      %1705 = vst.msk [vmem:[%s315 + $0x158] sm:$0xff] %vm1661, %v1576
      %1706 = vst.msk [vmem:[%s315 + $0x160] sm:$0xff] %vm1661, %v1577
      %1707 = vst.msk [vmem:[%s315 + $0x168] sm:$0xff] %vm1661, %v1578
      %1708 = vst.msk [vmem:[%s315 + $0x170] sm:$0xff] %vm1661, %v1579
      %1709 = vst.msk [vmem:[%s315 + $0x178] sm:$0xff] %vm1661, %v1580
      %1710 = vst.msk [vmem:[%s315 + $0x180] sm:$0xff] %vm1661, %v1581
      %1711 = vst.msk [vmem:[%s315 + $0x188] sm:$0xff] %vm1661, %v1582
      %1712 = vst.msk [vmem:[%s315 + $0x190] sm:$0xff] %vm1661, %v1583
      %1713 = vst.msk [vmem:[%s315 + $0x198] sm:$0xff] %vm1661, %v1584
      %1714 = vst.msk [vmem:[%s315 + $0x1a0] sm:$0xff] %vm1661, %v1585
      %1715 = vst.msk [vmem:[%s315 + $0x1a8] sm:$0xff] %vm1661, %v1586
      %1716 = vst.msk [vmem:[%s315 + $0x1b0] sm:$0xff] %vm1661, %v1587
      %1717 = vst.msk [vmem:[%s315 + $0x1b8] sm:$0xff] %vm1661, %v1588
      %1718 = vst.msk [vmem:[%s315 + $0x1c0] sm:$0xff] %vm1661, %v1589
      %1719 = vst.msk [vmem:[%s315 + $0x1c8] sm:$0xff] %vm1661, %v1590
      %1720 = vst.msk [vmem:[%s315 + $0x1d0] sm:$0xff] %vm1661, %v1591
      %1721 = vst.msk [vmem:[%s315 + $0x1d8] sm:$0xff] %vm1661, %v1592
      %1722 = vst.msk [vmem:[%s315 + $0x1e0] sm:$0xff] %vm1661, %v1593
      %1723 = vst.msk [vmem:[%s315 + $0x1e8] sm:$0xff] %vm1661, %v1594
      %1724 = vst.msk [vmem:[%s315 + $0x1f0] sm:$0xff] %vm1661, %v1595
      %1725 = vst.msk [vmem:[%s315 + $0x1f8] sm:$0xff] %vm1661, %v1596
      %1726 = vst.msk [vmem:[%s315 + $0x200] sm:$0xff] %vm1661, %v1597
      %1727 = vst.msk [vmem:[%s315 + $0x208] sm:$0xff] %vm1661, %v1598
      %1728 = vst.msk [vmem:[%s315 + $0x210] sm:$0xff] %vm1661, %v1599
      %1729 = vst.msk [vmem:[%s315 + $0x218] sm:$0xff] %vm1661, %v1600
      %1730 = vst.msk [vmem:[%s315 + $0x220] sm:$0xff] %vm1661, %v1601
      %1731 = vst.msk [vmem:[%s315 + $0x228] sm:$0xff] %vm1661, %v1602
      %1732 = vst.msk [vmem:[%s315 + $0x230] sm:$0xff] %vm1661, %v1603
      %1733 = vst.msk [vmem:[%s315 + $0x238] sm:$0xff] %vm1661, %v1604
      %1734 = vst.msk [vmem:[%s315 + $0x240] sm:$0xff] %vm1661, %v1605
      %1735 = vst.msk [vmem:[%s315 + $0x248] sm:$0xff] %vm1661, %v1606
      %1736 = vst.msk [vmem:[%s315 + $0x250] sm:$0xff] %vm1661, %v1607
      %1737 = vst.msk [vmem:[%s315 + $0x258] sm:$0xff] %vm1661, %v1608
      %1738 = vst.msk [vmem:[%s315 + $0x260] sm:$0xff] %vm1661, %v1609
      %1739 = vst.msk [vmem:[%s315 + $0x268] sm:$0xff] %vm1661, %v1610
      %1740 = vst.msk [vmem:[%s315 + $0x270] sm:$0xff] %vm1661, %v1611
      %1741 = vst.msk [vmem:[%s315 + $0x278] sm:$0xff] %vm1661, %v1612
      %1742 = vst.msk [vmem:[%s315 + $0x280] sm:$0xff] %vm1661, %v1613
      %1743 = vst.msk [vmem:[%s315 + $0x288] sm:$0xff] %vm1661, %v1614
      %1744 = vst.msk [vmem:[%s315 + $0x290] sm:$0xff] %vm1661, %v1615
      %1745 = vst.msk [vmem:[%s315 + $0x298] sm:$0xff] %vm1661, %v1616
      %1746 = vst.msk [vmem:[%s315 + $0x2a0] sm:$0xff] %vm1661, %v1617
      %1747 = vst.msk [vmem:[%s315 + $0x2a8] sm:$0xff] %vm1661, %v1618
      %1748 = vst.msk [vmem:[%s315 + $0x2b0] sm:$0xff] %vm1661, %v1619
      %1749 = vst.msk [vmem:[%s315 + $0x2b8] sm:$0xff] %vm1661, %v1620
      %1750 = vst.msk [vmem:[%s315 + $0x2c0] sm:$0xff] %vm1661, %v1621
      %1751 = vst.msk [vmem:[%s315 + $0x2c8] sm:$0xff] %vm1661, %v1622
      %1752 = vst.msk [vmem:[%s315 + $0x2d0] sm:$0xff] %vm1661, %v1623
      %1753 = vst.msk [vmem:[%s315 + $0x2d8] sm:$0xff] %vm1661, %v1624
      %1754 = vst.msk [vmem:[%s315 + $0x2e0] sm:$0xff] %vm1661, %v1625
      %1755 = vst.msk [vmem:[%s315 + $0x2e8] sm:$0xff] %vm1661, %v1626
      %1756 = vst.msk [vmem:[%s315 + $0x2f0] sm:$0xff] %vm1661, %v1627
      %1757 = vst.msk [vmem:[%s315 + $0x2f8] sm:$0xff] %vm1661, %v1628
      %1758 = vst.msk [vmem:[%s315 + $0x300] sm:$0xff] %vm1661, %v1629
      %1759 = vst.msk [vmem:[%s315 + $0x308] sm:$0xff] %vm1661, %v1630
      %1760 = vst.msk [vmem:[%s315 + $0x310] sm:$0xff] %vm1661, %v1631
      %1761 = vst.msk [vmem:[%s315 + $0x318] sm:$0xff] %vm1661, %v1632
      %1762 = vst.msk [vmem:[%s315 + $0x320] sm:$0xff] %vm1661, %v1633
      %1763 = vst.msk [vmem:[%s315 + $0x328] sm:$0xff] %vm1661, %v1634
      %1764 = vst.msk [vmem:[%s315 + $0x330] sm:$0xff] %vm1661, %v1635
      %1765 = vst.msk [vmem:[%s315 + $0x338] sm:$0xff] %vm1661, %v1636
      %1766 = vst.msk [vmem:[%s315 + $0x340] sm:$0xff] %vm1661, %v1637
      %1767 = vst.msk [vmem:[%s315 + $0x348] sm:$0xff] %vm1661, %v1638
      %1768 = vst.msk [vmem:[%s315 + $0x350] sm:$0xff] %vm1661, %v1639
      %1769 = vst.msk [vmem:[%s315 + $0x358] sm:$0xff] %vm1661, %v1640
      %1770 = vst.msk [vmem:[%s315 + $0x360] sm:$0xff] %vm1661, %v1641
      %1771 = vst.msk [vmem:[%s315 + $0x368] sm:$0xff] %vm1661, %v1642
      %1772 = vst.msk [vmem:[%s315 + $0x370] sm:$0xff] %vm1661, %v1643
      %1773 = vst.msk [vmem:[%s315 + $0x378] sm:$0xff] %vm1661, %v1644
      %1774 = vst.msk [vmem:[%s315 + $0x380] sm:$0xff] %vm1661, %v1645
      %1775 = vst.msk [vmem:[%s315 + $0x388] sm:$0xff] %vm1661, %v1646
      %1776 = vst.msk [vmem:[%s315 + $0x390] sm:$0xff] %vm1661, %v1647
      %1777 = vst.msk [vmem:[%s315 + $0x398] sm:$0xff] %vm1661, %v1648
      %1778 = vst.msk [vmem:[%s315 + $0x3a0] sm:$0xff] %vm1661, %v1649
      %1779 = vst.msk [vmem:[%s315 + $0x3a8] sm:$0xff] %vm1661, %v1650
      %1780 = vst.msk [vmem:[%s315 + $0x3b0] sm:$0xff] %vm1661, %v1651
      %1781 = vst.msk [vmem:[%s315 + $0x3b8] sm:$0xff] %vm1661, %v1652
      %1782 = vst.msk [vmem:[%s315 + $0x3c0] sm:$0xff] %vm1661, %v1653
      %1783 = vst.msk [vmem:[%s315 + $0x3c8] sm:$0xff] %vm1661, %v1654
      %1784 = vst.msk [vmem:[%s315 + $0x3d0] sm:$0xff] %vm1661, %v1655
      %1785 = vst.msk [vmem:[%s315 + $0x3d8] sm:$0xff] %vm1661, %v1656
      %1786 = vst.msk [vmem:[%s315 + $0x3e0] sm:$0xff] %vm1661, %v1657
      %1787 = vst.msk [vmem:[%s315 + $0x3e8] sm:$0xff] %vm1661, %v1658
      %1788 = vst.msk [vmem:[%s315 + $0x3f0] sm:$0xff] %vm1661, %v1659
      %1789 = vst.msk [vmem:[%s315 + $0x3f8] sm:$0xff] %vm1661, %v1660
      %v1790 = vpack.c.bf16 %v1534, %v1533
      %v1791 = vpack.c.bf16 %v1536, %v1535
      %v1792 = vpack.c.bf16 %v1538, %v1537
      %v1793 = vpack.c.bf16 %v1540, %v1539
      %v1794 = vpack.c.bf16 %v1542, %v1541
      %v1795 = vpack.c.bf16 %v1544, %v1543
      %v1796 = vpack.c.bf16 %v1546, %v1545
      %v1797 = vpack.c.bf16 %v1548, %v1547
      %v1798 = vpack.c.bf16 %v1550, %v1549
      %v1799 = vpack.c.bf16 %v1552, %v1551
      %v1800 = vpack.c.bf16 %v1554, %v1553
      %v1801 = vpack.c.bf16 %v1556, %v1555
      %v1802 = vpack.c.bf16 %v1558, %v1557
      %v1803 = vpack.c.bf16 %v1560, %v1559
      %v1804 = vpack.c.bf16 %v1562, %v1561
      %v1805 = vpack.c.bf16 %v1564, %v1563
      %v1806 = vpack.c.bf16 %v1566, %v1565
      %v1807 = vpack.c.bf16 %v1568, %v1567
      %v1808 = vpack.c.bf16 %v1570, %v1569
      %v1809 = vpack.c.bf16 %v1572, %v1571
      %v1810 = vpack.c.bf16 %v1574, %v1573
      %v1811 = vpack.c.bf16 %v1576, %v1575
      %v1812 = vpack.c.bf16 %v1578, %v1577
      %v1813 = vpack.c.bf16 %v1580, %v1579
      %v1814 = vpack.c.bf16 %v1582, %v1581
      %v1815 = vpack.c.bf16 %v1584, %v1583
      %v1816 = vpack.c.bf16 %v1586, %v1585
      %v1817 = vpack.c.bf16 %v1588, %v1587
      %v1818 = vpack.c.bf16 %v1590, %v1589
      %v1819 = vpack.c.bf16 %v1592, %v1591
      %v1820 = vpack.c.bf16 %v1594, %v1593
      %v1821 = vpack.c.bf16 %v1596, %v1595
      %v1822 = vpack.c.bf16 %v1598, %v1597
      %v1823 = vpack.c.bf16 %v1600, %v1599
      %v1824 = vpack.c.bf16 %v1602, %v1601
      %v1825 = vpack.c.bf16 %v1604, %v1603
      %v1826 = vpack.c.bf16 %v1606, %v1605
      %v1827 = vpack.c.bf16 %v1608, %v1607
      %v1828 = vpack.c.bf16 %v1610, %v1609
      %v1829 = vpack.c.bf16 %v1612, %v1611
      %v1830 = vpack.c.bf16 %v1614, %v1613
      %v1831 = vpack.c.bf16 %v1616, %v1615
      %v1832 = vpack.c.bf16 %v1618, %v1617
      %v1833 = vpack.c.bf16 %v1620, %v1619
      %v1834 = vpack.c.bf16 %v1622, %v1621
      %v1835 = vpack.c.bf16 %v1624, %v1623
      %v1836 = vpack.c.bf16 %v1626, %v1625
      %v1837 = vpack.c.bf16 %v1628, %v1627
      %v1838 = vpack.c.bf16 %v1630, %v1629
      %v1839 = vpack.c.bf16 %v1632, %v1631
      %v1840 = vpack.c.bf16 %v1634, %v1633
      %v1841 = vpack.c.bf16 %v1636, %v1635
      %v1842 = vpack.c.bf16 %v1638, %v1637
      %v1843 = vpack.c.bf16 %v1640, %v1639
      %v1844 = vpack.c.bf16 %v1642, %v1641
      %v1845 = vpack.c.bf16 %v1644, %v1643
      %v1846 = vpack.c.bf16 %v1646, %v1645
      %v1847 = vpack.c.bf16 %v1648, %v1647
      %v1848 = vpack.c.bf16 %v1650, %v1649
      %v1849 = vpack.c.bf16 %v1652, %v1651
      %v1850 = vpack.c.bf16 %v1654, %v1653
      %v1851 = vpack.c.bf16 %v1656, %v1655
      %v1852 = vpack.c.bf16 %v1658, %v1657
      %v1853 = vpack.c.bf16 %v1660, %v1659
      %v1854 = vld [vmem:[%s3] sm:$0xf]
      %v1855 = vld [vmem:[%s3 + $0x4] sm:$0xf]
      %v1856 = vld [vmem:[%s4] sm:$0x1]
      %v1858 = vlaneseq
      %v1859 = vshrl.u32 %v1858, 7
      %v1860 = vsub.s32 0, %v1859
      %v1861 = vrot.slane %v1856, %v1860
      %v1865 = vunpack.c.l.b16 %v1854
      %v1866 = vunpack.c.l.b16 %v1855
      %v1867 = vpack.c.b16 %v1866, %v1865
      %v1870 = vsel %vm1661, %v1790, 0
      %v1873 = vsel %vm1661, %v1791, 0
      %v1876 = vsel %vm1661, %v1792, 0
      %v1879 = vsel %vm1661, %v1793, 0
      %v1882 = vsel %vm1661, %v1794, 0
      %v1885 = vsel %vm1661, %v1795, 0
      %v1888 = vsel %vm1661, %v1796, 0
      %v1891 = vsel %vm1661, %v1797, 0
      %v1894 = vsel %vm1661, %v1798, 0
      %v1897 = vsel %vm1661, %v1799, 0
      %v1900 = vsel %vm1661, %v1800, 0
      %v1903 = vsel %vm1661, %v1801, 0
      %v1906 = vsel %vm1661, %v1802, 0
      %v1909 = vsel %vm1661, %v1803, 0
      %v1912 = vsel %vm1661, %v1804, 0
      %v1915 = vsel %vm1661, %v1805, 0
      %v1918 = vsel %vm1661, %v1806, 0
      %v1921 = vsel %vm1661, %v1807, 0
      %v1924 = vsel %vm1661, %v1808, 0
      %v1927 = vsel %vm1661, %v1809, 0
      %v1930 = vsel %vm1661, %v1810, 0
      %v1933 = vsel %vm1661, %v1811, 0
      %v1936 = vsel %vm1661, %v1812, 0
      %v1939 = vsel %vm1661, %v1813, 0
      %v1942 = vsel %vm1661, %v1814, 0
      %v1945 = vsel %vm1661, %v1815, 0
      %v1948 = vsel %vm1661, %v1816, 0
      %v1951 = vsel %vm1661, %v1817, 0
      %v1954 = vsel %vm1661, %v1818, 0
      %v1957 = vsel %vm1661, %v1819, 0
      %v1960 = vsel %vm1661, %v1820, 0
      %v1963 = vsel %vm1661, %v1821, 0
      %v1966 = vsel %vm1661, %v1822, 0
      %v1969 = vsel %vm1661, %v1823, 0
      %v1972 = vsel %vm1661, %v1824, 0
      %v1975 = vsel %vm1661, %v1825, 0
      %v1978 = vsel %vm1661, %v1826, 0
      %v1981 = vsel %vm1661, %v1827, 0
      %v1984 = vsel %vm1661, %v1828, 0
      %v1987 = vsel %vm1661, %v1829, 0
      %v1990 = vsel %vm1661, %v1830, 0
      %v1993 = vsel %vm1661, %v1831, 0
      %v1996 = vsel %vm1661, %v1832, 0
      %v1999 = vsel %vm1661, %v1833, 0
      %v2002 = vsel %vm1661, %v1834, 0
      %v2005 = vsel %vm1661, %v1835, 0
      %v2008 = vsel %vm1661, %v1836, 0
      %v2011 = vsel %vm1661, %v1837, 0
      %v2014 = vsel %vm1661, %v1838, 0
      %v2017 = vsel %vm1661, %v1839, 0
      %v2020 = vsel %vm1661, %v1840, 0
      %v2023 = vsel %vm1661, %v1841, 0
      %v2026 = vsel %vm1661, %v1842, 0
      %v2029 = vsel %vm1661, %v1843, 0
      %v2032 = vsel %vm1661, %v1844, 0
      %v2035 = vsel %vm1661, %v1845, 0
      %v2038 = vsel %vm1661, %v1846, 0
      %v2041 = vsel %vm1661, %v1847, 0
      %v2044 = vsel %vm1661, %v1848, 0
      %v2047 = vsel %vm1661, %v1849, 0
      %v2050 = vsel %vm1661, %v1850, 0
      %v2053 = vsel %vm1661, %v1851, 0
      %v2056 = vsel %vm1661, %v1852, 0
      %v2059 = vsel %vm1661, %v1853, 0
      %2061 = vmatprep.subr.bf16.mxu0 0
      %2062 = vmatpush1.bf16.msra.mxu0 0
      %2063 = vmatprep.subr.bf16.mxu0 0
      %2064 = vmatpush1.bf16.msra.mxu0 0
      %2065 = vmatprep.subr.bf16.mxu0 0
      %2066 = vmatpush1.bf16.msra.mxu0 0
      %2067 = vmatprep.subr.bf16.mxu0 0
      %2068 = vmatpush1.bf16.msra.mxu0 0
      %2069 = vmatprep.subr.bf16.mxu0 0
      %2070 = vmatpush1.bf16.msra.mxu0 0
      %2071 = vmatprep.subr.bf16.mxu0 0
      %2072 = vmatpush1.bf16.msra.mxu0 0
      %2073 = vmatprep.subr.bf16.mxu0 0
      %2074 = vmatpush1.bf16.msra.mxu0 0
      %2075 = vmatprep.subr.bf16.mxu0 0
      %2076 = vmatpush1.bf16.msra.mxu0 %v1867
      %2077 = vmatprep.subr.bf16.mxu0 0
      %2078 = vmatpush2.bf16.msra.mxu0 0
      %2079 = vmatprep.subr.bf16.mxu0 0
      %2080 = vmatpush2.bf16.msra.mxu0 0
      %2081 = vmatprep.subr.bf16.mxu0 0
      %2082 = vmatpush2.bf16.msra.mxu0 0
      %2083 = vmatprep.subr.bf16.mxu0 0
      %2084 = vmatpush2.bf16.msra.mxu0 0
      %2085 = vmatprep.subr.bf16.mxu0 0
      %2086 = vmatpush2.bf16.msra.mxu0 0
      %2087 = vmatprep.subr.bf16.mxu0 0
      %2088 = vmatpush2.bf16.msra.mxu0 0
      %2089 = vmatprep.subr.bf16.mxu0 0
      %2090 = vmatpush2.bf16.msra.mxu0 0
      %2091 = vmatprep.subr.bf16.mxu0 0
      %2092 = vmatpush2.bf16.msra.mxu0 0
      %2093 = vmatprep.mubr.bf16.mxu0 0
      %2094 = vmatmul.mubr.bf16.gmra.mxu0 %v1870
      %v2095 = vpop.f32.mrf.mxu0
      %v2096 = vadd.f32 %v1861, %v2095
      %v2097 = vpop.f32.mrf.mxu0
      %v2098 = vpop.f32.mrf.mxu0
      %v2099 = vadd.f32 %v1861, %v2098
      %v2100 = vpop.f32.mrf.mxu0
      %2101 = vmatprep.mubr.bf16.mxu0 0
      %2102 = vmatmul.mubr.bf16.gmra.mxu0 %v1873
      %v2103 = vpop.f32.mrf.mxu0
      %v2104 = vadd.f32 %v1861, %v2103
      %v2105 = vpop.f32.mrf.mxu0
      %v2106 = vpop.f32.mrf.mxu0
      %v2107 = vadd.f32 %v1861, %v2106
      %v2108 = vpop.f32.mrf.mxu0
      %2109 = vmatprep.mubr.bf16.mxu0 0
      %2110 = vmatmul.mubr.bf16.gmra.mxu0 %v1876
      %v2111 = vpop.f32.mrf.mxu0
      %v2112 = vadd.f32 %v1861, %v2111
      %v2113 = vpop.f32.mrf.mxu0
      %v2114 = vpop.f32.mrf.mxu0
      %v2115 = vadd.f32 %v1861, %v2114
      %v2116 = vpop.f32.mrf.mxu0
      %2117 = vmatprep.mubr.bf16.mxu0 0
      %2118 = vmatmul.mubr.bf16.gmra.mxu0 %v1879
      %v2119 = vpop.f32.mrf.mxu0
      %v2120 = vadd.f32 %v1861, %v2119
      %v2121 = vpop.f32.mrf.mxu0
      %v2122 = vpop.f32.mrf.mxu0
      %v2123 = vadd.f32 %v1861, %v2122
      %v2124 = vpop.f32.mrf.mxu0
      %2125 = vmatprep.mubr.bf16.mxu0 0
      %2126 = vmatmul.mubr.bf16.gmra.mxu0 %v1882
      %v2127 = vpop.f32.mrf.mxu0
      %v2128 = vadd.f32 %v1861, %v2127
      %v2129 = vpop.f32.mrf.mxu0
      %v2130 = vpop.f32.mrf.mxu0
      %v2131 = vadd.f32 %v1861, %v2130
      %v2132 = vpop.f32.mrf.mxu0
      %2133 = vmatprep.mubr.bf16.mxu0 0
      %2134 = vmatmul.mubr.bf16.gmra.mxu0 %v1885
      %v2135 = vpop.f32.mrf.mxu0
      %v2136 = vadd.f32 %v1861, %v2135
      %v2137 = vpop.f32.mrf.mxu0
      %v2138 = vpop.f32.mrf.mxu0
      %v2139 = vadd.f32 %v1861, %v2138
      %v2140 = vpop.f32.mrf.mxu0
      %2141 = vmatprep.mubr.bf16.mxu0 0
      %2142 = vmatmul.mubr.bf16.gmra.mxu0 %v1888
      %v2143 = vpop.f32.mrf.mxu0
      %v2144 = vadd.f32 %v1861, %v2143
      %v2145 = vpop.f32.mrf.mxu0
      %v2146 = vpop.f32.mrf.mxu0
      %v2147 = vadd.f32 %v1861, %v2146
      %v2148 = vpop.f32.mrf.mxu0
      %2149 = vmatprep.mubr.bf16.mxu0 0
      %2150 = vmatmul.mubr.bf16.gmra.mxu0 %v1891
      %v2151 = vpop.f32.mrf.mxu0
      %v2152 = vadd.f32 %v1861, %v2151
      %v2153 = vpop.f32.mrf.mxu0
      %v2154 = vpop.f32.mrf.mxu0
      %v2155 = vadd.f32 %v1861, %v2154
      %v2156 = vpop.f32.mrf.mxu0
      %2157 = vmatprep.mubr.bf16.mxu0 0
      %2158 = vmatmul.mubr.bf16.gmra.mxu0 %v1894
      %v2159 = vpop.f32.mrf.mxu0
      %v2160 = vadd.f32 %v1861, %v2159
      %v2161 = vpop.f32.mrf.mxu0
      %v2162 = vpop.f32.mrf.mxu0
      %v2163 = vadd.f32 %v1861, %v2162
      %v2164 = vpop.f32.mrf.mxu0
      %2165 = vmatprep.mubr.bf16.mxu0 0
      %2166 = vmatmul.mubr.bf16.gmra.mxu0 %v1897
      %v2167 = vpop.f32.mrf.mxu0
      %v2168 = vadd.f32 %v1861, %v2167
      %v2169 = vpop.f32.mrf.mxu0
      %v2170 = vpop.f32.mrf.mxu0
      %v2171 = vadd.f32 %v1861, %v2170
      %v2172 = vpop.f32.mrf.mxu0
      %2173 = vmatprep.mubr.bf16.mxu0 0
      %2174 = vmatmul.mubr.bf16.gmra.mxu0 %v1900
      %v2175 = vpop.f32.mrf.mxu0
      %v2176 = vadd.f32 %v1861, %v2175
      %v2177 = vpop.f32.mrf.mxu0
      %v2178 = vpop.f32.mrf.mxu0
      %v2179 = vadd.f32 %v1861, %v2178
      %v2180 = vpop.f32.mrf.mxu0
      %2181 = vmatprep.mubr.bf16.mxu0 0
      %2182 = vmatmul.mubr.bf16.gmra.mxu0 %v1903
      %v2183 = vpop.f32.mrf.mxu0
      %v2184 = vadd.f32 %v1861, %v2183
      %v2185 = vpop.f32.mrf.mxu0
      %v2186 = vpop.f32.mrf.mxu0
      %v2187 = vadd.f32 %v1861, %v2186
      %v2188 = vpop.f32.mrf.mxu0
      %2189 = vmatprep.mubr.bf16.mxu0 0
      %2190 = vmatmul.mubr.bf16.gmra.mxu0 %v1906
      %v2191 = vpop.f32.mrf.mxu0
      %v2192 = vadd.f32 %v1861, %v2191
      %v2193 = vpop.f32.mrf.mxu0
      %v2194 = vpop.f32.mrf.mxu0
      %v2195 = vadd.f32 %v1861, %v2194
      %v2196 = vpop.f32.mrf.mxu0
      %2197 = vmatprep.mubr.bf16.mxu0 0
      %2198 = vmatmul.mubr.bf16.gmra.mxu0 %v1909
      %v2199 = vpop.f32.mrf.mxu0
      %v2200 = vadd.f32 %v1861, %v2199
      %v2201 = vpop.f32.mrf.mxu0
      %v2202 = vpop.f32.mrf.mxu0
      %v2203 = vadd.f32 %v1861, %v2202
      %v2204 = vpop.f32.mrf.mxu0
      %2205 = vmatprep.mubr.bf16.mxu0 0
      %2206 = vmatmul.mubr.bf16.gmra.mxu0 %v1912
      %v2207 = vpop.f32.mrf.mxu0
      %v2208 = vadd.f32 %v1861, %v2207
      %v2209 = vpop.f32.mrf.mxu0
      %v2210 = vpop.f32.mrf.mxu0
      %v2211 = vadd.f32 %v1861, %v2210
      %v2212 = vpop.f32.mrf.mxu0
      %2213 = vmatprep.mubr.bf16.mxu0 0
      %2214 = vmatmul.mubr.bf16.gmra.mxu0 %v1915
      %v2215 = vpop.f32.mrf.mxu0
      %v2216 = vadd.f32 %v1861, %v2215
      %v2217 = vpop.f32.mrf.mxu0
      %v2218 = vpop.f32.mrf.mxu0
      %v2219 = vadd.f32 %v1861, %v2218
      %v2220 = vpop.f32.mrf.mxu0
      %2221 = vmatprep.mubr.bf16.mxu0 0
      %2222 = vmatmul.mubr.bf16.gmra.mxu0 %v1918
      %v2223 = vpop.f32.mrf.mxu0
      %v2224 = vadd.f32 %v1861, %v2223
      %v2225 = vpop.f32.mrf.mxu0
      %v2226 = vpop.f32.mrf.mxu0
      %v2227 = vadd.f32 %v1861, %v2226
      %v2228 = vpop.f32.mrf.mxu0
      %2229 = vmatprep.mubr.bf16.mxu0 0
      %2230 = vmatmul.mubr.bf16.gmra.mxu0 %v1921
      %v2231 = vpop.f32.mrf.mxu0
      %v2232 = vadd.f32 %v1861, %v2231
      %v2233 = vpop.f32.mrf.mxu0
      %v2234 = vpop.f32.mrf.mxu0
      %v2235 = vadd.f32 %v1861, %v2234
      %v2236 = vpop.f32.mrf.mxu0
      %2237 = vmatprep.mubr.bf16.mxu0 0
      %2238 = vmatmul.mubr.bf16.gmra.mxu0 %v1924
      %v2239 = vpop.f32.mrf.mxu0
      %v2240 = vadd.f32 %v1861, %v2239
      %v2241 = vpop.f32.mrf.mxu0
      %v2242 = vpop.f32.mrf.mxu0
      %v2243 = vadd.f32 %v1861, %v2242
      %v2244 = vpop.f32.mrf.mxu0
      %2245 = vmatprep.mubr.bf16.mxu0 0
      %2246 = vmatmul.mubr.bf16.gmra.mxu0 %v1927
      %v2247 = vpop.f32.mrf.mxu0
      %v2248 = vadd.f32 %v1861, %v2247
      %v2249 = vpop.f32.mrf.mxu0
      %v2250 = vpop.f32.mrf.mxu0
      %v2251 = vadd.f32 %v1861, %v2250
      %v2252 = vpop.f32.mrf.mxu0
      %2253 = vmatprep.mubr.bf16.mxu0 0
      %2254 = vmatmul.mubr.bf16.gmra.mxu0 %v1930
      %v2255 = vpop.f32.mrf.mxu0
      %v2256 = vadd.f32 %v1861, %v2255
      %v2257 = vpop.f32.mrf.mxu0
      %v2258 = vpop.f32.mrf.mxu0
      %v2259 = vadd.f32 %v1861, %v2258
      %v2260 = vpop.f32.mrf.mxu0
      %2261 = vmatprep.mubr.bf16.mxu0 0
      %2262 = vmatmul.mubr.bf16.gmra.mxu0 %v1933
      %v2263 = vpop.f32.mrf.mxu0
      %v2264 = vadd.f32 %v1861, %v2263
      %v2265 = vpop.f32.mrf.mxu0
      %v2266 = vpop.f32.mrf.mxu0
      %v2267 = vadd.f32 %v1861, %v2266
      %v2268 = vpop.f32.mrf.mxu0
      %2269 = vmatprep.mubr.bf16.mxu0 0
      %2270 = vmatmul.mubr.bf16.gmra.mxu0 %v1936
      %v2271 = vpop.f32.mrf.mxu0
      %v2272 = vadd.f32 %v1861, %v2271
      %v2273 = vpop.f32.mrf.mxu0
      %v2274 = vpop.f32.mrf.mxu0
      %v2275 = vadd.f32 %v1861, %v2274
      %v2276 = vpop.f32.mrf.mxu0
      %2277 = vmatprep.mubr.bf16.mxu0 0
      %2278 = vmatmul.mubr.bf16.gmra.mxu0 %v1939
      %v2279 = vpop.f32.mrf.mxu0
      %v2280 = vadd.f32 %v1861, %v2279
      %v2281 = vpop.f32.mrf.mxu0
      %v2282 = vpop.f32.mrf.mxu0
      %v2283 = vadd.f32 %v1861, %v2282
      %v2284 = vpop.f32.mrf.mxu0
      %2285 = vmatprep.mubr.bf16.mxu0 0
      %2286 = vmatmul.mubr.bf16.gmra.mxu0 %v1942
      %v2287 = vpop.f32.mrf.mxu0
      %v2288 = vadd.f32 %v1861, %v2287
      %v2289 = vpop.f32.mrf.mxu0
      %v2290 = vpop.f32.mrf.mxu0
      %v2291 = vadd.f32 %v1861, %v2290
      %v2292 = vpop.f32.mrf.mxu0
      %2293 = vmatprep.mubr.bf16.mxu0 0
      %2294 = vmatmul.mubr.bf16.gmra.mxu0 %v1945
      %v2295 = vpop.f32.mrf.mxu0
      %v2296 = vadd.f32 %v1861, %v2295
      %v2297 = vpop.f32.mrf.mxu0
      %v2298 = vpop.f32.mrf.mxu0
      %v2299 = vadd.f32 %v1861, %v2298
      %v2300 = vpop.f32.mrf.mxu0
      %2301 = vmatprep.mubr.bf16.mxu0 0
      %2302 = vmatmul.mubr.bf16.gmra.mxu0 %v1948
      %v2303 = vpop.f32.mrf.mxu0
      %v2304 = vadd.f32 %v1861, %v2303
      %v2305 = vpop.f32.mrf.mxu0
      %v2306 = vpop.f32.mrf.mxu0
      %v2307 = vadd.f32 %v1861, %v2306
      %v2308 = vpop.f32.mrf.mxu0
      %2309 = vmatprep.mubr.bf16.mxu0 0
      %2310 = vmatmul.mubr.bf16.gmra.mxu0 %v1951
      %v2311 = vpop.f32.mrf.mxu0
      %v2312 = vadd.f32 %v1861, %v2311
      %v2313 = vpop.f32.mrf.mxu0
      %v2314 = vpop.f32.mrf.mxu0
      %v2315 = vadd.f32 %v1861, %v2314
      %v2316 = vpop.f32.mrf.mxu0
      %2317 = vmatprep.mubr.bf16.mxu0 0
      %2318 = vmatmul.mubr.bf16.gmra.mxu0 %v1954
      %v2319 = vpop.f32.mrf.mxu0
      %v2320 = vadd.f32 %v1861, %v2319
      %v2321 = vpop.f32.mrf.mxu0
      %v2322 = vpop.f32.mrf.mxu0
      %v2323 = vadd.f32 %v1861, %v2322
      %v2324 = vpop.f32.mrf.mxu0
      %2325 = vmatprep.mubr.bf16.mxu0 0
      %2326 = vmatmul.mubr.bf16.gmra.mxu0 %v1957
      %v2327 = vpop.f32.mrf.mxu0
      %v2328 = vadd.f32 %v1861, %v2327
      %v2329 = vpop.f32.mrf.mxu0
      %v2330 = vpop.f32.mrf.mxu0
      %v2331 = vadd.f32 %v1861, %v2330
      %v2332 = vpop.f32.mrf.mxu0
      %2333 = vmatprep.mubr.bf16.mxu0 0
      %2334 = vmatmul.mubr.bf16.gmra.mxu0 %v1960
      %v2335 = vpop.f32.mrf.mxu0
      %v2336 = vadd.f32 %v1861, %v2335
      %v2337 = vpop.f32.mrf.mxu0
      %v2338 = vpop.f32.mrf.mxu0
      %v2339 = vadd.f32 %v1861, %v2338
      %v2340 = vpop.f32.mrf.mxu0
      %2341 = vmatprep.mubr.bf16.mxu0 0
      %2342 = vmatmul.mubr.bf16.gmra.mxu0 %v1963
      %v2343 = vpop.f32.mrf.mxu0
      %v2344 = vadd.f32 %v1861, %v2343
      %v2345 = vpop.f32.mrf.mxu0
      %v2346 = vpop.f32.mrf.mxu0
      %v2347 = vadd.f32 %v1861, %v2346
      %v2348 = vpop.f32.mrf.mxu0
      %2349 = vmatprep.mubr.bf16.mxu0 0
      %2350 = vmatmul.mubr.bf16.gmra.mxu0 %v1966
      %v2351 = vpop.f32.mrf.mxu0
      %v2352 = vadd.f32 %v1861, %v2351
      %v2353 = vpop.f32.mrf.mxu0
      %v2354 = vpop.f32.mrf.mxu0
      %v2355 = vadd.f32 %v1861, %v2354
      %v2356 = vpop.f32.mrf.mxu0
      %2357 = vmatprep.mubr.bf16.mxu0 0
      %2358 = vmatmul.mubr.bf16.gmra.mxu0 %v1969
      %v2359 = vpop.f32.mrf.mxu0
      %v2360 = vadd.f32 %v1861, %v2359
      %v2361 = vpop.f32.mrf.mxu0
      %v2362 = vpop.f32.mrf.mxu0
      %v2363 = vadd.f32 %v1861, %v2362
      %v2364 = vpop.f32.mrf.mxu0
      %2365 = vmatprep.mubr.bf16.mxu0 0
      %2366 = vmatmul.mubr.bf16.gmra.mxu0 %v1972
      %v2367 = vpop.f32.mrf.mxu0
      %v2368 = vadd.f32 %v1861, %v2367
      %v2369 = vpop.f32.mrf.mxu0
      %v2370 = vpop.f32.mrf.mxu0
      %v2371 = vadd.f32 %v1861, %v2370
      %v2372 = vpop.f32.mrf.mxu0
      %2373 = vmatprep.mubr.bf16.mxu0 0
      %2374 = vmatmul.mubr.bf16.gmra.mxu0 %v1975
      %v2375 = vpop.f32.mrf.mxu0
      %v2376 = vadd.f32 %v1861, %v2375
      %v2377 = vpop.f32.mrf.mxu0
      %v2378 = vpop.f32.mrf.mxu0
      %v2379 = vadd.f32 %v1861, %v2378
      %v2380 = vpop.f32.mrf.mxu0
      %2381 = vmatprep.mubr.bf16.mxu0 0
      %2382 = vmatmul.mubr.bf16.gmra.mxu0 %v1978
      %v2383 = vpop.f32.mrf.mxu0
      %v2384 = vadd.f32 %v1861, %v2383
      %v2385 = vpop.f32.mrf.mxu0
      %v2386 = vpop.f32.mrf.mxu0
      %v2387 = vadd.f32 %v1861, %v2386
      %v2388 = vpop.f32.mrf.mxu0
      %2389 = vmatprep.mubr.bf16.mxu0 0
      %2390 = vmatmul.mubr.bf16.gmra.mxu0 %v1981
      %v2391 = vpop.f32.mrf.mxu0
      %v2392 = vadd.f32 %v1861, %v2391
      %v2393 = vpop.f32.mrf.mxu0
      %v2394 = vpop.f32.mrf.mxu0
      %v2395 = vadd.f32 %v1861, %v2394
      %v2396 = vpop.f32.mrf.mxu0
      %2397 = vmatprep.mubr.bf16.mxu0 0
      %2398 = vmatmul.mubr.bf16.gmra.mxu0 %v1984
      %v2399 = vpop.f32.mrf.mxu0
      %v2400 = vadd.f32 %v1861, %v2399
      %v2401 = vpop.f32.mrf.mxu0
      %v2402 = vpop.f32.mrf.mxu0
      %v2403 = vadd.f32 %v1861, %v2402
      %v2404 = vpop.f32.mrf.mxu0
      %2405 = vmatprep.mubr.bf16.mxu0 0
      %2406 = vmatmul.mubr.bf16.gmra.mxu0 %v1987
      %v2407 = vpop.f32.mrf.mxu0
      %v2408 = vadd.f32 %v1861, %v2407
      %v2409 = vpop.f32.mrf.mxu0
      %v2410 = vpop.f32.mrf.mxu0
      %v2411 = vadd.f32 %v1861, %v2410
      %v2412 = vpop.f32.mrf.mxu0
      %2413 = vmatprep.mubr.bf16.mxu0 0
      %2414 = vmatmul.mubr.bf16.gmra.mxu0 %v1990
      %v2415 = vpop.f32.mrf.mxu0
      %v2416 = vadd.f32 %v1861, %v2415
      %v2417 = vpop.f32.mrf.mxu0
      %v2418 = vpop.f32.mrf.mxu0
      %v2419 = vadd.f32 %v1861, %v2418
      %v2420 = vpop.f32.mrf.mxu0
      %2421 = vmatprep.mubr.bf16.mxu0 0
      %2422 = vmatmul.mubr.bf16.gmra.mxu0 %v1993
      %v2423 = vpop.f32.mrf.mxu0
      %v2424 = vadd.f32 %v1861, %v2423
      %v2425 = vpop.f32.mrf.mxu0
      %v2426 = vpop.f32.mrf.mxu0
      %v2427 = vadd.f32 %v1861, %v2426
      %v2428 = vpop.f32.mrf.mxu0
      %2429 = vmatprep.mubr.bf16.mxu0 0
      %2430 = vmatmul.mubr.bf16.gmra.mxu0 %v1996
      %v2431 = vpop.f32.mrf.mxu0
      %v2432 = vadd.f32 %v1861, %v2431
      %v2433 = vpop.f32.mrf.mxu0
      %v2434 = vpop.f32.mrf.mxu0
      %v2435 = vadd.f32 %v1861, %v2434
      %v2436 = vpop.f32.mrf.mxu0
      %2437 = vmatprep.mubr.bf16.mxu0 0
      %2438 = vmatmul.mubr.bf16.gmra.mxu0 %v1999
      %v2439 = vpop.f32.mrf.mxu0
      %v2440 = vadd.f32 %v1861, %v2439
      %v2441 = vpop.f32.mrf.mxu0
      %v2442 = vpop.f32.mrf.mxu0
      %v2443 = vadd.f32 %v1861, %v2442
      %v2444 = vpop.f32.mrf.mxu0
      %2445 = vmatprep.mubr.bf16.mxu0 0
      %2446 = vmatmul.mubr.bf16.gmra.mxu0 %v2002
      %v2447 = vpop.f32.mrf.mxu0
      %v2448 = vadd.f32 %v1861, %v2447
      %v2449 = vpop.f32.mrf.mxu0
      %v2450 = vpop.f32.mrf.mxu0
      %v2451 = vadd.f32 %v1861, %v2450
      %v2452 = vpop.f32.mrf.mxu0
      %2453 = vmatprep.mubr.bf16.mxu0 0
      %2454 = vmatmul.mubr.bf16.gmra.mxu0 %v2005
      %v2455 = vpop.f32.mrf.mxu0
      %v2456 = vadd.f32 %v1861, %v2455
      %v2457 = vpop.f32.mrf.mxu0
      %v2458 = vpop.f32.mrf.mxu0
      %v2459 = vadd.f32 %v1861, %v2458
      %v2460 = vpop.f32.mrf.mxu0
      %2461 = vmatprep.mubr.bf16.mxu0 0
      %2462 = vmatmul.mubr.bf16.gmra.mxu0 %v2008
      %v2463 = vpop.f32.mrf.mxu0
      %v2464 = vadd.f32 %v1861, %v2463
      %v2465 = vpop.f32.mrf.mxu0
      %v2466 = vpop.f32.mrf.mxu0
      %v2467 = vadd.f32 %v1861, %v2466
      %v2468 = vpop.f32.mrf.mxu0
      %2469 = vmatprep.mubr.bf16.mxu0 0
      %2470 = vmatmul.mubr.bf16.gmra.mxu0 %v2011
      %v2471 = vpop.f32.mrf.mxu0
      %v2472 = vadd.f32 %v1861, %v2471
      %v2473 = vpop.f32.mrf.mxu0
      %v2474 = vpop.f32.mrf.mxu0
      %v2475 = vadd.f32 %v1861, %v2474
      %v2476 = vpop.f32.mrf.mxu0
      %2477 = vmatprep.mubr.bf16.mxu0 0
      %2478 = vmatmul.mubr.bf16.gmra.mxu0 %v2014
      %v2479 = vpop.f32.mrf.mxu0
      %v2480 = vadd.f32 %v1861, %v2479
      %v2481 = vpop.f32.mrf.mxu0
      %v2482 = vpop.f32.mrf.mxu0
      %v2483 = vadd.f32 %v1861, %v2482
      %v2484 = vpop.f32.mrf.mxu0
      %2485 = vmatprep.mubr.bf16.mxu0 0
      %2486 = vmatmul.mubr.bf16.gmra.mxu0 %v2017
      %v2487 = vpop.f32.mrf.mxu0
      %v2488 = vadd.f32 %v1861, %v2487
      %v2489 = vpop.f32.mrf.mxu0
      %v2490 = vpop.f32.mrf.mxu0
      %v2491 = vadd.f32 %v1861, %v2490
      %v2492 = vpop.f32.mrf.mxu0
      %2493 = vmatprep.mubr.bf16.mxu0 0
      %2494 = vmatmul.mubr.bf16.gmra.mxu0 %v2020
      %v2495 = vpop.f32.mrf.mxu0
      %v2496 = vadd.f32 %v1861, %v2495
      %v2497 = vpop.f32.mrf.mxu0
      %v2498 = vpop.f32.mrf.mxu0
      %v2499 = vadd.f32 %v1861, %v2498
      %v2500 = vpop.f32.mrf.mxu0
      %2501 = vmatprep.mubr.bf16.mxu0 0
      %2502 = vmatmul.mubr.bf16.gmra.mxu0 %v2023
      %v2503 = vpop.f32.mrf.mxu0
      %v2504 = vadd.f32 %v1861, %v2503
      %v2505 = vpop.f32.mrf.mxu0
      %v2506 = vpop.f32.mrf.mxu0
      %v2507 = vadd.f32 %v1861, %v2506
      %v2508 = vpop.f32.mrf.mxu0
      %2509 = vmatprep.mubr.bf16.mxu0 0
      %2510 = vmatmul.mubr.bf16.gmra.mxu0 %v2026
      %v2511 = vpop.f32.mrf.mxu0
      %v2512 = vadd.f32 %v1861, %v2511
      %v2513 = vpop.f32.mrf.mxu0
      %v2514 = vpop.f32.mrf.mxu0
      %v2515 = vadd.f32 %v1861, %v2514
      %v2516 = vpop.f32.mrf.mxu0
      %2517 = vmatprep.mubr.bf16.mxu0 0
      %2518 = vmatmul.mubr.bf16.gmra.mxu0 %v2029
      %v2519 = vpop.f32.mrf.mxu0
      %v2520 = vadd.f32 %v1861, %v2519
      %v2521 = vpop.f32.mrf.mxu0
      %v2522 = vpop.f32.mrf.mxu0
      %v2523 = vadd.f32 %v1861, %v2522
      %v2524 = vpop.f32.mrf.mxu0
      %2525 = vmatprep.mubr.bf16.mxu0 0
      %2526 = vmatmul.mubr.bf16.gmra.mxu0 %v2032
      %v2527 = vpop.f32.mrf.mxu0
      %v2528 = vadd.f32 %v1861, %v2527
      %v2529 = vpop.f32.mrf.mxu0
      %v2530 = vpop.f32.mrf.mxu0
      %v2531 = vadd.f32 %v1861, %v2530
      %v2532 = vpop.f32.mrf.mxu0
      %2533 = vmatprep.mubr.bf16.mxu0 0
      %2534 = vmatmul.mubr.bf16.gmra.mxu0 %v2035
      %v2535 = vpop.f32.mrf.mxu0
      %v2536 = vadd.f32 %v1861, %v2535
      %v2537 = vpop.f32.mrf.mxu0
      %v2538 = vpop.f32.mrf.mxu0
      %v2539 = vadd.f32 %v1861, %v2538
      %v2540 = vpop.f32.mrf.mxu0
      %2541 = vmatprep.mubr.bf16.mxu0 0
      %2542 = vmatmul.mubr.bf16.gmra.mxu0 %v2038
      %v2543 = vpop.f32.mrf.mxu0
      %v2544 = vadd.f32 %v1861, %v2543
      %v2545 = vpop.f32.mrf.mxu0
      %v2546 = vpop.f32.mrf.mxu0
      %v2547 = vadd.f32 %v1861, %v2546
      %v2548 = vpop.f32.mrf.mxu0
      %2549 = vmatprep.mubr.bf16.mxu0 0
      %2550 = vmatmul.mubr.bf16.gmra.mxu0 %v2041
      %v2551 = vpop.f32.mrf.mxu0
      %v2552 = vadd.f32 %v1861, %v2551
      %v2553 = vpop.f32.mrf.mxu0
      %v2554 = vpop.f32.mrf.mxu0
      %v2555 = vadd.f32 %v1861, %v2554
      %v2556 = vpop.f32.mrf.mxu0
      %2557 = vmatprep.mubr.bf16.mxu0 0
      %2558 = vmatmul.mubr.bf16.gmra.mxu0 %v2044
      %v2559 = vpop.f32.mrf.mxu0
      %v2560 = vadd.f32 %v1861, %v2559
      %v2561 = vpop.f32.mrf.mxu0
      %v2562 = vpop.f32.mrf.mxu0
      %v2563 = vadd.f32 %v1861, %v2562
      %v2564 = vpop.f32.mrf.mxu0
      %2565 = vmatprep.mubr.bf16.mxu0 0
      %2566 = vmatmul.mubr.bf16.gmra.mxu0 %v2047
      %v2567 = vpop.f32.mrf.mxu0
      %v2568 = vadd.f32 %v1861, %v2567
      %v2569 = vpop.f32.mrf.mxu0
      %v2570 = vpop.f32.mrf.mxu0
      %v2571 = vadd.f32 %v1861, %v2570
      %v2572 = vpop.f32.mrf.mxu0
      %2573 = vmatprep.mubr.bf16.mxu0 0
      %2574 = vmatmul.mubr.bf16.gmra.mxu0 %v2050
      %v2575 = vpop.f32.mrf.mxu0
      %v2576 = vadd.f32 %v1861, %v2575
      %v2577 = vpop.f32.mrf.mxu0
      %v2578 = vpop.f32.mrf.mxu0
      %v2579 = vadd.f32 %v1861, %v2578
      %v2580 = vpop.f32.mrf.mxu0
      %2581 = vmatprep.mubr.bf16.mxu0 0
      %2582 = vmatmul.mubr.bf16.gmra.mxu0 %v2053
      %v2583 = vpop.f32.mrf.mxu0
      %v2584 = vadd.f32 %v1861, %v2583
      %v2585 = vpop.f32.mrf.mxu0
      %v2586 = vpop.f32.mrf.mxu0
      %v2587 = vadd.f32 %v1861, %v2586
      %v2588 = vpop.f32.mrf.mxu0
      %2589 = vmatprep.mubr.bf16.mxu0 0
      %2590 = vmatmul.mubr.bf16.gmra.mxu0 %v2056
      %v2591 = vpop.f32.mrf.mxu0
      %v2592 = vadd.f32 %v1861, %v2591
      %v2593 = vpop.f32.mrf.mxu0
      %v2594 = vpop.f32.mrf.mxu0
      %v2595 = vadd.f32 %v1861, %v2594
      %v2596 = vpop.f32.mrf.mxu0
      %2597 = vmatprep.mubr.bf16.mxu0 0
      %2598 = vmatmul.mubr.bf16.gmra.mxu0 %v2059
      %v2599 = vpop.f32.mrf.mxu0
      %v2600 = vadd.f32 %v1861, %v2599
      %v2601 = vpop.f32.mrf.mxu0
      %v2602 = vpop.f32.mrf.mxu0
      %v2603 = vadd.f32 %v1861, %v2602
      %v2604 = vpop.f32.mrf.mxu0
      %2605 = vdwg.mxu0
      %v2606 = vmax.f32 %v2096, 0.0
      %v2607 = vmax.f32 %v2099, 0.0
      %v2608 = vmax.f32 %v2104, 0.0
      %v2609 = vmax.f32 %v2107, 0.0
      %v2610 = vmax.f32 %v2112, 0.0
      %v2611 = vmax.f32 %v2115, 0.0
      %v2612 = vmax.f32 %v2120, 0.0
      %v2613 = vmax.f32 %v2123, 0.0
      %v2614 = vmax.f32 %v2128, 0.0
      %v2615 = vmax.f32 %v2131, 0.0
      %v2616 = vmax.f32 %v2136, 0.0
      %v2617 = vmax.f32 %v2139, 0.0
      %v2618 = vmax.f32 %v2144, 0.0
      %v2619 = vmax.f32 %v2147, 0.0
      %v2620 = vmax.f32 %v2152, 0.0
      %v2621 = vmax.f32 %v2155, 0.0
      %v2622 = vmax.f32 %v2160, 0.0
      %v2623 = vmax.f32 %v2163, 0.0
      %v2624 = vmax.f32 %v2168, 0.0
      %v2625 = vmax.f32 %v2171, 0.0
      %v2626 = vmax.f32 %v2176, 0.0
      %v2627 = vmax.f32 %v2179, 0.0
      %v2628 = vmax.f32 %v2184, 0.0
      %v2629 = vmax.f32 %v2187, 0.0
      %v2630 = vmax.f32 %v2192, 0.0
      %v2631 = vmax.f32 %v2195, 0.0
      %v2632 = vmax.f32 %v2200, 0.0
      %v2633 = vmax.f32 %v2203, 0.0
      %v2634 = vmax.f32 %v2208, 0.0
      %v2635 = vmax.f32 %v2211, 0.0
      %v2636 = vmax.f32 %v2216, 0.0
      %v2637 = vmax.f32 %v2219, 0.0
      %v2638 = vmax.f32 %v2224, 0.0
      %v2639 = vmax.f32 %v2227, 0.0
      %v2640 = vmax.f32 %v2232, 0.0
      %v2641 = vmax.f32 %v2235, 0.0
      %v2642 = vmax.f32 %v2240, 0.0
      %v2643 = vmax.f32 %v2243, 0.0
      %v2644 = vmax.f32 %v2248, 0.0
      %v2645 = vmax.f32 %v2251, 0.0
      %v2646 = vmax.f32 %v2256, 0.0
      %v2647 = vmax.f32 %v2259, 0.0
      %v2648 = vmax.f32 %v2264, 0.0
      %v2649 = vmax.f32 %v2267, 0.0
      %v2650 = vmax.f32 %v2272, 0.0
      %v2651 = vmax.f32 %v2275, 0.0
      %v2652 = vmax.f32 %v2280, 0.0
      %v2653 = vmax.f32 %v2283, 0.0
      %v2654 = vmax.f32 %v2288, 0.0
      %v2655 = vmax.f32 %v2291, 0.0
      %v2656 = vmax.f32 %v2296, 0.0
      %v2657 = vmax.f32 %v2299, 0.0
      %v2658 = vmax.f32 %v2304, 0.0
      %v2659 = vmax.f32 %v2307, 0.0
      %v2660 = vmax.f32 %v2312, 0.0
      %v2661 = vmax.f32 %v2315, 0.0
      %v2662 = vmax.f32 %v2320, 0.0
      %v2663 = vmax.f32 %v2323, 0.0
      %v2664 = vmax.f32 %v2328, 0.0
      %v2665 = vmax.f32 %v2331, 0.0
      %v2666 = vmax.f32 %v2336, 0.0
      %v2667 = vmax.f32 %v2339, 0.0
      %v2668 = vmax.f32 %v2344, 0.0
      %v2669 = vmax.f32 %v2347, 0.0
      %v2670 = vmax.f32 %v2352, 0.0
      %v2671 = vmax.f32 %v2355, 0.0
      %v2672 = vmax.f32 %v2360, 0.0
      %v2673 = vmax.f32 %v2363, 0.0
      %v2674 = vmax.f32 %v2368, 0.0
      %v2675 = vmax.f32 %v2371, 0.0
      %v2676 = vmax.f32 %v2376, 0.0
      %v2677 = vmax.f32 %v2379, 0.0
      %v2678 = vmax.f32 %v2384, 0.0
      %v2679 = vmax.f32 %v2387, 0.0
      %v2680 = vmax.f32 %v2392, 0.0
      %v2681 = vmax.f32 %v2395, 0.0
      %v2682 = vmax.f32 %v2400, 0.0
      %v2683 = vmax.f32 %v2403, 0.0
      %v2684 = vmax.f32 %v2408, 0.0
      %v2685 = vmax.f32 %v2411, 0.0
      %v2686 = vmax.f32 %v2416, 0.0
      %v2687 = vmax.f32 %v2419, 0.0
      %v2688 = vmax.f32 %v2424, 0.0
      %v2689 = vmax.f32 %v2427, 0.0
      %v2690 = vmax.f32 %v2432, 0.0
      %v2691 = vmax.f32 %v2435, 0.0
      %v2692 = vmax.f32 %v2440, 0.0
      %v2693 = vmax.f32 %v2443, 0.0
      %v2694 = vmax.f32 %v2448, 0.0
      %v2695 = vmax.f32 %v2451, 0.0
      %v2696 = vmax.f32 %v2456, 0.0
      %v2697 = vmax.f32 %v2459, 0.0
      %v2698 = vmax.f32 %v2464, 0.0
      %v2699 = vmax.f32 %v2467, 0.0
      %v2700 = vmax.f32 %v2472, 0.0
      %v2701 = vmax.f32 %v2475, 0.0
      %v2702 = vmax.f32 %v2480, 0.0
      %v2703 = vmax.f32 %v2483, 0.0
      %v2704 = vmax.f32 %v2488, 0.0
      %v2705 = vmax.f32 %v2491, 0.0
      %v2706 = vmax.f32 %v2496, 0.0
      %v2707 = vmax.f32 %v2499, 0.0
      %v2708 = vmax.f32 %v2504, 0.0
      %v2709 = vmax.f32 %v2507, 0.0
      %v2710 = vmax.f32 %v2512, 0.0
      %v2711 = vmax.f32 %v2515, 0.0
      %v2712 = vmax.f32 %v2520, 0.0
      %v2713 = vmax.f32 %v2523, 0.0
      %v2714 = vmax.f32 %v2528, 0.0
      %v2715 = vmax.f32 %v2531, 0.0
      %v2716 = vmax.f32 %v2536, 0.0
      %v2717 = vmax.f32 %v2539, 0.0
      %v2718 = vmax.f32 %v2544, 0.0
      %v2719 = vmax.f32 %v2547, 0.0
      %v2720 = vmax.f32 %v2552, 0.0
      %v2721 = vmax.f32 %v2555, 0.0
      %v2722 = vmax.f32 %v2560, 0.0
      %v2723 = vmax.f32 %v2563, 0.0
      %v2724 = vmax.f32 %v2568, 0.0
      %v2725 = vmax.f32 %v2571, 0.0
      %v2726 = vmax.f32 %v2576, 0.0
      %v2727 = vmax.f32 %v2579, 0.0
      %v2728 = vmax.f32 %v2584, 0.0
      %v2729 = vmax.f32 %v2587, 0.0
      %v2730 = vmax.f32 %v2592, 0.0
      %v2731 = vmax.f32 %v2595, 0.0
      %v2732 = vmax.f32 %v2600, 0.0
      %v2733 = vmax.f32 %v2603, 0.0
      %v2734 = vpack.c.bf16 %v2607, %v2606
      %v2735 = vpack.c.bf16 %v2609, %v2608
      %v2736 = vpack.c.bf16 %v2611, %v2610
      %v2737 = vpack.c.bf16 %v2613, %v2612
      %v2738 = vpack.c.bf16 %v2615, %v2614
      %v2739 = vpack.c.bf16 %v2617, %v2616
      %v2740 = vpack.c.bf16 %v2619, %v2618
      %v2741 = vpack.c.bf16 %v2621, %v2620
      %v2742 = vpack.c.bf16 %v2623, %v2622
      %v2743 = vpack.c.bf16 %v2625, %v2624
      %v2744 = vpack.c.bf16 %v2627, %v2626
      %v2745 = vpack.c.bf16 %v2629, %v2628
      %v2746 = vpack.c.bf16 %v2631, %v2630
      %v2747 = vpack.c.bf16 %v2633, %v2632
      %v2748 = vpack.c.bf16 %v2635, %v2634
      %v2749 = vpack.c.bf16 %v2637, %v2636
      %v2750 = vpack.c.bf16 %v2639, %v2638
      %v2751 = vpack.c.bf16 %v2641, %v2640
      %v2752 = vpack.c.bf16 %v2643, %v2642
      %v2753 = vpack.c.bf16 %v2645, %v2644
      %v2754 = vpack.c.bf16 %v2647, %v2646
      %v2755 = vpack.c.bf16 %v2649, %v2648
      %v2756 = vpack.c.bf16 %v2651, %v2650
      %v2757 = vpack.c.bf16 %v2653, %v2652
      %v2758 = vpack.c.bf16 %v2655, %v2654
      %v2759 = vpack.c.bf16 %v2657, %v2656
      %v2760 = vpack.c.bf16 %v2659, %v2658
      %v2761 = vpack.c.bf16 %v2661, %v2660
      %v2762 = vpack.c.bf16 %v2663, %v2662
      %v2763 = vpack.c.bf16 %v2665, %v2664
      %v2764 = vpack.c.bf16 %v2667, %v2666
      %v2765 = vpack.c.bf16 %v2669, %v2668
      %v2766 = vpack.c.bf16 %v2671, %v2670
      %v2767 = vpack.c.bf16 %v2673, %v2672
      %v2768 = vpack.c.bf16 %v2675, %v2674
      %v2769 = vpack.c.bf16 %v2677, %v2676
      %v2770 = vpack.c.bf16 %v2679, %v2678
      %v2771 = vpack.c.bf16 %v2681, %v2680
      %v2772 = vpack.c.bf16 %v2683, %v2682
      %v2773 = vpack.c.bf16 %v2685, %v2684
      %v2774 = vpack.c.bf16 %v2687, %v2686
      %v2775 = vpack.c.bf16 %v2689, %v2688
      %v2776 = vpack.c.bf16 %v2691, %v2690
      %v2777 = vpack.c.bf16 %v2693, %v2692
      %v2778 = vpack.c.bf16 %v2695, %v2694
      %v2779 = vpack.c.bf16 %v2697, %v2696
      %v2780 = vpack.c.bf16 %v2699, %v2698
      %v2781 = vpack.c.bf16 %v2701, %v2700
      %v2782 = vpack.c.bf16 %v2703, %v2702
      %v2783 = vpack.c.bf16 %v2705, %v2704
      %v2784 = vpack.c.bf16 %v2707, %v2706
      %v2785 = vpack.c.bf16 %v2709, %v2708
      %v2786 = vpack.c.bf16 %v2711, %v2710
      %v2787 = vpack.c.bf16 %v2713, %v2712
      %v2788 = vpack.c.bf16 %v2715, %v2714
      %v2789 = vpack.c.bf16 %v2717, %v2716
      %v2790 = vpack.c.bf16 %v2719, %v2718
      %v2791 = vpack.c.bf16 %v2721, %v2720
      %v2792 = vpack.c.bf16 %v2723, %v2722
      %v2793 = vpack.c.bf16 %v2725, %v2724
      %v2794 = vpack.c.bf16 %v2727, %v2726
      %v2795 = vpack.c.bf16 %v2729, %v2728
      %v2796 = vpack.c.bf16 %v2731, %v2730
      %v2797 = vpack.c.bf16 %v2733, %v2732
      %v2798 = vld [vmem:[%s5] sm:$0xf]
      %v2799 = vld [vmem:[%s5 + $0x4] sm:$0xf]
      %v2800 = vld [vmem:[%s6] sm:$0x1]
      %v2802 = vlaneseq
      %v2803 = vshrl.u32 %v2802, 7
      %v2804 = vsub.s32 0, %v2803
      %v2805 = vrot.slane %v2800, %v2804
      %v2809 = vunpack.c.l.b16 %v2798
      %v2810 = vunpack.c.l.b16 %v2799
      %v2811 = vpack.c.b16 %v2810, %v2809
      %v2814 = vsel %vm1661, %v2734, 0
      %v2817 = vsel %vm1661, %v2735, 0
      %v2820 = vsel %vm1661, %v2736, 0
      %v2823 = vsel %vm1661, %v2737, 0
      %v2826 = vsel %vm1661, %v2738, 0
      %v2829 = vsel %vm1661, %v2739, 0
      %v2832 = vsel %vm1661, %v2740, 0
      %v2835 = vsel %vm1661, %v2741, 0
      %v2838 = vsel %vm1661, %v2742, 0
      %v2841 = vsel %vm1661, %v2743, 0
      %v2844 = vsel %vm1661, %v2744, 0
      %v2847 = vsel %vm1661, %v2745, 0
      %v2850 = vsel %vm1661, %v2746, 0
      %v2853 = vsel %vm1661, %v2747, 0
      %v2856 = vsel %vm1661, %v2748, 0
      %v2859 = vsel %vm1661, %v2749, 0
      %v2862 = vsel %vm1661, %v2750, 0
      %v2865 = vsel %vm1661, %v2751, 0
      %v2868 = vsel %vm1661, %v2752, 0
      %v2871 = vsel %vm1661, %v2753, 0
      %v2874 = vsel %vm1661, %v2754, 0
      %v2877 = vsel %vm1661, %v2755, 0
      %v2880 = vsel %vm1661, %v2756, 0
      %v2883 = vsel %vm1661, %v2757, 0
      %v2886 = vsel %vm1661, %v2758, 0
      %v2889 = vsel %vm1661, %v2759, 0
      %v2892 = vsel %vm1661, %v2760, 0
      %v2895 = vsel %vm1661, %v2761, 0
      %v2898 = vsel %vm1661, %v2762, 0
      %v2901 = vsel %vm1661, %v2763, 0
      %v2904 = vsel %vm1661, %v2764, 0
      %v2907 = vsel %vm1661, %v2765, 0
      %v2910 = vsel %vm1661, %v2766, 0
      %v2913 = vsel %vm1661, %v2767, 0
      %v2916 = vsel %vm1661, %v2768, 0
      %v2919 = vsel %vm1661, %v2769, 0
      %v2922 = vsel %vm1661, %v2770, 0
      %v2925 = vsel %vm1661, %v2771, 0
      %v2928 = vsel %vm1661, %v2772, 0
      %v2931 = vsel %vm1661, %v2773, 0
      %v2934 = vsel %vm1661, %v2774, 0
      %v2937 = vsel %vm1661, %v2775, 0
      %v2940 = vsel %vm1661, %v2776, 0
      %v2943 = vsel %vm1661, %v2777, 0
      %v2946 = vsel %vm1661, %v2778, 0
      %v2949 = vsel %vm1661, %v2779, 0
      %v2952 = vsel %vm1661, %v2780, 0
      %v2955 = vsel %vm1661, %v2781, 0
      %v2958 = vsel %vm1661, %v2782, 0
      %v2961 = vsel %vm1661, %v2783, 0
      %v2964 = vsel %vm1661, %v2784, 0
      %v2967 = vsel %vm1661, %v2785, 0
      %v2970 = vsel %vm1661, %v2786, 0
      %v2973 = vsel %vm1661, %v2787, 0
      %v2976 = vsel %vm1661, %v2788, 0
      %v2979 = vsel %vm1661, %v2789, 0
      %v2982 = vsel %vm1661, %v2790, 0
      %v2985 = vsel %vm1661, %v2791, 0
      %v2988 = vsel %vm1661, %v2792, 0
      %v2991 = vsel %vm1661, %v2793, 0
      %v2994 = vsel %vm1661, %v2794, 0
      %v2997 = vsel %vm1661, %v2795, 0
      %v3000 = vsel %vm1661, %v2796, 0
      %v3003 = vsel %vm1661, %v2797, 0
      %3005 = vmatprep.subr.bf16.mxu0 0
      %3006 = vmatpush1.bf16.msra.mxu0 0
      %3007 = vmatprep.subr.bf16.mxu0 0
      %3008 = vmatpush1.bf16.msra.mxu0 0
      %3009 = vmatprep.subr.bf16.mxu0 0
      %3010 = vmatpush1.bf16.msra.mxu0 0
      %3011 = vmatprep.subr.bf16.mxu0 0
      %3012 = vmatpush1.bf16.msra.mxu0 0
      %3013 = vmatprep.subr.bf16.mxu0 0
      %3014 = vmatpush1.bf16.msra.mxu0 0
      %3015 = vmatprep.subr.bf16.mxu0 0
      %3016 = vmatpush1.bf16.msra.mxu0 0
      %3017 = vmatprep.subr.bf16.mxu0 0
      %3018 = vmatpush1.bf16.msra.mxu0 0
      %3019 = vmatprep.subr.bf16.mxu0 0
      %3020 = vmatpush1.bf16.msra.mxu0 %v2811
      %3021 = vmatprep.subr.bf16.mxu0 0
      %3022 = vmatpush2.bf16.msra.mxu0 0
      %3023 = vmatprep.subr.bf16.mxu0 0
      %3024 = vmatpush2.bf16.msra.mxu0 0
      %3025 = vmatprep.subr.bf16.mxu0 0
      %3026 = vmatpush2.bf16.msra.mxu0 0
      %3027 = vmatprep.subr.bf16.mxu0 0
      %3028 = vmatpush2.bf16.msra.mxu0 0
      %3029 = vmatprep.subr.bf16.mxu0 0
      %3030 = vmatpush2.bf16.msra.mxu0 0
      %3031 = vmatprep.subr.bf16.mxu0 0
      %3032 = vmatpush2.bf16.msra.mxu0 0
      %3033 = vmatprep.subr.bf16.mxu0 0
      %3034 = vmatpush2.bf16.msra.mxu0 0
      %3035 = vmatprep.subr.bf16.mxu0 0
      %3036 = vmatpush2.bf16.msra.mxu0 0
      %3037 = vmatprep.mubr.bf16.mxu0 0
      %3038 = vmatmul.mubr.bf16.gmra.mxu0 %v2814
      %v3039 = vpop.f32.mrf.mxu0
      %v3040 = vadd.f32 %v2805, %v3039
      %v3041 = vpop.f32.mrf.mxu0
      %v3042 = vpop.f32.mrf.mxu0
      %v3043 = vadd.f32 %v2805, %v3042
      %v3044 = vpop.f32.mrf.mxu0
      %3045 = vmatprep.mubr.bf16.mxu0 0
      %3046 = vmatmul.mubr.bf16.gmra.mxu0 %v2817
      %v3047 = vpop.f32.mrf.mxu0
      %v3048 = vadd.f32 %v2805, %v3047
      %v3049 = vpop.f32.mrf.mxu0
      %v3050 = vpop.f32.mrf.mxu0
      %v3051 = vadd.f32 %v2805, %v3050
      %v3052 = vpop.f32.mrf.mxu0
      %3053 = vmatprep.mubr.bf16.mxu0 0
      %3054 = vmatmul.mubr.bf16.gmra.mxu0 %v2820
      %v3055 = vpop.f32.mrf.mxu0
      %v3056 = vadd.f32 %v2805, %v3055
      %v3057 = vpop.f32.mrf.mxu0
      %v3058 = vpop.f32.mrf.mxu0
      %v3059 = vadd.f32 %v2805, %v3058
      %v3060 = vpop.f32.mrf.mxu0
      %3061 = vmatprep.mubr.bf16.mxu0 0
      %3062 = vmatmul.mubr.bf16.gmra.mxu0 %v2823
      %v3063 = vpop.f32.mrf.mxu0
      %v3064 = vadd.f32 %v2805, %v3063
      %v3065 = vpop.f32.mrf.mxu0
      %v3066 = vpop.f32.mrf.mxu0
      %v3067 = vadd.f32 %v2805, %v3066
      %v3068 = vpop.f32.mrf.mxu0
      %3069 = vmatprep.mubr.bf16.mxu0 0
      %3070 = vmatmul.mubr.bf16.gmra.mxu0 %v2826
      %v3071 = vpop.f32.mrf.mxu0
      %v3072 = vadd.f32 %v2805, %v3071
      %v3073 = vpop.f32.mrf.mxu0
      %v3074 = vpop.f32.mrf.mxu0
      %v3075 = vadd.f32 %v2805, %v3074
      %v3076 = vpop.f32.mrf.mxu0
      %3077 = vmatprep.mubr.bf16.mxu0 0
      %3078 = vmatmul.mubr.bf16.gmra.mxu0 %v2829
      %v3079 = vpop.f32.mrf.mxu0
      %v3080 = vadd.f32 %v2805, %v3079
      %v3081 = vpop.f32.mrf.mxu0
      %v3082 = vpop.f32.mrf.mxu0
      %v3083 = vadd.f32 %v2805, %v3082
      %v3084 = vpop.f32.mrf.mxu0
      %3085 = vmatprep.mubr.bf16.mxu0 0
      %3086 = vmatmul.mubr.bf16.gmra.mxu0 %v2832
      %v3087 = vpop.f32.mrf.mxu0
      %v3088 = vadd.f32 %v2805, %v3087
      %v3089 = vpop.f32.mrf.mxu0
      %v3090 = vpop.f32.mrf.mxu0
      %v3091 = vadd.f32 %v2805, %v3090
      %v3092 = vpop.f32.mrf.mxu0
      %3093 = vmatprep.mubr.bf16.mxu0 0
      %3094 = vmatmul.mubr.bf16.gmra.mxu0 %v2835
      %v3095 = vpop.f32.mrf.mxu0
      %v3096 = vadd.f32 %v2805, %v3095
      %v3097 = vpop.f32.mrf.mxu0
      %v3098 = vpop.f32.mrf.mxu0
      %v3099 = vadd.f32 %v2805, %v3098
      %v3100 = vpop.f32.mrf.mxu0
      %3101 = vmatprep.mubr.bf16.mxu0 0
      %3102 = vmatmul.mubr.bf16.gmra.mxu0 %v2838
      %v3103 = vpop.f32.mrf.mxu0
      %v3104 = vadd.f32 %v2805, %v3103
      %v3105 = vpop.f32.mrf.mxu0
      %v3106 = vpop.f32.mrf.mxu0
      %v3107 = vadd.f32 %v2805, %v3106
      %v3108 = vpop.f32.mrf.mxu0
      %3109 = vmatprep.mubr.bf16.mxu0 0
      %3110 = vmatmul.mubr.bf16.gmra.mxu0 %v2841
      %v3111 = vpop.f32.mrf.mxu0
      %v3112 = vadd.f32 %v2805, %v3111
      %v3113 = vpop.f32.mrf.mxu0
      %v3114 = vpop.f32.mrf.mxu0
      %v3115 = vadd.f32 %v2805, %v3114
      %v3116 = vpop.f32.mrf.mxu0
      %3117 = vmatprep.mubr.bf16.mxu0 0
      %3118 = vmatmul.mubr.bf16.gmra.mxu0 %v2844
      %v3119 = vpop.f32.mrf.mxu0
      %v3120 = vadd.f32 %v2805, %v3119
      %v3121 = vpop.f32.mrf.mxu0
      %v3122 = vpop.f32.mrf.mxu0
      %v3123 = vadd.f32 %v2805, %v3122
      %v3124 = vpop.f32.mrf.mxu0
      %3125 = vmatprep.mubr.bf16.mxu0 0
      %3126 = vmatmul.mubr.bf16.gmra.mxu0 %v2847
      %v3127 = vpop.f32.mrf.mxu0
      %v3128 = vadd.f32 %v2805, %v3127
      %v3129 = vpop.f32.mrf.mxu0
      %v3130 = vpop.f32.mrf.mxu0
      %v3131 = vadd.f32 %v2805, %v3130
      %v3132 = vpop.f32.mrf.mxu0
      %3133 = vmatprep.mubr.bf16.mxu0 0
      %3134 = vmatmul.mubr.bf16.gmra.mxu0 %v2850
      %v3135 = vpop.f32.mrf.mxu0
      %v3136 = vadd.f32 %v2805, %v3135
      %v3137 = vpop.f32.mrf.mxu0
      %v3138 = vpop.f32.mrf.mxu0
      %v3139 = vadd.f32 %v2805, %v3138
      %v3140 = vpop.f32.mrf.mxu0
      %3141 = vmatprep.mubr.bf16.mxu0 0
      %3142 = vmatmul.mubr.bf16.gmra.mxu0 %v2853
      %v3143 = vpop.f32.mrf.mxu0
      %v3144 = vadd.f32 %v2805, %v3143
      %v3145 = vpop.f32.mrf.mxu0
      %v3146 = vpop.f32.mrf.mxu0
      %v3147 = vadd.f32 %v2805, %v3146
      %v3148 = vpop.f32.mrf.mxu0
      %3149 = vmatprep.mubr.bf16.mxu0 0
      %3150 = vmatmul.mubr.bf16.gmra.mxu0 %v2856
      %v3151 = vpop.f32.mrf.mxu0
      %v3152 = vadd.f32 %v2805, %v3151
      %v3153 = vpop.f32.mrf.mxu0
      %v3154 = vpop.f32.mrf.mxu0
      %v3155 = vadd.f32 %v2805, %v3154
      %v3156 = vpop.f32.mrf.mxu0
      %3157 = vmatprep.mubr.bf16.mxu0 0
      %3158 = vmatmul.mubr.bf16.gmra.mxu0 %v2859
      %v3159 = vpop.f32.mrf.mxu0
      %v3160 = vadd.f32 %v2805, %v3159
      %v3161 = vpop.f32.mrf.mxu0
      %v3162 = vpop.f32.mrf.mxu0
      %v3163 = vadd.f32 %v2805, %v3162
      %v3164 = vpop.f32.mrf.mxu0
      %3165 = vmatprep.mubr.bf16.mxu0 0
      %3166 = vmatmul.mubr.bf16.gmra.mxu0 %v2862
      %v3167 = vpop.f32.mrf.mxu0
      %v3168 = vadd.f32 %v2805, %v3167
      %v3169 = vpop.f32.mrf.mxu0
      %v3170 = vpop.f32.mrf.mxu0
      %v3171 = vadd.f32 %v2805, %v3170
      %v3172 = vpop.f32.mrf.mxu0
      %3173 = vmatprep.mubr.bf16.mxu0 0
      %3174 = vmatmul.mubr.bf16.gmra.mxu0 %v2865
      %v3175 = vpop.f32.mrf.mxu0
      %v3176 = vadd.f32 %v2805, %v3175
      %v3177 = vpop.f32.mrf.mxu0
      %v3178 = vpop.f32.mrf.mxu0
      %v3179 = vadd.f32 %v2805, %v3178
      %v3180 = vpop.f32.mrf.mxu0
      %3181 = vmatprep.mubr.bf16.mxu0 0
      %3182 = vmatmul.mubr.bf16.gmra.mxu0 %v2868
      %v3183 = vpop.f32.mrf.mxu0
      %v3184 = vadd.f32 %v2805, %v3183
      %v3185 = vpop.f32.mrf.mxu0
      %v3186 = vpop.f32.mrf.mxu0
      %v3187 = vadd.f32 %v2805, %v3186
      %v3188 = vpop.f32.mrf.mxu0
      %3189 = vmatprep.mubr.bf16.mxu0 0
      %3190 = vmatmul.mubr.bf16.gmra.mxu0 %v2871
      %v3191 = vpop.f32.mrf.mxu0
      %v3192 = vadd.f32 %v2805, %v3191
      %v3193 = vpop.f32.mrf.mxu0
      %v3194 = vpop.f32.mrf.mxu0
      %v3195 = vadd.f32 %v2805, %v3194
      %v3196 = vpop.f32.mrf.mxu0
      %3197 = vmatprep.mubr.bf16.mxu0 0
      %3198 = vmatmul.mubr.bf16.gmra.mxu0 %v2874
      %v3199 = vpop.f32.mrf.mxu0
      %v3200 = vadd.f32 %v2805, %v3199
      %v3201 = vpop.f32.mrf.mxu0
      %v3202 = vpop.f32.mrf.mxu0
      %v3203 = vadd.f32 %v2805, %v3202
      %v3204 = vpop.f32.mrf.mxu0
      %3205 = vmatprep.mubr.bf16.mxu0 0
      %3206 = vmatmul.mubr.bf16.gmra.mxu0 %v2877
      %v3207 = vpop.f32.mrf.mxu0
      %v3208 = vadd.f32 %v2805, %v3207
      %v3209 = vpop.f32.mrf.mxu0
      %v3210 = vpop.f32.mrf.mxu0
      %v3211 = vadd.f32 %v2805, %v3210
      %v3212 = vpop.f32.mrf.mxu0
      %3213 = vmatprep.mubr.bf16.mxu0 0
      %3214 = vmatmul.mubr.bf16.gmra.mxu0 %v2880
      %v3215 = vpop.f32.mrf.mxu0
      %v3216 = vadd.f32 %v2805, %v3215
      %v3217 = vpop.f32.mrf.mxu0
      %v3218 = vpop.f32.mrf.mxu0
      %v3219 = vadd.f32 %v2805, %v3218
      %v3220 = vpop.f32.mrf.mxu0
      %3221 = vmatprep.mubr.bf16.mxu0 0
      %3222 = vmatmul.mubr.bf16.gmra.mxu0 %v2883
      %v3223 = vpop.f32.mrf.mxu0
      %v3224 = vadd.f32 %v2805, %v3223
      %v3225 = vpop.f32.mrf.mxu0
      %v3226 = vpop.f32.mrf.mxu0
      %v3227 = vadd.f32 %v2805, %v3226
      %v3228 = vpop.f32.mrf.mxu0
      %3229 = vmatprep.mubr.bf16.mxu0 0
      %3230 = vmatmul.mubr.bf16.gmra.mxu0 %v2886
      %v3231 = vpop.f32.mrf.mxu0
      %v3232 = vadd.f32 %v2805, %v3231
      %v3233 = vpop.f32.mrf.mxu0
      %v3234 = vpop.f32.mrf.mxu0
      %v3235 = vadd.f32 %v2805, %v3234
      %v3236 = vpop.f32.mrf.mxu0
      %3237 = vmatprep.mubr.bf16.mxu0 0
      %3238 = vmatmul.mubr.bf16.gmra.mxu0 %v2889
      %v3239 = vpop.f32.mrf.mxu0
      %v3240 = vadd.f32 %v2805, %v3239
      %v3241 = vpop.f32.mrf.mxu0
      %v3242 = vpop.f32.mrf.mxu0
      %v3243 = vadd.f32 %v2805, %v3242
      %v3244 = vpop.f32.mrf.mxu0
      %3245 = vmatprep.mubr.bf16.mxu0 0
      %3246 = vmatmul.mubr.bf16.gmra.mxu0 %v2892
      %v3247 = vpop.f32.mrf.mxu0
      %v3248 = vadd.f32 %v2805, %v3247
      %v3249 = vpop.f32.mrf.mxu0
      %v3250 = vpop.f32.mrf.mxu0
      %v3251 = vadd.f32 %v2805, %v3250
      %v3252 = vpop.f32.mrf.mxu0
      %3253 = vmatprep.mubr.bf16.mxu0 0
      %3254 = vmatmul.mubr.bf16.gmra.mxu0 %v2895
      %v3255 = vpop.f32.mrf.mxu0
      %v3256 = vadd.f32 %v2805, %v3255
      %v3257 = vpop.f32.mrf.mxu0
      %v3258 = vpop.f32.mrf.mxu0
      %v3259 = vadd.f32 %v2805, %v3258
      %v3260 = vpop.f32.mrf.mxu0
      %3261 = vmatprep.mubr.bf16.mxu0 0
      %3262 = vmatmul.mubr.bf16.gmra.mxu0 %v2898
      %v3263 = vpop.f32.mrf.mxu0
      %v3264 = vadd.f32 %v2805, %v3263
      %v3265 = vpop.f32.mrf.mxu0
      %v3266 = vpop.f32.mrf.mxu0
      %v3267 = vadd.f32 %v2805, %v3266
      %v3268 = vpop.f32.mrf.mxu0
      %3269 = vmatprep.mubr.bf16.mxu0 0
      %3270 = vmatmul.mubr.bf16.gmra.mxu0 %v2901
      %v3271 = vpop.f32.mrf.mxu0
      %v3272 = vadd.f32 %v2805, %v3271
      %v3273 = vpop.f32.mrf.mxu0
      %v3274 = vpop.f32.mrf.mxu0
      %v3275 = vadd.f32 %v2805, %v3274
      %v3276 = vpop.f32.mrf.mxu0
      %3277 = vmatprep.mubr.bf16.mxu0 0
      %3278 = vmatmul.mubr.bf16.gmra.mxu0 %v2904
      %v3279 = vpop.f32.mrf.mxu0
      %v3280 = vadd.f32 %v2805, %v3279
      %v3281 = vpop.f32.mrf.mxu0
      %v3282 = vpop.f32.mrf.mxu0
      %v3283 = vadd.f32 %v2805, %v3282
      %v3284 = vpop.f32.mrf.mxu0
      %3285 = vmatprep.mubr.bf16.mxu0 0
      %3286 = vmatmul.mubr.bf16.gmra.mxu0 %v2907
      %v3287 = vpop.f32.mrf.mxu0
      %v3288 = vadd.f32 %v2805, %v3287
      %v3289 = vpop.f32.mrf.mxu0
      %v3290 = vpop.f32.mrf.mxu0
      %v3291 = vadd.f32 %v2805, %v3290
      %v3292 = vpop.f32.mrf.mxu0
      %3293 = vmatprep.mubr.bf16.mxu0 0
      %3294 = vmatmul.mubr.bf16.gmra.mxu0 %v2910
      %v3295 = vpop.f32.mrf.mxu0
      %v3296 = vadd.f32 %v2805, %v3295
      %v3297 = vpop.f32.mrf.mxu0
      %v3298 = vpop.f32.mrf.mxu0
      %v3299 = vadd.f32 %v2805, %v3298
      %v3300 = vpop.f32.mrf.mxu0
      %3301 = vmatprep.mubr.bf16.mxu0 0
      %3302 = vmatmul.mubr.bf16.gmra.mxu0 %v2913
      %v3303 = vpop.f32.mrf.mxu0
      %v3304 = vadd.f32 %v2805, %v3303
      %v3305 = vpop.f32.mrf.mxu0
      %v3306 = vpop.f32.mrf.mxu0
      %v3307 = vadd.f32 %v2805, %v3306
      %v3308 = vpop.f32.mrf.mxu0
      %3309 = vmatprep.mubr.bf16.mxu0 0
      %3310 = vmatmul.mubr.bf16.gmra.mxu0 %v2916
      %v3311 = vpop.f32.mrf.mxu0
      %v3312 = vadd.f32 %v2805, %v3311
      %v3313 = vpop.f32.mrf.mxu0
      %v3314 = vpop.f32.mrf.mxu0
      %v3315 = vadd.f32 %v2805, %v3314
      %v3316 = vpop.f32.mrf.mxu0
      %3317 = vmatprep.mubr.bf16.mxu0 0
      %3318 = vmatmul.mubr.bf16.gmra.mxu0 %v2919
      %v3319 = vpop.f32.mrf.mxu0
      %v3320 = vadd.f32 %v2805, %v3319
      %v3321 = vpop.f32.mrf.mxu0
      %v3322 = vpop.f32.mrf.mxu0
      %v3323 = vadd.f32 %v2805, %v3322
      %v3324 = vpop.f32.mrf.mxu0
      %3325 = vmatprep.mubr.bf16.mxu0 0
      %3326 = vmatmul.mubr.bf16.gmra.mxu0 %v2922
      %v3327 = vpop.f32.mrf.mxu0
      %v3328 = vadd.f32 %v2805, %v3327
      %v3329 = vpop.f32.mrf.mxu0
      %v3330 = vpop.f32.mrf.mxu0
      %v3331 = vadd.f32 %v2805, %v3330
      %v3332 = vpop.f32.mrf.mxu0
      %3333 = vmatprep.mubr.bf16.mxu0 0
      %3334 = vmatmul.mubr.bf16.gmra.mxu0 %v2925
      %v3335 = vpop.f32.mrf.mxu0
      %v3336 = vadd.f32 %v2805, %v3335
      %v3337 = vpop.f32.mrf.mxu0
      %v3338 = vpop.f32.mrf.mxu0
      %v3339 = vadd.f32 %v2805, %v3338
      %v3340 = vpop.f32.mrf.mxu0
      %3341 = vmatprep.mubr.bf16.mxu0 0
      %3342 = vmatmul.mubr.bf16.gmra.mxu0 %v2928
      %v3343 = vpop.f32.mrf.mxu0
      %v3344 = vadd.f32 %v2805, %v3343
      %v3345 = vpop.f32.mrf.mxu0
      %v3346 = vpop.f32.mrf.mxu0
      %v3347 = vadd.f32 %v2805, %v3346
      %v3348 = vpop.f32.mrf.mxu0
      %3349 = vmatprep.mubr.bf16.mxu0 0
      %3350 = vmatmul.mubr.bf16.gmra.mxu0 %v2931
      %v3351 = vpop.f32.mrf.mxu0
      %v3352 = vadd.f32 %v2805, %v3351
      %v3353 = vpop.f32.mrf.mxu0
      %v3354 = vpop.f32.mrf.mxu0
      %v3355 = vadd.f32 %v2805, %v3354
      %v3356 = vpop.f32.mrf.mxu0
      %3357 = vmatprep.mubr.bf16.mxu0 0
      %3358 = vmatmul.mubr.bf16.gmra.mxu0 %v2934
      %v3359 = vpop.f32.mrf.mxu0
      %v3360 = vadd.f32 %v2805, %v3359
      %v3361 = vpop.f32.mrf.mxu0
      %v3362 = vpop.f32.mrf.mxu0
      %v3363 = vadd.f32 %v2805, %v3362
      %v3364 = vpop.f32.mrf.mxu0
      %3365 = vmatprep.mubr.bf16.mxu0 0
      %3366 = vmatmul.mubr.bf16.gmra.mxu0 %v2937
      %v3367 = vpop.f32.mrf.mxu0
      %v3368 = vadd.f32 %v2805, %v3367
      %v3369 = vpop.f32.mrf.mxu0
      %v3370 = vpop.f32.mrf.mxu0
      %v3371 = vadd.f32 %v2805, %v3370
      %v3372 = vpop.f32.mrf.mxu0
      %3373 = vmatprep.mubr.bf16.mxu0 0
      %3374 = vmatmul.mubr.bf16.gmra.mxu0 %v2940
      %v3375 = vpop.f32.mrf.mxu0
      %v3376 = vadd.f32 %v2805, %v3375
      %v3377 = vpop.f32.mrf.mxu0
      %v3378 = vpop.f32.mrf.mxu0
      %v3379 = vadd.f32 %v2805, %v3378
      %v3380 = vpop.f32.mrf.mxu0
      %3381 = vmatprep.mubr.bf16.mxu0 0
      %3382 = vmatmul.mubr.bf16.gmra.mxu0 %v2943
      %v3383 = vpop.f32.mrf.mxu0
      %v3384 = vadd.f32 %v2805, %v3383
      %v3385 = vpop.f32.mrf.mxu0
      %v3386 = vpop.f32.mrf.mxu0
      %v3387 = vadd.f32 %v2805, %v3386
      %v3388 = vpop.f32.mrf.mxu0
      %3389 = vmatprep.mubr.bf16.mxu0 0
      %3390 = vmatmul.mubr.bf16.gmra.mxu0 %v2946
      %v3391 = vpop.f32.mrf.mxu0
      %v3392 = vadd.f32 %v2805, %v3391
      %v3393 = vpop.f32.mrf.mxu0
      %v3394 = vpop.f32.mrf.mxu0
      %v3395 = vadd.f32 %v2805, %v3394
      %v3396 = vpop.f32.mrf.mxu0
      %3397 = vmatprep.mubr.bf16.mxu0 0
      %3398 = vmatmul.mubr.bf16.gmra.mxu0 %v2949
      %v3399 = vpop.f32.mrf.mxu0
      %v3400 = vadd.f32 %v2805, %v3399
      %v3401 = vpop.f32.mrf.mxu0
      %v3402 = vpop.f32.mrf.mxu0
      %v3403 = vadd.f32 %v2805, %v3402
      %v3404 = vpop.f32.mrf.mxu0
      %3405 = vmatprep.mubr.bf16.mxu0 0
      %3406 = vmatmul.mubr.bf16.gmra.mxu0 %v2952
      %v3407 = vpop.f32.mrf.mxu0
      %v3408 = vadd.f32 %v2805, %v3407
      %v3409 = vpop.f32.mrf.mxu0
      %v3410 = vpop.f32.mrf.mxu0
      %v3411 = vadd.f32 %v2805, %v3410
      %v3412 = vpop.f32.mrf.mxu0
      %3413 = vmatprep.mubr.bf16.mxu0 0
      %3414 = vmatmul.mubr.bf16.gmra.mxu0 %v2955
      %v3415 = vpop.f32.mrf.mxu0
      %v3416 = vadd.f32 %v2805, %v3415
      %v3417 = vpop.f32.mrf.mxu0
      %v3418 = vpop.f32.mrf.mxu0
      %v3419 = vadd.f32 %v2805, %v3418
      %v3420 = vpop.f32.mrf.mxu0
      %3421 = vmatprep.mubr.bf16.mxu0 0
      %3422 = vmatmul.mubr.bf16.gmra.mxu0 %v2958
      %v3423 = vpop.f32.mrf.mxu0
      %v3424 = vadd.f32 %v2805, %v3423
      %v3425 = vpop.f32.mrf.mxu0
      %v3426 = vpop.f32.mrf.mxu0
      %v3427 = vadd.f32 %v2805, %v3426
      %v3428 = vpop.f32.mrf.mxu0
      %3429 = vmatprep.mubr.bf16.mxu0 0
      %3430 = vmatmul.mubr.bf16.gmra.mxu0 %v2961
      %v3431 = vpop.f32.mrf.mxu0
      %v3432 = vadd.f32 %v2805, %v3431
      %v3433 = vpop.f32.mrf.mxu0
      %v3434 = vpop.f32.mrf.mxu0
      %v3435 = vadd.f32 %v2805, %v3434
      %v3436 = vpop.f32.mrf.mxu0
      %3437 = vmatprep.mubr.bf16.mxu0 0
      %3438 = vmatmul.mubr.bf16.gmra.mxu0 %v2964
      %v3439 = vpop.f32.mrf.mxu0
      %v3440 = vadd.f32 %v2805, %v3439
      %v3441 = vpop.f32.mrf.mxu0
      %v3442 = vpop.f32.mrf.mxu0
      %v3443 = vadd.f32 %v2805, %v3442
      %v3444 = vpop.f32.mrf.mxu0
      %3445 = vmatprep.mubr.bf16.mxu0 0
      %3446 = vmatmul.mubr.bf16.gmra.mxu0 %v2967
      %v3447 = vpop.f32.mrf.mxu0
      %v3448 = vadd.f32 %v2805, %v3447
      %v3449 = vpop.f32.mrf.mxu0
      %v3450 = vpop.f32.mrf.mxu0
      %v3451 = vadd.f32 %v2805, %v3450
      %v3452 = vpop.f32.mrf.mxu0
      %3453 = vmatprep.mubr.bf16.mxu0 0
      %3454 = vmatmul.mubr.bf16.gmra.mxu0 %v2970
      %v3455 = vpop.f32.mrf.mxu0
      %v3456 = vadd.f32 %v2805, %v3455
      %v3457 = vpop.f32.mrf.mxu0
      %v3458 = vpop.f32.mrf.mxu0
      %v3459 = vadd.f32 %v2805, %v3458
      %v3460 = vpop.f32.mrf.mxu0
      %3461 = vmatprep.mubr.bf16.mxu0 0
      %3462 = vmatmul.mubr.bf16.gmra.mxu0 %v2973
      %v3463 = vpop.f32.mrf.mxu0
      %v3464 = vadd.f32 %v2805, %v3463
      %v3465 = vpop.f32.mrf.mxu0
      %v3466 = vpop.f32.mrf.mxu0
      %v3467 = vadd.f32 %v2805, %v3466
      %v3468 = vpop.f32.mrf.mxu0
      %3469 = vmatprep.mubr.bf16.mxu0 0
      %3470 = vmatmul.mubr.bf16.gmra.mxu0 %v2976
      %v3471 = vpop.f32.mrf.mxu0
      %v3472 = vadd.f32 %v2805, %v3471
      %v3473 = vpop.f32.mrf.mxu0
      %v3474 = vpop.f32.mrf.mxu0
      %v3475 = vadd.f32 %v2805, %v3474
      %v3476 = vpop.f32.mrf.mxu0
      %3477 = vmatprep.mubr.bf16.mxu0 0
      %3478 = vmatmul.mubr.bf16.gmra.mxu0 %v2979
      %v3479 = vpop.f32.mrf.mxu0
      %v3480 = vadd.f32 %v2805, %v3479
      %v3481 = vpop.f32.mrf.mxu0
      %v3482 = vpop.f32.mrf.mxu0
      %v3483 = vadd.f32 %v2805, %v3482
      %v3484 = vpop.f32.mrf.mxu0
      %3485 = vmatprep.mubr.bf16.mxu0 0
      %3486 = vmatmul.mubr.bf16.gmra.mxu0 %v2982
      %v3487 = vpop.f32.mrf.mxu0
      %v3488 = vadd.f32 %v2805, %v3487
      %v3489 = vpop.f32.mrf.mxu0
      %v3490 = vpop.f32.mrf.mxu0
      %v3491 = vadd.f32 %v2805, %v3490
      %v3492 = vpop.f32.mrf.mxu0
      %3493 = vmatprep.mubr.bf16.mxu0 0
      %3494 = vmatmul.mubr.bf16.gmra.mxu0 %v2985
      %v3495 = vpop.f32.mrf.mxu0
      %v3496 = vadd.f32 %v2805, %v3495
      %v3497 = vpop.f32.mrf.mxu0
      %v3498 = vpop.f32.mrf.mxu0
      %v3499 = vadd.f32 %v2805, %v3498
      %v3500 = vpop.f32.mrf.mxu0
      %3501 = vmatprep.mubr.bf16.mxu0 0
      %3502 = vmatmul.mubr.bf16.gmra.mxu0 %v2988
      %v3503 = vpop.f32.mrf.mxu0
      %v3504 = vadd.f32 %v2805, %v3503
      %v3505 = vpop.f32.mrf.mxu0
      %v3506 = vpop.f32.mrf.mxu0
      %v3507 = vadd.f32 %v2805, %v3506
      %v3508 = vpop.f32.mrf.mxu0
      %3509 = vmatprep.mubr.bf16.mxu0 0
      %3510 = vmatmul.mubr.bf16.gmra.mxu0 %v2991
      %v3511 = vpop.f32.mrf.mxu0
      %v3512 = vadd.f32 %v2805, %v3511
      %v3513 = vpop.f32.mrf.mxu0
      %v3514 = vpop.f32.mrf.mxu0
      %v3515 = vadd.f32 %v2805, %v3514
      %v3516 = vpop.f32.mrf.mxu0
      %3517 = vmatprep.mubr.bf16.mxu0 0
      %3518 = vmatmul.mubr.bf16.gmra.mxu0 %v2994
      %v3519 = vpop.f32.mrf.mxu0
      %v3520 = vadd.f32 %v2805, %v3519
      %v3521 = vpop.f32.mrf.mxu0
      %v3522 = vpop.f32.mrf.mxu0
      %v3523 = vadd.f32 %v2805, %v3522
      %v3524 = vpop.f32.mrf.mxu0
      %3525 = vmatprep.mubr.bf16.mxu0 0
      %3526 = vmatmul.mubr.bf16.gmra.mxu0 %v2997
      %v3527 = vpop.f32.mrf.mxu0
      %v3528 = vadd.f32 %v2805, %v3527
      %v3529 = vpop.f32.mrf.mxu0
      %v3530 = vpop.f32.mrf.mxu0
      %v3531 = vadd.f32 %v2805, %v3530
      %v3532 = vpop.f32.mrf.mxu0
      %3533 = vmatprep.mubr.bf16.mxu0 0
      %3534 = vmatmul.mubr.bf16.gmra.mxu0 %v3000
      %v3535 = vpop.f32.mrf.mxu0
      %v3536 = vadd.f32 %v2805, %v3535
      %v3537 = vpop.f32.mrf.mxu0
      %v3538 = vpop.f32.mrf.mxu0
      %v3539 = vadd.f32 %v2805, %v3538
      %v3540 = vpop.f32.mrf.mxu0
      %3541 = vmatprep.mubr.bf16.mxu0 0
      %3542 = vmatmul.mubr.bf16.gmra.mxu0 %v3003
      %v3543 = vpop.f32.mrf.mxu0
      %v3544 = vadd.f32 %v2805, %v3543
      %v3545 = vpop.f32.mrf.mxu0
      %v3546 = vpop.f32.mrf.mxu0
      %v3547 = vadd.f32 %v2805, %v3546
      %v3548 = vpop.f32.mrf.mxu0
      %3549 = vdwg.mxu0
      %3550 = vst [vmem:[%s321] sm:$0xff] %v3040
      %3551 = vst [vmem:[%s321 + $0x8] sm:$0xff] %v3043
      %3552 = vst [vmem:[%s321 + $0x10] sm:$0xff] %v3048
      %3553 = vst [vmem:[%s321 + $0x18] sm:$0xff] %v3051
      %3554 = vst [vmem:[%s321 + $0x20] sm:$0xff] %v3056
      %3555 = vst [vmem:[%s321 + $0x28] sm:$0xff] %v3059
      %3556 = vst [vmem:[%s321 + $0x30] sm:$0xff] %v3064
      %3557 = vst [vmem:[%s321 + $0x38] sm:$0xff] %v3067
      %3558 = vst [vmem:[%s321 + $0x40] sm:$0xff] %v3072
      %3559 = vst [vmem:[%s321 + $0x48] sm:$0xff] %v3075
      %3560 = vst [vmem:[%s321 + $0x50] sm:$0xff] %v3080
      %3561 = vst [vmem:[%s321 + $0x58] sm:$0xff] %v3083
      %3562 = vst [vmem:[%s321 + $0x60] sm:$0xff] %v3088
      %3563 = vst [vmem:[%s321 + $0x68] sm:$0xff] %v3091
      %3564 = vst [vmem:[%s321 + $0x70] sm:$0xff] %v3096
      %3565 = vst [vmem:[%s321 + $0x78] sm:$0xff] %v3099
      %3566 = vst [vmem:[%s321 + $0x80] sm:$0xff] %v3104
      %3567 = vst [vmem:[%s321 + $0x88] sm:$0xff] %v3107
      %3568 = vst [vmem:[%s321 + $0x90] sm:$0xff] %v3112
      %3569 = vst [vmem:[%s321 + $0x98] sm:$0xff] %v3115
      %3570 = vst [vmem:[%s321 + $0xa0] sm:$0xff] %v3120
      %3571 = vst [vmem:[%s321 + $0xa8] sm:$0xff] %v3123
      %3572 = vst [vmem:[%s321 + $0xb0] sm:$0xff] %v3128
      %3573 = vst [vmem:[%s321 + $0xb8] sm:$0xff] %v3131
      %3574 = vst [vmem:[%s321 + $0xc0] sm:$0xff] %v3136
      %3575 = vst [vmem:[%s321 + $0xc8] sm:$0xff] %v3139
      %3576 = vst [vmem:[%s321 + $0xd0] sm:$0xff] %v3144
      %3577 = vst [vmem:[%s321 + $0xd8] sm:$0xff] %v3147
      %3578 = vst [vmem:[%s321 + $0xe0] sm:$0xff] %v3152
      %3579 = vst [vmem:[%s321 + $0xe8] sm:$0xff] %v3155
      %3580 = vst [vmem:[%s321 + $0xf0] sm:$0xff] %v3160
      %3581 = vst [vmem:[%s321 + $0xf8] sm:$0xff] %v3163
      %3582 = vst [vmem:[%s321 + $0x100] sm:$0xff] %v3168
      %3583 = vst [vmem:[%s321 + $0x108] sm:$0xff] %v3171
      %3584 = vst [vmem:[%s321 + $0x110] sm:$0xff] %v3176
      %3585 = vst [vmem:[%s321 + $0x118] sm:$0xff] %v3179
      %3586 = vst [vmem:[%s321 + $0x120] sm:$0xff] %v3184
      %3587 = vst [vmem:[%s321 + $0x128] sm:$0xff] %v3187
      %3588 = vst [vmem:[%s321 + $0x130] sm:$0xff] %v3192
      %3589 = vst [vmem:[%s321 + $0x138] sm:$0xff] %v3195
      %3590 = vst [vmem:[%s321 + $0x140] sm:$0xff] %v3200
      %3591 = vst [vmem:[%s321 + $0x148] sm:$0xff] %v3203
      %3592 = vst [vmem:[%s321 + $0x150] sm:$0xff] %v3208
      %3593 = vst [vmem:[%s321 + $0x158] sm:$0xff] %v3211
      %3594 = vst [vmem:[%s321 + $0x160] sm:$0xff] %v3216
      %3595 = vst [vmem:[%s321 + $0x168] sm:$0xff] %v3219
      %3596 = vst [vmem:[%s321 + $0x170] sm:$0xff] %v3224
      %3597 = vst [vmem:[%s321 + $0x178] sm:$0xff] %v3227
      %3598 = vst [vmem:[%s321 + $0x180] sm:$0xff] %v3232
      %3599 = vst [vmem:[%s321 + $0x188] sm:$0xff] %v3235
      %3600 = vst [vmem:[%s321 + $0x190] sm:$0xff] %v3240
      %3601 = vst [vmem:[%s321 + $0x198] sm:$0xff] %v3243
      %3602 = vst [vmem:[%s321 + $0x1a0] sm:$0xff] %v3248
      %3603 = vst [vmem:[%s321 + $0x1a8] sm:$0xff] %v3251
      %3604 = vst [vmem:[%s321 + $0x1b0] sm:$0xff] %v3256
      %3605 = vst [vmem:[%s321 + $0x1b8] sm:$0xff] %v3259
      %3606 = vst [vmem:[%s321 + $0x1c0] sm:$0xff] %v3264
      %3607 = vst [vmem:[%s321 + $0x1c8] sm:$0xff] %v3267
      %3608 = vst [vmem:[%s321 + $0x1d0] sm:$0xff] %v3272
      %3609 = vst [vmem:[%s321 + $0x1d8] sm:$0xff] %v3275
      %3610 = vst [vmem:[%s321 + $0x1e0] sm:$0xff] %v3280
      %3611 = vst [vmem:[%s321 + $0x1e8] sm:$0xff] %v3283
      %3612 = vst [vmem:[%s321 + $0x1f0] sm:$0xff] %v3288
      %3613 = vst [vmem:[%s321 + $0x1f8] sm:$0xff] %v3291
      %3614 = vst [vmem:[%s321 + $0x200] sm:$0xff] %v3296
      %3615 = vst [vmem:[%s321 + $0x208] sm:$0xff] %v3299
      %3616 = vst [vmem:[%s321 + $0x210] sm:$0xff] %v3304
      %3617 = vst [vmem:[%s321 + $0x218] sm:$0xff] %v3307
      %3618 = vst [vmem:[%s321 + $0x220] sm:$0xff] %v3312
      %3619 = vst [vmem:[%s321 + $0x228] sm:$0xff] %v3315
      %3620 = vst [vmem:[%s321 + $0x230] sm:$0xff] %v3320
      %3621 = vst [vmem:[%s321 + $0x238] sm:$0xff] %v3323
      %3622 = vst [vmem:[%s321 + $0x240] sm:$0xff] %v3328
      %3623 = vst [vmem:[%s321 + $0x248] sm:$0xff] %v3331
      %3624 = vst [vmem:[%s321 + $0x250] sm:$0xff] %v3336
      %3625 = vst [vmem:[%s321 + $0x258] sm:$0xff] %v3339
      %3626 = vst [vmem:[%s321 + $0x260] sm:$0xff] %v3344
      %3627 = vst [vmem:[%s321 + $0x268] sm:$0xff] %v3347
      %3628 = vst [vmem:[%s321 + $0x270] sm:$0xff] %v3352
      %3629 = vst [vmem:[%s321 + $0x278] sm:$0xff] %v3355
      %3630 = vst [vmem:[%s321 + $0x280] sm:$0xff] %v3360
      %3631 = vst [vmem:[%s321 + $0x288] sm:$0xff] %v3363
      %3632 = vst [vmem:[%s321 + $0x290] sm:$0xff] %v3368
      %3633 = vst [vmem:[%s321 + $0x298] sm:$0xff] %v3371
      %3634 = vst [vmem:[%s321 + $0x2a0] sm:$0xff] %v3376
      %3635 = vst [vmem:[%s321 + $0x2a8] sm:$0xff] %v3379
      %3636 = vst [vmem:[%s321 + $0x2b0] sm:$0xff] %v3384
      %3637 = vst [vmem:[%s321 + $0x2b8] sm:$0xff] %v3387
      %3638 = vst [vmem:[%s321 + $0x2c0] sm:$0xff] %v3392
      %3639 = vst [vmem:[%s321 + $0x2c8] sm:$0xff] %v3395
      %3640 = vst [vmem:[%s321 + $0x2d0] sm:$0xff] %v3400
      %3641 = vst [vmem:[%s321 + $0x2d8] sm:$0xff] %v3403
      %3642 = vst [vmem:[%s321 + $0x2e0] sm:$0xff] %v3408
      %3643 = vst [vmem:[%s321 + $0x2e8] sm:$0xff] %v3411
      %3644 = vst [vmem:[%s321 + $0x2f0] sm:$0xff] %v3416
      %3645 = vst [vmem:[%s321 + $0x2f8] sm:$0xff] %v3419
      %3646 = vst [vmem:[%s321 + $0x300] sm:$0xff] %v3424
      %3647 = vst [vmem:[%s321 + $0x308] sm:$0xff] %v3427
      %3648 = vst [vmem:[%s321 + $0x310] sm:$0xff] %v3432
      %3649 = vst [vmem:[%s321 + $0x318] sm:$0xff] %v3435
      %3650 = vst [vmem:[%s321 + $0x320] sm:$0xff] %v3440
      %3651 = vst [vmem:[%s321 + $0x328] sm:$0xff] %v3443
      %3652 = vst [vmem:[%s321 + $0x330] sm:$0xff] %v3448
      %3653 = vst [vmem:[%s321 + $0x338] sm:$0xff] %v3451
      %3654 = vst [vmem:[%s321 + $0x340] sm:$0xff] %v3456
      %3655 = vst [vmem:[%s321 + $0x348] sm:$0xff] %v3459
      %3656 = vst [vmem:[%s321 + $0x350] sm:$0xff] %v3464
      %3657 = vst [vmem:[%s321 + $0x358] sm:$0xff] %v3467
      %3658 = vst [vmem:[%s321 + $0x360] sm:$0xff] %v3472
      %3659 = vst [vmem:[%s321 + $0x368] sm:$0xff] %v3475
      %3660 = vst [vmem:[%s321 + $0x370] sm:$0xff] %v3480
      %3661 = vst [vmem:[%s321 + $0x378] sm:$0xff] %v3483
      %3662 = vst [vmem:[%s321 + $0x380] sm:$0xff] %v3488
      %3663 = vst [vmem:[%s321 + $0x388] sm:$0xff] %v3491
      %3664 = vst [vmem:[%s321 + $0x390] sm:$0xff] %v3496
      %3665 = vst [vmem:[%s321 + $0x398] sm:$0xff] %v3499
      %3666 = vst [vmem:[%s321 + $0x3a0] sm:$0xff] %v3504
      %3667 = vst [vmem:[%s321 + $0x3a8] sm:$0xff] %v3507
      %3668 = vst [vmem:[%s321 + $0x3b0] sm:$0xff] %v3512
      %3669 = vst [vmem:[%s321 + $0x3b8] sm:$0xff] %v3515
      %3670 = vst [vmem:[%s321 + $0x3c0] sm:$0xff] %v3520
      %3671 = vst [vmem:[%s321 + $0x3c8] sm:$0xff] %v3523
      %3672 = vst [vmem:[%s321 + $0x3d0] sm:$0xff] %v3528
      %3673 = vst [vmem:[%s321 + $0x3d8] sm:$0xff] %v3531
      %3674 = vst [vmem:[%s321 + $0x3e0] sm:$0xff] %v3536
      %3675 = vst [vmem:[%s321 + $0x3e8] sm:$0xff] %v3539
      %3676 = vst [vmem:[%s321 + $0x3f0] sm:$0xff] %v3544
      %3677 = vst [vmem:[%s321 + $0x3f8] sm:$0xff] %v3547
      %s3678 = smul.u32 128, %s20
      %p3679 = scmp.lt.s32.totalorder %s3678, 255
      %s3680 = scalar_select %p3679, %s3678, 255
      %s3681 = smul.addr %s3680, 8
      %s3682 = scalar_lea.vmem %s7, %s3681
      %s3683 = smul.u32 128, %s20
      %p3684 = scmp.lt.s32.totalorder %s3683, 255
      %s3685 = scalar_select %p3684, %s3683, 255
      %s3686 = smul.addr %s3685, 8
      %s3687 = scalar_lea.vmem %s8, %s3686
      // Predicated region
      $region49: #{faster_rcnn_forward.2} parent=47 // pred_check
        %p3688 = pneg %p190
      $region50: #{faster_rcnn_forward.2} parent=47 // pred_check_branch
        %3690 = sbr.rel (%p3688) target = $region52
      $region51: #{faster_rcnn_forward.2} parent=47 // pred_region
        %s3691 = smul.u32 128, %s20
      $region52: #{faster_rcnn_forward.2} parent=47 // pred_fallthru
        _
      // Predicated region
      $region53: #{faster_rcnn_forward.2} parent=47 // pred_check
        %p3692 = pneg %p216
      $region54: #{faster_rcnn_forward.2} parent=47 // pred_check_branch
        %3694 = sbr.rel (%p3692) target = $region56
      $region55: #{faster_rcnn_forward.2} parent=47 // pred_region
        %s3695 = smul.u32 128, %s20
      $region56: #{faster_rcnn_forward.2} parent=47 // pred_fallthru
        _
    $region48: #{faster_rcnn_forward.2} parent=5 // pred_fallthru
      _
    %p3696 = scmp.le.s32.totalorder 2, %s15
    // Predicated region
    $region57: #{faster_rcnn_forward.2} parent=5 // pred_check
      %p3697 = pneg %p3696
    $region58: #{faster_rcnn_forward.2} parent=5 // pred_check_branch
      %3699 = sbr.rel (%p3697) target = $region60
    $region59: #{faster_rcnn_forward.2} parent=5 // pred_region
      %s3700 = ssub.s32 %s15, 2
      // Predicated region
      $region61: #{faster_rcnn_forward.2} parent=59 // pred_check
        %p3701 = pneg %p196
      $region62: #{faster_rcnn_forward.2} parent=59 // pred_check_branch
        %3703 = sbr.rel (%p3701) target = $region64
      $region63: #{faster_rcnn_forward.2} parent=59 // pred_region
        %s3704 = smul.u32 128, %s21
        %p3705 = scmp.lt.s32.totalorder %s3704, 255
        %s3706 = scalar_select %p3705, %s3704, 255
        %s3707 = smul.addr %s3706, 8
        %s3708 = scalar_lea.vmem %s7, %s3707
      $region64: #{faster_rcnn_forward.2} parent=59 // pred_fallthru
        _
      // Predicated region
      $region65: #{faster_rcnn_forward.2} parent=59 // pred_check
        %p3709 = pneg %p222
      $region66: #{faster_rcnn_forward.2} parent=59 // pred_check_branch
        %3711 = sbr.rel (%p3709) target = $region68
      $region67: #{faster_rcnn_forward.2} parent=59 // pred_region
        %s3712 = smul.u32 128, %s21
        %p3713 = scmp.lt.s32.totalorder %s3712, 255
        %s3714 = scalar_select %p3713, %s3712, 255
        %s3715 = smul.addr %s3714, 8
        %s3716 = scalar_lea.vmem %s8, %s3715
      $region68: #{faster_rcnn_forward.2} parent=59 // pred_fallthru
        _
    $region60: #{faster_rcnn_forward.2} parent=5 // pred_fallthru
      _
  $region6: #{faster_rcnn_forward.2} parent=0 // loop_footer
    %s19 = sadd.s32 1, %s15
  $region7: #{faster_rcnn_forward.2} parent=0 // loop_footer_branch
    %14 = sbr.rel target = $region3
  $region8: #{faster_rcnn_forward.2} parent=0 // loop_exit
    _

// kernel: faster_rcnn_forward.3
$region0: #{faster_rcnn_forward.3}
  #allocation0 [shape = 'u32[]', space=smem, size = 0x4, offset = 0x4, fixed_abs, tag = 'smem constant byte address 0x4 - core index']
  #allocation1 [shape = 'u32[144,128]{1,0:T(1,128)}', space=vmem, size = 0x12000, scoped, tag = 'internal scratch']
  %s0 = inlined_call_operand.vmem [shape: f32[16,784], index: 0, kind: input, shape index: {}]
  %s1 = inlined_call_operand.vmem [shape: bf16[784,256], index: 1, kind: input, shape index: {}]
  %s2 = inlined_call_operand.vmem [shape: f32[1,256], index: 2, kind: input, shape index: {}]
  %s3 = inlined_call_operand.vmem [shape: bf16[256,256], index: 3, kind: input, shape index: {}]
  %s4 = inlined_call_operand.vmem [shape: f32[1,256], index: 4, kind: input, shape index: {}]
  %s5 = inlined_call_operand.vmem [shape: bf16[256,512], index: 5, kind: input, shape index: {}]
  %s6 = inlined_call_operand.vmem [shape: f32[1,512], index: 6, kind: input, shape index: {}]
  %s7 = inlined_call_operand.vmem [shape: f32[16,512], index: 7, kind: output, shape index: {0}]
  %s8 = inlined_call_operand.hbm [shape: f32[16,128], index: 8, kind: output, shape index: {1}]
  %9 = xla_tuple %s7, %s8
  %s10 = sld [smem:[#allocation0]]
  $region69: #{faster_rcnn_forward.3} parent=0
    _
  %s12 = ssub.s32 1, %s10
  %s13 = scalar_select 0, %s12, %s10
  $region1: #{faster_rcnn_forward.3} parent=0
    #allocation2 [shape = 'u8[8192]{0}', space=vmem, size = 0x2000, scoped, tag = 'output window, operand 1']
    #allocation3 [shape = 's32[2]{0}', space=sflag, size = 0x8, scoped, tag = 'scoped memory for faster_rcnn_forward.3']
    %14 = vsyncpa [#allocation3], 0
    %s15 = scalar_lea.sflag [#allocation3], 1
    %16 = vsyncpa %s15, 0
    loop: start=0, step=1, limit=4
    $region2: #{faster_rcnn_forward.3} parent=1 // loop_pre_header
      _
    $region3: #{faster_rcnn_forward.3} parent=1 // loop_header
      %s18 = sphi 0, %s22
      %p19 = scmp.ge.s32.totalorder %s18, 4
      %s28 = sphi 0, %s30
      %s31 = sphi 0, %s28
      %s32 = sphi 0, %s31
      %s48 = sphi 0, %s32
      %s52 = sphi 0, %s52
      %s54 = sphi 0, %s52
      %s55 = sphi 0, %s54
      %s69 = sphi 0, %s55
      %s73 = sphi 0, %s73
      %s75 = sphi 0, %s73
      %s76 = sphi 0, %s75
      %s90 = sphi 0, %s76
      %s94 = sphi 0, %s94
      %s96 = sphi 0, %s94
      %s97 = sphi 0, %s96
      %s111 = sphi 0, %s97
      %s115 = sphi 0, %s115
      %s117 = sphi 0, %s115
      %s118 = sphi 0, %s117
      %s132 = sphi 0, %s118
      %s136 = sphi 0, %s136
      %s138 = sphi 0, %s136
      %s139 = sphi 0, %s138
      %s153 = sphi 0, %s139
      %s157 = sphi 0, %s157
      %s159 = sphi 0, %s157
      %s160 = sphi 0, %s159
      %s174 = sphi 0, %s160
      %s180 = sphi 0, %s182
      %s183 = sphi 0, %s180
      %s184 = sphi 0, %s183
      %s200 = sphi 0, %s184
      %s206 = sphi 0, %s208
      %s209 = sphi 0, %s206
      %s210 = sphi 0, %s209
      %s226 = sphi 0, %s210
    $region4: #{faster_rcnn_forward.3} parent=1 // loop_header_branch
      %21 = sbr.rel (%p19) target = $region8
    $region5: #{faster_rcnn_forward.3} parent=1 // loop_body
      %s23 = ssub.s32 %s18, 1
      %s24 = ssub.s32 %s18, 2
      %s25 = sadd.s32 %s18, 1
      %s26 = ssub.s32 %s18, %s25
      %p27 = scmp.eq.s32.totalorder %s26, 0
      %s29 = sadd.s32 %s28, 1
      %s30 = scalar_select %p27, %s28, %s29
      %p33 = pneg %p27
      %p34 = scmp.eq.s32.totalorder %s18, 1
      %p35 = por %p33, %p34
      %p36 = scmp.ne.s32.totalorder %s28, %s31
      %p37 = scmp.eq.s32.totalorder %s18, 0
      %p38 = por %p36, %p37
      %p39 = scmp.ne.s32.totalorder %s28, %s31
      %p40 = scmp.eq.s32.totalorder %s23, 1
      %p41 = por %p39, %p40
      %p42 = scmp.ne.s32.totalorder %s31, %s32
      %p43 = scmp.eq.s32.totalorder %s23, 0
      %p44 = por %p42, %p43
      %p45 = scmp.ne.s32.totalorder %s31, %s32
      %p46 = scmp.eq.s32.totalorder %s24, 1
      %p47 = por %p45, %p46
      %p49 = scmp.ne.s32.totalorder %s32, %s48
      %p50 = scmp.eq.s32.totalorder %s24, 0
      %p51 = por %p49, %p50
      %s53 = sadd.s32 %s52, 1
      %p56 = scmp.eq.s32.totalorder %s18, 1
      %p57 = scmp.ne.s32.totalorder %s52, %s54
      %p58 = scmp.eq.s32.totalorder %s18, 0
      %p59 = por %p57, %p58
      %p60 = scmp.ne.s32.totalorder %s52, %s54
      %p61 = scmp.eq.s32.totalorder %s23, 1
      %p62 = por %p60, %p61
      %p63 = scmp.ne.s32.totalorder %s54, %s55
      %p64 = scmp.eq.s32.totalorder %s23, 0
      %p65 = por %p63, %p64
      %p66 = scmp.ne.s32.totalorder %s54, %s55
      %p67 = scmp.eq.s32.totalorder %s24, 1
      %p68 = por %p66, %p67
      %p70 = scmp.ne.s32.totalorder %s55, %s69
      %p71 = scmp.eq.s32.totalorder %s24, 0
      %p72 = por %p70, %p71
      %s74 = sadd.s32 %s73, 1
      %p77 = scmp.eq.s32.totalorder %s18, 1
      %p78 = scmp.ne.s32.totalorder %s73, %s75
      %p79 = scmp.eq.s32.totalorder %s18, 0
      %p80 = por %p78, %p79
      %p81 = scmp.ne.s32.totalorder %s73, %s75
      %p82 = scmp.eq.s32.totalorder %s23, 1
      %p83 = por %p81, %p82
      %p84 = scmp.ne.s32.totalorder %s75, %s76
      %p85 = scmp.eq.s32.totalorder %s23, 0
      %p86 = por %p84, %p85
      %p87 = scmp.ne.s32.totalorder %s75, %s76
      %p88 = scmp.eq.s32.totalorder %s24, 1
      %p89 = por %p87, %p88
      %p91 = scmp.ne.s32.totalorder %s76, %s90
      %p92 = scmp.eq.s32.totalorder %s24, 0
      %p93 = por %p91, %p92
      %s95 = sadd.s32 %s94, 1
      %p98 = scmp.eq.s32.totalorder %s18, 1
      %p99 = scmp.ne.s32.totalorder %s94, %s96
      %p100 = scmp.eq.s32.totalorder %s18, 0
      %p101 = por %p99, %p100
      %p102 = scmp.ne.s32.totalorder %s94, %s96
      %p103 = scmp.eq.s32.totalorder %s23, 1
      %p104 = por %p102, %p103
      %p105 = scmp.ne.s32.totalorder %s96, %s97
      %p106 = scmp.eq.s32.totalorder %s23, 0
      %p107 = por %p105, %p106
      %p108 = scmp.ne.s32.totalorder %s96, %s97
      %p109 = scmp.eq.s32.totalorder %s24, 1
      %p110 = por %p108, %p109
      %p112 = scmp.ne.s32.totalorder %s97, %s111
      %p113 = scmp.eq.s32.totalorder %s24, 0
      %p114 = por %p112, %p113
      %s116 = sadd.s32 %s115, 1
      %p119 = scmp.eq.s32.totalorder %s18, 1
      %p120 = scmp.ne.s32.totalorder %s115, %s117
      %p121 = scmp.eq.s32.totalorder %s18, 0
      %p122 = por %p120, %p121
      %p123 = scmp.ne.s32.totalorder %s115, %s117
      %p124 = scmp.eq.s32.totalorder %s23, 1
      %p125 = por %p123, %p124
      %p126 = scmp.ne.s32.totalorder %s117, %s118
      %p127 = scmp.eq.s32.totalorder %s23, 0
      %p128 = por %p126, %p127
      %p129 = scmp.ne.s32.totalorder %s117, %s118
      %p130 = scmp.eq.s32.totalorder %s24, 1
      %p131 = por %p129, %p130
      %p133 = scmp.ne.s32.totalorder %s118, %s132
      %p134 = scmp.eq.s32.totalorder %s24, 0
      %p135 = por %p133, %p134
      %s137 = sadd.s32 %s136, 1
      %p140 = scmp.eq.s32.totalorder %s18, 1
      %p141 = scmp.ne.s32.totalorder %s136, %s138
      %p142 = scmp.eq.s32.totalorder %s18, 0
      %p143 = por %p141, %p142
      %p144 = scmp.ne.s32.totalorder %s136, %s138
      %p145 = scmp.eq.s32.totalorder %s23, 1
      %p146 = por %p144, %p145
      %p147 = scmp.ne.s32.totalorder %s138, %s139
      %p148 = scmp.eq.s32.totalorder %s23, 0
      %p149 = por %p147, %p148
      %p150 = scmp.ne.s32.totalorder %s138, %s139
      %p151 = scmp.eq.s32.totalorder %s24, 1
      %p152 = por %p150, %p151
      %p154 = scmp.ne.s32.totalorder %s139, %s153
      %p155 = scmp.eq.s32.totalorder %s24, 0
      %p156 = por %p154, %p155
      %s158 = sadd.s32 %s157, 1
      %p161 = scmp.eq.s32.totalorder %s18, 1
      %p162 = scmp.ne.s32.totalorder %s157, %s159
      %p163 = scmp.eq.s32.totalorder %s18, 0
      %p164 = por %p162, %p163
      %p165 = scmp.ne.s32.totalorder %s157, %s159
      %p166 = scmp.eq.s32.totalorder %s23, 1
      %p167 = por %p165, %p166
      %p168 = scmp.ne.s32.totalorder %s159, %s160
      %p169 = scmp.eq.s32.totalorder %s23, 0
      %p170 = por %p168, %p169
      %p171 = scmp.ne.s32.totalorder %s159, %s160
      %p172 = scmp.eq.s32.totalorder %s24, 1
      %p173 = por %p171, %p172
      %p175 = scmp.ne.s32.totalorder %s160, %s174
      %p176 = scmp.eq.s32.totalorder %s24, 0
      %p177 = por %p175, %p176
      %s178 = ssub.s32 %s18, %s25
      %p179 = scmp.eq.s32.totalorder %s178, 0
      %s181 = sadd.s32 %s180, 1
      %s182 = scalar_select %p179, %s180, %s181
      %p185 = pneg %p179
      %p186 = scmp.eq.s32.totalorder %s18, 1
      %p187 = por %p185, %p186
      %p188 = scmp.ne.s32.totalorder %s180, %s183
      %p189 = scmp.eq.s32.totalorder %s18, 0
      %p190 = por %p188, %p189
      %p191 = scmp.ne.s32.totalorder %s180, %s183
      %p192 = scmp.eq.s32.totalorder %s23, 1
      %p193 = por %p191, %p192
      %p194 = scmp.ne.s32.totalorder %s183, %s184
      %p195 = scmp.eq.s32.totalorder %s23, 0
      %p196 = por %p194, %p195
      %p197 = scmp.ne.s32.totalorder %s183, %s184
      %p198 = scmp.eq.s32.totalorder %s24, 1
      %p199 = por %p197, %p198
      %p201 = scmp.ne.s32.totalorder %s184, %s200
      %p202 = scmp.eq.s32.totalorder %s24, 0
      %p203 = por %p201, %p202
      %s204 = ssub.s32 %s18, %s25
      %p205 = scmp.eq.s32.totalorder %s204, 0
      %s207 = sadd.s32 %s206, 1
      %s208 = scalar_select %p205, %s206, %s207
      %p211 = pneg %p205
      %p212 = scmp.eq.s32.totalorder %s18, 1
      %p213 = por %p211, %p212
      %p214 = scmp.ne.s32.totalorder %s206, %s209
      %p215 = scmp.eq.s32.totalorder %s18, 0
      %p216 = por %p214, %p215
      %p217 = scmp.ne.s32.totalorder %s206, %s209
      %p218 = scmp.eq.s32.totalorder %s23, 1
      %p219 = por %p217, %p218
      %p220 = scmp.ne.s32.totalorder %s209, %s210
      %p221 = scmp.eq.s32.totalorder %s23, 0
      %p222 = por %p220, %p221
      %p223 = scmp.ne.s32.totalorder %s209, %s210
      %p224 = scmp.eq.s32.totalorder %s24, 1
      %p225 = por %p223, %p224
      %p227 = scmp.ne.s32.totalorder %s210, %s226
      %p228 = scmp.eq.s32.totalorder %s24, 0
      %p229 = por %p227, %p228
      %p230 = scmp.le.s32.totalorder 1, %s18
      %p231 = scmp.lt.s32.totalorder %s18, 3
      %p232 = pnand %p230, %p231
      %p233 = pneg %p232
      // Predicated region
      $region9: #{faster_rcnn_forward.3} parent=5 // pred_check
        _
      $region10: #{faster_rcnn_forward.3} parent=5 // pred_check_branch
        %235 = sbr.rel (%p232) target = $region12
      $region11: #{faster_rcnn_forward.3} parent=5 // pred_region
        %s236 = ssub.s32 %s18, 1
        // Predicated region
        $region13: #{faster_rcnn_forward.3} parent=11 // pred_check
          %p237 = pneg %p65
        $region14: #{faster_rcnn_forward.3} parent=11 // pred_check_branch
          %239 = sbr.rel (%p237) target = $region16
        $region15: #{faster_rcnn_forward.3} parent=11 // pred_region
          _
        $region16: #{faster_rcnn_forward.3} parent=11 // pred_fallthru
          _
        // Predicated region
        $region17: #{faster_rcnn_forward.3} parent=11 // pred_check
          %p240 = pneg %p86
        $region18: #{faster_rcnn_forward.3} parent=11 // pred_check_branch
          %242 = sbr.rel (%p240) target = $region20
        $region19: #{faster_rcnn_forward.3} parent=11 // pred_region
          _
        $region20: #{faster_rcnn_forward.3} parent=11 // pred_fallthru
          _
        // Predicated region
        $region21: #{faster_rcnn_forward.3} parent=11 // pred_check
          %p243 = pneg %p107
        $region22: #{faster_rcnn_forward.3} parent=11 // pred_check_branch
          %245 = sbr.rel (%p243) target = $region24
        $region23: #{faster_rcnn_forward.3} parent=11 // pred_region
          _
        $region24: #{faster_rcnn_forward.3} parent=11 // pred_fallthru
          _
        // Predicated region
        $region25: #{faster_rcnn_forward.3} parent=11 // pred_check
          %p246 = pneg %p128
        $region26: #{faster_rcnn_forward.3} parent=11 // pred_check_branch
          %248 = sbr.rel (%p246) target = $region28
        $region27: #{faster_rcnn_forward.3} parent=11 // pred_region
          _
        $region28: #{faster_rcnn_forward.3} parent=11 // pred_fallthru
          _
        // Predicated region
        $region29: #{faster_rcnn_forward.3} parent=11 // pred_check
          %p249 = pneg %p149
        $region30: #{faster_rcnn_forward.3} parent=11 // pred_check_branch
          %251 = sbr.rel (%p249) target = $region32
        $region31: #{faster_rcnn_forward.3} parent=11 // pred_region
          _
        $region32: #{faster_rcnn_forward.3} parent=11 // pred_fallthru
          _
        // Predicated region
        $region33: #{faster_rcnn_forward.3} parent=11 // pred_check
          %p252 = pneg %p170
        $region34: #{faster_rcnn_forward.3} parent=11 // pred_check_branch
          %254 = sbr.rel (%p252) target = $region36
        $region35: #{faster_rcnn_forward.3} parent=11 // pred_region
          _
        $region36: #{faster_rcnn_forward.3} parent=11 // pred_fallthru
          _
      $region12: #{faster_rcnn_forward.3} parent=5 // pred_fallthru
        _
      %p255 = scmp.lt.s32.totalorder %s18, 2
      // Predicated region
      $region37: #{faster_rcnn_forward.3} parent=5 // pred_check
        %p256 = pneg %p255
      $region38: #{faster_rcnn_forward.3} parent=5 // pred_check_branch
        %258 = sbr.rel (%p256) target = $region40
      $region39: #{faster_rcnn_forward.3} parent=5 // pred_region
        // Predicated region
        $region41: #{faster_rcnn_forward.3} parent=39 // pred_check
          %p259 = pneg %p38
        $region42: #{faster_rcnn_forward.3} parent=39 // pred_check_branch
          %261 = sbr.rel (%p259) target = $region44
        $region43: #{faster_rcnn_forward.3} parent=39 // pred_region
          %p262 = scmp.lt.s32.totalorder %s18, 1
          %s263 = scalar_select %p262, %s18, 1
          %s264 = smul.addr %s263, 7
          %s265 = smul.addr %s264, 8
          %s266 = scalar_lea.vmem %s0, %s265
        $region44: #{faster_rcnn_forward.3} parent=39 // pred_fallthru
          _
      $region40: #{faster_rcnn_forward.3} parent=5 // pred_fallthru
        _
      %p267 = scmp.le.s32.totalorder 1, %s18
      %p268 = scmp.lt.s32.totalorder %s18, 3
      %p269 = pnand %p267, %p268
      %p270 = pneg %p269
      // Predicated region
      $region45: #{faster_rcnn_forward.3} parent=5 // pred_check
        _
      $region46: #{faster_rcnn_forward.3} parent=5 // pred_check_branch
        %272 = sbr.rel (%p269) target = $region48
      $region47: #{faster_rcnn_forward.3} parent=5 // pred_region
        %s273 = ssub.s32 %s18, 1
        %p274 = scmp.lt.s32.totalorder %s23, 1
        %s275 = scalar_select %p274, %s23, 1
        %s276 = smul.addr %s275, 7
        %s277 = smul.addr %s276, 8
        %s278 = scalar_lea.vmem %s0, %s277
        %p279 = pneg %p44
        %p280 = pneg %p41
        %p281 = pneg %p65
        %p282 = pneg %p62
        %p283 = pneg %p86
        %p284 = pneg %p83
        %p285 = pneg %p107
        %p286 = pneg %p104
        %p287 = pneg %p128
        %p288 = pneg %p125
        %p289 = pneg %p149
        %p290 = pneg %p146
        %p291 = pneg %p170
        %p292 = pneg %p167
        %p293 = pneg %p196
        %p294 = pneg %p193
        %p295 = scmp.lt.s32.totalorder %s23, 1
        %s296 = scalar_select %p295, %s23, 1
        %s297 = smul.addr %s296, 4
        %s298 = smul.addr %s297, 8
        %s299 = scalar_lea.vmem %s7, %s298
        %p300 = pneg %p222
        %p301 = pneg %p219
        %s302 = sand.u32 %s209, 1
        %s303 = scalar_lea.sflag [#allocation3], %s302
        %s304 = sand.u32 %s209, 1
        %s305 = smul.addr %s304, 8
        %s306 = scalar_lea.vmem [#allocation2], %s305
        %p307 = scmp.lt.s32.totalorder %s23, 1
        %s308 = scalar_select %p307, %s23, 1
        %s309 = smul.addr %s308, 7
        %s310 = smul.addr %s309, 8
        %s311 = scalar_lea.vmem %s0, %s310
        %p312 = scmp.lt.s32.totalorder %s23, 1
        %s313 = scalar_select %p312, %s23, 1
        %s314 = smul.addr %s313, 4
        %s315 = smul.addr %s314, 8
        %s316 = scalar_lea.vmem %s7, %s315
        %v318 = vld [vmem:[%s311] sm:$0xff]
        %v319 = vld [vmem:[%s311 + $0x8] sm:$0xff]
        %v320 = vld [vmem:[%s311 + $0x10] sm:$0xff]
        %v321 = vld [vmem:[%s311 + $0x18] sm:$0xff]
        %v322 = vld [vmem:[%s311 + $0x20] sm:$0xff]
        %v323 = vld [vmem:[%s311 + $0x28] sm:$0xff]
        %v324 = vld [vmem:[%s311 + $0x30] sm:$0xff]
        %v325 = vpack.c.bf16 %v318, %v318
        %v326 = vpack.c.bf16 %v319, %v319
        %v327 = vpack.c.bf16 %v320, %v320
        %v328 = vpack.c.bf16 %v321, %v321
        %v329 = vpack.c.bf16 %v322, %v322
        %v330 = vpack.c.bf16 %v323, %v323
        %v331 = vpack.c.bf16 %v324, %v324
        %v332 = vld [vmem:[%s1] sm:$0xff]
        %v333 = vld [vmem:[%s1 + $0x8] sm:$0xff]
        %v334 = vld [vmem:[%s1 + $0x10] sm:$0xff]
        %v335 = vld [vmem:[%s1 + $0x18] sm:$0xff]
        %v336 = vld [vmem:[%s1 + $0x20] sm:$0xff]
        %v337 = vld [vmem:[%s1 + $0x28] sm:$0xff]
        %v338 = vld [vmem:[%s1 + $0x30] sm:$0xff]
        %v339 = vld [vmem:[%s1 + $0x38] sm:$0xff]
        %v340 = vld [vmem:[%s1 + $0x40] sm:$0xff]
        %v341 = vld [vmem:[%s1 + $0x48] sm:$0xff]
        %v342 = vld [vmem:[%s1 + $0x50] sm:$0xff]
        %v343 = vld [vmem:[%s1 + $0x58] sm:$0xff]
        %v344 = vld [vmem:[%s1 + $0x60] sm:$0xff]
        %v345 = vld [vmem:[%s1 + $0x68] sm:$0xff]
        %v346 = vld [vmem:[%s1 + $0x70] sm:$0xff]
        %v347 = vld [vmem:[%s1 + $0x78] sm:$0xff]
        %v348 = vld [vmem:[%s1 + $0x80] sm:$0xff]
        %v349 = vld [vmem:[%s1 + $0x88] sm:$0xff]
        %v350 = vld [vmem:[%s1 + $0x90] sm:$0xff]
        %v351 = vld [vmem:[%s1 + $0x98] sm:$0xff]
        %v352 = vld [vmem:[%s1 + $0xa0] sm:$0xff]
        %v353 = vld [vmem:[%s1 + $0xa8] sm:$0xff]
        %v354 = vld [vmem:[%s1 + $0xb0] sm:$0xff]
        %v355 = vld [vmem:[%s1 + $0xb8] sm:$0xff]
        %v356 = vld [vmem:[%s1 + $0xc0] sm:$0xff]
        %v357 = vld [vmem:[%s1 + $0xc8] sm:$0xff]
        %v358 = vld [vmem:[%s1 + $0xd0] sm:$0xff]
        %v359 = vld [vmem:[%s1 + $0xd8] sm:$0xff]
        %v360 = vld [vmem:[%s1 + $0xe0] sm:$0xff]
        %v361 = vld [vmem:[%s1 + $0xe8] sm:$0xff]
        %v362 = vld [vmem:[%s1 + $0xf0] sm:$0xff]
        %v363 = vld [vmem:[%s1 + $0xf8] sm:$0xff]
        %v364 = vld [vmem:[%s1 + $0x100] sm:$0xff]
        %v365 = vld [vmem:[%s1 + $0x108] sm:$0xff]
        %v366 = vld [vmem:[%s1 + $0x110] sm:$0xff]
        %v367 = vld [vmem:[%s1 + $0x118] sm:$0xff]
        %v368 = vld [vmem:[%s1 + $0x120] sm:$0xff]
        %v369 = vld [vmem:[%s1 + $0x128] sm:$0xff]
        %v370 = vld [vmem:[%s1 + $0x130] sm:$0xff]
        %v371 = vld [vmem:[%s1 + $0x138] sm:$0xff]
        %v372 = vld [vmem:[%s1 + $0x140] sm:$0xff]
        %v373 = vld [vmem:[%s1 + $0x148] sm:$0xff]
        %v374 = vld [vmem:[%s1 + $0x150] sm:$0xff]
        %v375 = vld [vmem:[%s1 + $0x158] sm:$0xff]
        %v376 = vld [vmem:[%s1 + $0x160] sm:$0xff]
        %v377 = vld [vmem:[%s1 + $0x168] sm:$0xff]
        %v378 = vld [vmem:[%s1 + $0x170] sm:$0xff]
        %v379 = vld [vmem:[%s1 + $0x178] sm:$0xff]
        %v380 = vld [vmem:[%s1 + $0x180] sm:$0xff]
        %v381 = vld [vmem:[%s1 + $0x188] sm:$0xff]
        %v382 = vld [vmem:[%s1 + $0x190] sm:$0xff]
        %v383 = vld [vmem:[%s1 + $0x198] sm:$0xff]
        %v384 = vld [vmem:[%s1 + $0x1a0] sm:$0xff]
        %v385 = vld [vmem:[%s1 + $0x1a8] sm:$0xff]
        %v386 = vld [vmem:[%s1 + $0x1b0] sm:$0xff]
        %v387 = vld [vmem:[%s1 + $0x1b8] sm:$0xff]
        %v388 = vld [vmem:[%s1 + $0x1c0] sm:$0xff]
        %v389 = vld [vmem:[%s1 + $0x1c8] sm:$0xff]
        %v390 = vld [vmem:[%s1 + $0x1d0] sm:$0xff]
        %v391 = vld [vmem:[%s1 + $0x1d8] sm:$0xff]
        %v392 = vld [vmem:[%s1 + $0x1e0] sm:$0xff]
        %v393 = vld [vmem:[%s1 + $0x1e8] sm:$0xff]
        %v394 = vld [vmem:[%s1 + $0x1f0] sm:$0xff]
        %v395 = vld [vmem:[%s1 + $0x1f8] sm:$0xff]
        %v396 = vld [vmem:[%s1 + $0x200] sm:$0xff]
        %v397 = vld [vmem:[%s1 + $0x208] sm:$0xff]
        %v398 = vld [vmem:[%s1 + $0x210] sm:$0xff]
        %v399 = vld [vmem:[%s1 + $0x218] sm:$0xff]
        %v400 = vld [vmem:[%s1 + $0x220] sm:$0xff]
        %v401 = vld [vmem:[%s1 + $0x228] sm:$0xff]
        %v402 = vld [vmem:[%s1 + $0x230] sm:$0xff]
        %v403 = vld [vmem:[%s1 + $0x238] sm:$0xff]
        %v404 = vld [vmem:[%s1 + $0x240] sm:$0xff]
        %v405 = vld [vmem:[%s1 + $0x248] sm:$0xff]
        %v406 = vld [vmem:[%s1 + $0x250] sm:$0xff]
        %v407 = vld [vmem:[%s1 + $0x258] sm:$0xff]
        %v408 = vld [vmem:[%s1 + $0x260] sm:$0xff]
        %v409 = vld [vmem:[%s1 + $0x268] sm:$0xff]
        %v410 = vld [vmem:[%s1 + $0x270] sm:$0xff]
        %v411 = vld [vmem:[%s1 + $0x278] sm:$0xff]
        %v412 = vld [vmem:[%s1 + $0x280] sm:$0xff]
        %v413 = vld [vmem:[%s1 + $0x288] sm:$0xff]
        %v414 = vld [vmem:[%s1 + $0x290] sm:$0xff]
        %v415 = vld [vmem:[%s1 + $0x298] sm:$0xff]
        %v416 = vld [vmem:[%s1 + $0x2a0] sm:$0xff]
        %v417 = vld [vmem:[%s1 + $0x2a8] sm:$0xff]
        %v418 = vld [vmem:[%s1 + $0x2b0] sm:$0xff]
        %v419 = vld [vmem:[%s1 + $0x2b8] sm:$0xff]
        %v420 = vld [vmem:[%s1 + $0x2c0] sm:$0xff]
        %v421 = vld [vmem:[%s1 + $0x2c8] sm:$0xff]
        %v422 = vld [vmem:[%s1 + $0x2d0] sm:$0xff]
        %v423 = vld [vmem:[%s1 + $0x2d8] sm:$0xff]
        %v424 = vld [vmem:[%s1 + $0x2e0] sm:$0xff]
        %v425 = vld [vmem:[%s1 + $0x2e8] sm:$0xff]
        %v426 = vld [vmem:[%s1 + $0x2f0] sm:$0xff]
        %v427 = vld [vmem:[%s1 + $0x2f8] sm:$0xff]
        %v428 = vld [vmem:[%s1 + $0x300] sm:$0xff]
        %v429 = vld [vmem:[%s1 + $0x308] sm:$0xff]
        %v430 = vld [vmem:[%s2] sm:$0x3]
        %v432 = vlaneseq
        %v433 = vshrl.u32 %v432, 7
        %v434 = vsub.s32 0, %v433
        %v435 = vrot.slane %v430, %v434
        %v436 = vlaneseq
        %v437 = vshrl.u32 %v436, 7
        %v438 = vsub.s32 1, %v437
        %v439 = vrot.slane %v430, %v438
        %v540 = vunpack.c.l.b16 %v332
        %v541 = vunpack.c.h.b16 %v332
        %v542 = vunpack.c.l.b16 %v333
        %v543 = vunpack.c.h.b16 %v333
        %v544 = vunpack.c.l.b16 %v334
        %v545 = vunpack.c.h.b16 %v334
        %v546 = vunpack.c.l.b16 %v335
        %v547 = vunpack.c.h.b16 %v335
        %v548 = vunpack.c.l.b16 %v336
        %v549 = vunpack.c.h.b16 %v336
        %v550 = vunpack.c.l.b16 %v337
        %v551 = vunpack.c.h.b16 %v337
        %v552 = vunpack.c.l.b16 %v338
        %v553 = vunpack.c.h.b16 %v338
        %v554 = vunpack.c.l.b16 %v339
        %v555 = vunpack.c.h.b16 %v339
        %v556 = vunpack.c.l.b16 %v340
        %v557 = vunpack.c.h.b16 %v340
        %v558 = vunpack.c.l.b16 %v341
        %v559 = vunpack.c.h.b16 %v341
        %v560 = vunpack.c.l.b16 %v342
        %v561 = vunpack.c.h.b16 %v342
        %v562 = vunpack.c.l.b16 %v343
        %v563 = vunpack.c.h.b16 %v343
        %v564 = vunpack.c.l.b16 %v344
        %v565 = vunpack.c.h.b16 %v344
        %v566 = vunpack.c.l.b16 %v345
        %v567 = vunpack.c.h.b16 %v345
        %v568 = vunpack.c.l.b16 %v346
        %v569 = vunpack.c.h.b16 %v346
        %v570 = vunpack.c.l.b16 %v347
        %v571 = vunpack.c.h.b16 %v347
        %v572 = vunpack.c.l.b16 %v348
        %v573 = vunpack.c.h.b16 %v348
        %v574 = vunpack.c.l.b16 %v349
        %v575 = vunpack.c.h.b16 %v349
        %v576 = vunpack.c.l.b16 %v350
        %v577 = vunpack.c.h.b16 %v350
        %v578 = vunpack.c.l.b16 %v351
        %v579 = vunpack.c.h.b16 %v351
        %v580 = vunpack.c.l.b16 %v352
        %v581 = vunpack.c.h.b16 %v352
        %v582 = vunpack.c.l.b16 %v353
        %v583 = vunpack.c.h.b16 %v353
        %v584 = vunpack.c.l.b16 %v354
        %v585 = vunpack.c.h.b16 %v354
        %v586 = vunpack.c.l.b16 %v355
        %v587 = vunpack.c.h.b16 %v355
        %v588 = vunpack.c.l.b16 %v356
        %v589 = vunpack.c.h.b16 %v356
        %v590 = vunpack.c.l.b16 %v357
        %v591 = vunpack.c.h.b16 %v357
        %v592 = vunpack.c.l.b16 %v358
        %v593 = vunpack.c.h.b16 %v358
        %v594 = vunpack.c.l.b16 %v359
        %v595 = vunpack.c.h.b16 %v359
        %v596 = vunpack.c.l.b16 %v360
        %v597 = vunpack.c.h.b16 %v360
        %v598 = vunpack.c.l.b16 %v361
        %v599 = vunpack.c.h.b16 %v361
        %v600 = vunpack.c.l.b16 %v362
        %v601 = vunpack.c.h.b16 %v362
        %v602 = vunpack.c.l.b16 %v363
        %v603 = vunpack.c.h.b16 %v363
        %v604 = vunpack.c.l.b16 %v364
        %v605 = vunpack.c.h.b16 %v364
        %v606 = vunpack.c.l.b16 %v365
        %v607 = vunpack.c.h.b16 %v365
        %v608 = vunpack.c.l.b16 %v366
        %v609 = vunpack.c.h.b16 %v366
        %v610 = vunpack.c.l.b16 %v367
        %v611 = vunpack.c.h.b16 %v367
        %v612 = vunpack.c.l.b16 %v368
        %v613 = vunpack.c.h.b16 %v368
        %v614 = vunpack.c.l.b16 %v369
        %v615 = vunpack.c.h.b16 %v369
        %v616 = vunpack.c.l.b16 %v370
        %v617 = vunpack.c.h.b16 %v370
        %v618 = vunpack.c.l.b16 %v371
        %v619 = vunpack.c.h.b16 %v371
        %v620 = vunpack.c.l.b16 %v372
        %v621 = vunpack.c.h.b16 %v372
        %v622 = vunpack.c.l.b16 %v373
        %v623 = vunpack.c.h.b16 %v373
        %v624 = vunpack.c.l.b16 %v374
        %v625 = vunpack.c.h.b16 %v374
        %v626 = vunpack.c.l.b16 %v375
        %v627 = vunpack.c.h.b16 %v375
        %v628 = vunpack.c.l.b16 %v376
        %v629 = vunpack.c.h.b16 %v376
        %v630 = vunpack.c.l.b16 %v377
        %v631 = vunpack.c.h.b16 %v377
        %v632 = vunpack.c.l.b16 %v378
        %v633 = vunpack.c.h.b16 %v378
        %v634 = vunpack.c.l.b16 %v379
        %v635 = vunpack.c.h.b16 %v379
        %v636 = vunpack.c.l.b16 %v380
        %v637 = vunpack.c.h.b16 %v380
        %v638 = vunpack.c.l.b16 %v381
        %v639 = vunpack.c.h.b16 %v381
        %v640 = vunpack.c.l.b16 %v382
        %v641 = vunpack.c.h.b16 %v382
        %v642 = vunpack.c.l.b16 %v383
        %v643 = vunpack.c.h.b16 %v383
        %v644 = vunpack.c.l.b16 %v384
        %v645 = vunpack.c.h.b16 %v384
        %v646 = vunpack.c.l.b16 %v385
        %v647 = vunpack.c.h.b16 %v385
        %v648 = vunpack.c.l.b16 %v386
        %v649 = vunpack.c.h.b16 %v386
        %v650 = vunpack.c.l.b16 %v387
        %v651 = vunpack.c.h.b16 %v387
        %v652 = vunpack.c.l.b16 %v388
        %v653 = vunpack.c.h.b16 %v388
        %v654 = vunpack.c.l.b16 %v389
        %v655 = vunpack.c.h.b16 %v389
        %v656 = vunpack.c.l.b16 %v390
        %v657 = vunpack.c.h.b16 %v390
        %v658 = vunpack.c.l.b16 %v391
        %v659 = vunpack.c.h.b16 %v391
        %v660 = vunpack.c.l.b16 %v392
        %v661 = vunpack.c.h.b16 %v392
        %v662 = vunpack.c.l.b16 %v393
        %v663 = vunpack.c.h.b16 %v393
        %v664 = vunpack.c.l.b16 %v394
        %v665 = vunpack.c.h.b16 %v394
        %v666 = vunpack.c.l.b16 %v395
        %v667 = vunpack.c.h.b16 %v395
        %v668 = vunpack.c.l.b16 %v396
        %v669 = vunpack.c.h.b16 %v396
        %v670 = vunpack.c.l.b16 %v397
        %v671 = vunpack.c.h.b16 %v397
        %v672 = vunpack.c.l.b16 %v398
        %v673 = vunpack.c.h.b16 %v398
        %v674 = vunpack.c.l.b16 %v399
        %v675 = vunpack.c.h.b16 %v399
        %v676 = vunpack.c.l.b16 %v400
        %v677 = vunpack.c.h.b16 %v400
        %v678 = vunpack.c.l.b16 %v401
        %v679 = vunpack.c.h.b16 %v401
        %v680 = vunpack.c.l.b16 %v402
        %v681 = vunpack.c.h.b16 %v402
        %v682 = vunpack.c.l.b16 %v403
        %v683 = vunpack.c.h.b16 %v403
        %v684 = vunpack.c.l.b16 %v404
        %v685 = vunpack.c.h.b16 %v404
        %v686 = vunpack.c.l.b16 %v405
        %v687 = vunpack.c.h.b16 %v405
        %v688 = vunpack.c.l.b16 %v406
        %v689 = vunpack.c.h.b16 %v406
        %v690 = vunpack.c.l.b16 %v407
        %v691 = vunpack.c.h.b16 %v407
        %v692 = vunpack.c.l.b16 %v408
        %v693 = vunpack.c.h.b16 %v408
        %v694 = vunpack.c.l.b16 %v409
        %v695 = vunpack.c.h.b16 %v409
        %v696 = vunpack.c.l.b16 %v410
        %v697 = vunpack.c.h.b16 %v410
        %v698 = vunpack.c.l.b16 %v411
        %v699 = vunpack.c.h.b16 %v411
        %v700 = vunpack.c.l.b16 %v412
        %v701 = vunpack.c.h.b16 %v412
        %v702 = vunpack.c.l.b16 %v413
        %v703 = vunpack.c.h.b16 %v413
        %v704 = vunpack.c.l.b16 %v414
        %v705 = vunpack.c.h.b16 %v414
        %v706 = vunpack.c.l.b16 %v415
        %v707 = vunpack.c.h.b16 %v415
        %v708 = vunpack.c.l.b16 %v416
        %v709 = vunpack.c.h.b16 %v416
        %v710 = vunpack.c.l.b16 %v417
        %v711 = vunpack.c.h.b16 %v417
        %v712 = vunpack.c.l.b16 %v418
        %v713 = vunpack.c.h.b16 %v418
        %v714 = vunpack.c.l.b16 %v419
        %v715 = vunpack.c.h.b16 %v419
        %v716 = vunpack.c.l.b16 %v420
        %v717 = vunpack.c.h.b16 %v420
        %v718 = vunpack.c.l.b16 %v421
        %v719 = vunpack.c.h.b16 %v421
        %v720 = vunpack.c.l.b16 %v422
        %v721 = vunpack.c.h.b16 %v422
        %v722 = vunpack.c.l.b16 %v423
        %v723 = vunpack.c.h.b16 %v423
        %v724 = vunpack.c.l.b16 %v424
        %v725 = vunpack.c.h.b16 %v424
        %v726 = vunpack.c.l.b16 %v425
        %v727 = vunpack.c.h.b16 %v425
        %v728 = vunpack.c.l.b16 %v426
        %v729 = vunpack.c.h.b16 %v426
        %v730 = vunpack.c.l.b16 %v427
        %v731 = vunpack.c.h.b16 %v427
        %v732 = vunpack.c.l.b16 %v428
        %v733 = vunpack.c.h.b16 %v428
        %v734 = vunpack.c.l.b16 %v429
        %v735 = vunpack.c.h.b16 %v429
        %v736 = vpack.c.b16 %v542, %v540
        %v737 = vpack.c.b16 %v543, %v541
        %v738 = vpack.c.b16 %v546, %v544
        %v739 = vpack.c.b16 %v547, %v545
        %v740 = vpack.c.b16 %v550, %v548
        %v741 = vpack.c.b16 %v551, %v549
        %v742 = vpack.c.b16 %v554, %v552
        %v743 = vpack.c.b16 %v555, %v553
        %v744 = vpack.c.b16 %v558, %v556
        %v745 = vpack.c.b16 %v559, %v557
        %v746 = vpack.c.b16 %v562, %v560
        %v747 = vpack.c.b16 %v563, %v561
        %v748 = vpack.c.b16 %v566, %v564
        %v749 = vpack.c.b16 %v567, %v565
        %v750 = vpack.c.b16 %v570, %v568
        %v751 = vpack.c.b16 %v571, %v569
        %v752 = vpack.c.b16 %v574, %v572
        %v753 = vpack.c.b16 %v575, %v573
        %v754 = vpack.c.b16 %v578, %v576
        %v755 = vpack.c.b16 %v579, %v577
        %v756 = vpack.c.b16 %v582, %v580
        %v757 = vpack.c.b16 %v583, %v581
        %v758 = vpack.c.b16 %v586, %v584
        %v759 = vpack.c.b16 %v587, %v585
        %v760 = vpack.c.b16 %v590, %v588
        %v761 = vpack.c.b16 %v591, %v589
        %v762 = vpack.c.b16 %v594, %v592
        %v763 = vpack.c.b16 %v595, %v593
        %v764 = vpack.c.b16 %v598, %v596
        %v765 = vpack.c.b16 %v599, %v597
        %v766 = vpack.c.b16 %v602, %v600
        %v767 = vpack.c.b16 %v603, %v601
        %v768 = vpack.c.b16 %v606, %v604
        %v769 = vpack.c.b16 %v607, %v605
        %v770 = vpack.c.b16 %v610, %v608
        %v771 = vpack.c.b16 %v611, %v609
        %v772 = vpack.c.b16 %v614, %v612
        %v773 = vpack.c.b16 %v615, %v613
        %v774 = vpack.c.b16 %v618, %v616
        %v775 = vpack.c.b16 %v619, %v617
        %v776 = vpack.c.b16 %v622, %v620
        %v777 = vpack.c.b16 %v623, %v621
        %v778 = vpack.c.b16 %v626, %v624
        %v779 = vpack.c.b16 %v627, %v625
        %v780 = vpack.c.b16 %v630, %v628
        %v781 = vpack.c.b16 %v631, %v629
        %v782 = vpack.c.b16 %v634, %v632
        %v783 = vpack.c.b16 %v635, %v633
        %v784 = vpack.c.b16 %v638, %v636
        %v785 = vpack.c.b16 %v639, %v637
        %v786 = vpack.c.b16 %v642, %v640
        %v787 = vpack.c.b16 %v643, %v641
        %v788 = vpack.c.b16 %v646, %v644
        %v789 = vpack.c.b16 %v647, %v645
        %v790 = vpack.c.b16 %v650, %v648
        %v791 = vpack.c.b16 %v651, %v649
        %v792 = vpack.c.b16 %v654, %v652
        %v793 = vpack.c.b16 %v655, %v653
        %v794 = vpack.c.b16 %v658, %v656
        %v795 = vpack.c.b16 %v659, %v657
        %v796 = vpack.c.b16 %v662, %v660
        %v797 = vpack.c.b16 %v663, %v661
        %v798 = vpack.c.b16 %v666, %v664
        %v799 = vpack.c.b16 %v667, %v665
        %v800 = vpack.c.b16 %v670, %v668
        %v801 = vpack.c.b16 %v671, %v669
        %v802 = vpack.c.b16 %v674, %v672
        %v803 = vpack.c.b16 %v675, %v673
        %v804 = vpack.c.b16 %v678, %v676
        %v805 = vpack.c.b16 %v679, %v677
        %v806 = vpack.c.b16 %v682, %v680
        %v807 = vpack.c.b16 %v683, %v681
        %v808 = vpack.c.b16 %v686, %v684
        %v809 = vpack.c.b16 %v687, %v685
        %v810 = vpack.c.b16 %v690, %v688
        %v811 = vpack.c.b16 %v691, %v689
        %v812 = vpack.c.b16 %v694, %v692
        %v813 = vpack.c.b16 %v695, %v693
        %v814 = vpack.c.b16 %v698, %v696
        %v815 = vpack.c.b16 %v699, %v697
        %v816 = vpack.c.b16 %v702, %v700
        %v817 = vpack.c.b16 %v703, %v701
        %v818 = vpack.c.b16 %v706, %v704
        %v819 = vpack.c.b16 %v707, %v705
        %v820 = vpack.c.b16 %v710, %v708
        %v821 = vpack.c.b16 %v711, %v709
        %v822 = vpack.c.b16 %v714, %v712
        %v823 = vpack.c.b16 %v715, %v713
        %v824 = vpack.c.b16 %v718, %v716
        %v825 = vpack.c.b16 %v719, %v717
        %v826 = vpack.c.b16 %v722, %v720
        %v827 = vpack.c.b16 %v723, %v721
        %v828 = vpack.c.b16 %v726, %v724
        %v829 = vpack.c.b16 %v727, %v725
        %v830 = vpack.c.b16 %v730, %v728
        %v831 = vpack.c.b16 %v731, %v729
        %v832 = vpack.c.b16 %v734, %v732
        %v833 = vpack.c.b16 %v735, %v733
        %vm932 = vcmask 130048
        %v934 = vsel %vm932, %v331, 0
        %936 = vmatprep.subr.bf16.mxu0 %v751
        %937 = vmatpush1.bf16.msra.mxu0 %v750
        %938 = vmatprep.subr.bf16.mxu0 %v749
        %939 = vmatpush1.bf16.msra.mxu0 %v748
        %940 = vmatprep.subr.bf16.mxu0 %v747
        %941 = vmatpush1.bf16.msra.mxu0 %v746
        %942 = vmatprep.subr.bf16.mxu0 %v745
        %943 = vmatpush1.bf16.msra.mxu0 %v744
        %944 = vmatprep.subr.bf16.mxu0 %v743
        %945 = vmatpush1.bf16.msra.mxu0 %v742
        %946 = vmatprep.subr.bf16.mxu0 %v741
        %947 = vmatpush1.bf16.msra.mxu0 %v740
        %948 = vmatprep.subr.bf16.mxu0 %v739
        %949 = vmatpush1.bf16.msra.mxu0 %v738
        %950 = vmatprep.subr.bf16.mxu0 %v737
        %951 = vmatpush1.bf16.msra.mxu0 %v736
        %952 = vmatprep.subr.bf16.mxu0 %v767
        %953 = vmatpush2.bf16.msra.mxu0 %v766
        %954 = vmatprep.subr.bf16.mxu0 %v765
        %955 = vmatpush2.bf16.msra.mxu0 %v764
        %956 = vmatprep.subr.bf16.mxu0 %v763
        %957 = vmatpush2.bf16.msra.mxu0 %v762
        %958 = vmatprep.subr.bf16.mxu0 %v761
        %959 = vmatpush2.bf16.msra.mxu0 %v760
        %960 = vmatprep.subr.bf16.mxu0 %v759
        %961 = vmatpush2.bf16.msra.mxu0 %v758
        %962 = vmatprep.subr.bf16.mxu0 %v757
        %963 = vmatpush2.bf16.msra.mxu0 %v756
        %964 = vmatprep.subr.bf16.mxu0 %v755
        %965 = vmatpush2.bf16.msra.mxu0 %v754
        %966 = vmatprep.subr.bf16.mxu0 %v753
        %967 = vmatpush2.bf16.msra.mxu0 %v752
        %968 = vmatprep.mubr.bf16.mxu0 %v326
        %969 = vmatmul.mubr.bf16.gmra.mxu0 %v325
        %v970 = vpop.f32.mrf.mxu0
        %v971 = vadd.f32 %v435, %v970
        %v972 = vpop.f32.mrf.mxu0
        %v973 = vadd.f32 %v439, %v972
        %v974 = vpop.f32.mrf.mxu0
        %v975 = vpop.f32.mrf.mxu0
        %976 = vdwg.mxu0
        %977 = vmatprep.subr.bf16.mxu0 %v783
        %978 = vmatpush1.bf16.msra.mxu0 %v782
        %979 = vmatprep.subr.bf16.mxu0 %v781
        %980 = vmatpush1.bf16.msra.mxu0 %v780
        %981 = vmatprep.subr.bf16.mxu0 %v779
        %982 = vmatpush1.bf16.msra.mxu0 %v778
        %983 = vmatprep.subr.bf16.mxu0 %v777
        %984 = vmatpush1.bf16.msra.mxu0 %v776
        %985 = vmatprep.subr.bf16.mxu0 %v775
        %986 = vmatpush1.bf16.msra.mxu0 %v774
        %987 = vmatprep.subr.bf16.mxu0 %v773
        %988 = vmatpush1.bf16.msra.mxu0 %v772
        %989 = vmatprep.subr.bf16.mxu0 %v771
        %990 = vmatpush1.bf16.msra.mxu0 %v770
        %991 = vmatprep.subr.bf16.mxu0 %v769
        %992 = vmatpush1.bf16.msra.mxu0 %v768
        %993 = vmatprep.subr.bf16.mxu0 %v799
        %994 = vmatpush2.bf16.msra.mxu0 %v798
        %995 = vmatprep.subr.bf16.mxu0 %v797
        %996 = vmatpush2.bf16.msra.mxu0 %v796
        %997 = vmatprep.subr.bf16.mxu0 %v795
        %998 = vmatpush2.bf16.msra.mxu0 %v794
        %999 = vmatprep.subr.bf16.mxu0 %v793
        %1000 = vmatpush2.bf16.msra.mxu0 %v792
        %1001 = vmatprep.subr.bf16.mxu0 %v791
        %1002 = vmatpush2.bf16.msra.mxu0 %v790
        %1003 = vmatprep.subr.bf16.mxu0 %v789
        %1004 = vmatpush2.bf16.msra.mxu0 %v788
        %1005 = vmatprep.subr.bf16.mxu0 %v787
        %1006 = vmatpush2.bf16.msra.mxu0 %v786
        %1007 = vmatprep.subr.bf16.mxu0 %v785
        %1008 = vmatpush2.bf16.msra.mxu0 %v784
        %1009 = vmatprep.mubr.bf16.mxu0 %v328
        %1010 = vmatmul.mubr.bf16.gmra.mxu0 %v327
        %v1011 = vpop.f32.mrf.mxu0
        %v1012 = vadd.f32 %v971, %v1011
        %v1013 = vpop.f32.mrf.mxu0
        %v1014 = vadd.f32 %v973, %v1013
        %v1015 = vpop.f32.mrf.mxu0
        %v1016 = vpop.f32.mrf.mxu0
        %1017 = vdwg.mxu0
        %1018 = vmatprep.subr.bf16.mxu0 %v815
        %1019 = vmatpush1.bf16.msra.mxu0 %v814
        %1020 = vmatprep.subr.bf16.mxu0 %v813
        %1021 = vmatpush1.bf16.msra.mxu0 %v812
        %1022 = vmatprep.subr.bf16.mxu0 %v811
        %1023 = vmatpush1.bf16.msra.mxu0 %v810
        %1024 = vmatprep.subr.bf16.mxu0 %v809
        %1025 = vmatpush1.bf16.msra.mxu0 %v808
        %1026 = vmatprep.subr.bf16.mxu0 %v807
        %1027 = vmatpush1.bf16.msra.mxu0 %v806
        %1028 = vmatprep.subr.bf16.mxu0 %v805
        %1029 = vmatpush1.bf16.msra.mxu0 %v804
        %1030 = vmatprep.subr.bf16.mxu0 %v803
        %1031 = vmatpush1.bf16.msra.mxu0 %v802
        %1032 = vmatprep.subr.bf16.mxu0 %v801
        %1033 = vmatpush1.bf16.msra.mxu0 %v800
        %1034 = vmatprep.subr.bf16.mxu0 %v831
        %1035 = vmatpush2.bf16.msra.mxu0 %v830
        %1036 = vmatprep.subr.bf16.mxu0 %v829
        %1037 = vmatpush2.bf16.msra.mxu0 %v828
        %1038 = vmatprep.subr.bf16.mxu0 %v827
        %1039 = vmatpush2.bf16.msra.mxu0 %v826
        %1040 = vmatprep.subr.bf16.mxu0 %v825
        %1041 = vmatpush2.bf16.msra.mxu0 %v824
        %1042 = vmatprep.subr.bf16.mxu0 %v823
        %1043 = vmatpush2.bf16.msra.mxu0 %v822
        %1044 = vmatprep.subr.bf16.mxu0 %v821
        %1045 = vmatpush2.bf16.msra.mxu0 %v820
        %1046 = vmatprep.subr.bf16.mxu0 %v819
        %1047 = vmatpush2.bf16.msra.mxu0 %v818
        %1048 = vmatprep.subr.bf16.mxu0 %v817
        %1049 = vmatpush2.bf16.msra.mxu0 %v816
        %1050 = vmatprep.mubr.bf16.mxu0 %v330
        %1051 = vmatmul.mubr.bf16.gmra.mxu0 %v329
        %v1052 = vpop.f32.mrf.mxu0
        %v1053 = vadd.f32 %v1012, %v1052
        %v1054 = vpop.f32.mrf.mxu0
        %v1055 = vadd.f32 %v1014, %v1054
        %v1056 = vpop.f32.mrf.mxu0
        %v1057 = vpop.f32.mrf.mxu0
        %1058 = vdwg.mxu0
        %1059 = vmatprep.subr.bf16.mxu0 0
        %1060 = vmatpush1.bf16.msra.mxu0 0
        %1061 = vmatprep.subr.bf16.mxu0 0
        %1062 = vmatpush1.bf16.msra.mxu0 0
        %1063 = vmatprep.subr.bf16.mxu0 0
        %1064 = vmatpush1.bf16.msra.mxu0 0
        %1065 = vmatprep.subr.bf16.mxu0 0
        %1066 = vmatpush1.bf16.msra.mxu0 0
        %1067 = vmatprep.subr.bf16.mxu0 0
        %1068 = vmatpush1.bf16.msra.mxu0 0
        %1069 = vmatprep.subr.bf16.mxu0 0
        %1070 = vmatpush1.bf16.msra.mxu0 0
        %1071 = vmatprep.subr.bf16.mxu0 0
        %1072 = vmatpush1.bf16.msra.mxu0 0
        %1073 = vmatprep.subr.bf16.mxu0 %v833
        %1074 = vmatpush1.bf16.msra.mxu0 %v832
        %1075 = vmatprep.subr.bf16.mxu0 0
        %1076 = vmatpush2.bf16.msra.mxu0 0
        %1077 = vmatprep.subr.bf16.mxu0 0
        %1078 = vmatpush2.bf16.msra.mxu0 0
        %1079 = vmatprep.subr.bf16.mxu0 0
        %1080 = vmatpush2.bf16.msra.mxu0 0
        %1081 = vmatprep.subr.bf16.mxu0 0
        %1082 = vmatpush2.bf16.msra.mxu0 0
        %1083 = vmatprep.subr.bf16.mxu0 0
        %1084 = vmatpush2.bf16.msra.mxu0 0
        %1085 = vmatprep.subr.bf16.mxu0 0
        %1086 = vmatpush2.bf16.msra.mxu0 0
        %1087 = vmatprep.subr.bf16.mxu0 0
        %1088 = vmatpush2.bf16.msra.mxu0 0
        %1089 = vmatprep.subr.bf16.mxu0 0
        %1090 = vmatpush2.bf16.msra.mxu0 0
        %1091 = vmatprep.mubr.bf16.mxu0 0
        %1092 = vmatmul.mubr.bf16.gmra.mxu0 %v934
        %v1093 = vpop.f32.mrf.mxu0
        %v1094 = vadd.f32 %v1053, %v1093
        %v1095 = vpop.f32.mrf.mxu0
        %v1096 = vadd.f32 %v1055, %v1095
        %v1097 = vpop.f32.mrf.mxu0
        %v1098 = vpop.f32.mrf.mxu0
        %1099 = vdwg.mxu0
        %v1100 = vmax.f32 %v1094, 0.0
        %v1101 = vmax.f32 %v1096, 0.0
        %v1102 = vpack.c.bf16 %v1100, %v1100
        %v1103 = vpack.c.bf16 %v1101, %v1101
        %v1104 = vld [vmem:[%s3] sm:$0xff]
        %v1105 = vld [vmem:[%s3 + $0x8] sm:$0xff]
        %v1106 = vld [vmem:[%s3 + $0x10] sm:$0xff]
        %v1107 = vld [vmem:[%s3 + $0x18] sm:$0xff]
        %v1108 = vld [vmem:[%s3 + $0x20] sm:$0xff]
        %v1109 = vld [vmem:[%s3 + $0x28] sm:$0xff]
        %v1110 = vld [vmem:[%s3 + $0x30] sm:$0xff]
        %v1111 = vld [vmem:[%s3 + $0x38] sm:$0xff]
        %v1112 = vld [vmem:[%s3 + $0x40] sm:$0xff]
        %v1113 = vld [vmem:[%s3 + $0x48] sm:$0xff]
        %v1114 = vld [vmem:[%s3 + $0x50] sm:$0xff]
        %v1115 = vld [vmem:[%s3 + $0x58] sm:$0xff]
        %v1116 = vld [vmem:[%s3 + $0x60] sm:$0xff]
        %v1117 = vld [vmem:[%s3 + $0x68] sm:$0xff]
        %v1118 = vld [vmem:[%s3 + $0x70] sm:$0xff]
        %v1119 = vld [vmem:[%s3 + $0x78] sm:$0xff]
        %v1120 = vld [vmem:[%s3 + $0x80] sm:$0xff]
        %v1121 = vld [vmem:[%s3 + $0x88] sm:$0xff]
        %v1122 = vld [vmem:[%s3 + $0x90] sm:$0xff]
        %v1123 = vld [vmem:[%s3 + $0x98] sm:$0xff]
        %v1124 = vld [vmem:[%s3 + $0xa0] sm:$0xff]
        %v1125 = vld [vmem:[%s3 + $0xa8] sm:$0xff]
        %v1126 = vld [vmem:[%s3 + $0xb0] sm:$0xff]
        %v1127 = vld [vmem:[%s3 + $0xb8] sm:$0xff]
        %v1128 = vld [vmem:[%s3 + $0xc0] sm:$0xff]
        %v1129 = vld [vmem:[%s3 + $0xc8] sm:$0xff]
        %v1130 = vld [vmem:[%s3 + $0xd0] sm:$0xff]
        %v1131 = vld [vmem:[%s3 + $0xd8] sm:$0xff]
        %v1132 = vld [vmem:[%s3 + $0xe0] sm:$0xff]
        %v1133 = vld [vmem:[%s3 + $0xe8] sm:$0xff]
        %v1134 = vld [vmem:[%s3 + $0xf0] sm:$0xff]
        %v1135 = vld [vmem:[%s3 + $0xf8] sm:$0xff]
        %v1136 = vld [vmem:[%s4] sm:$0x3]
        %v1138 = vlaneseq
        %v1139 = vshrl.u32 %v1138, 7
        %v1140 = vsub.s32 0, %v1139
        %v1141 = vrot.slane %v1136, %v1140
        %v1142 = vlaneseq
        %v1143 = vshrl.u32 %v1142, 7
        %v1144 = vsub.s32 1, %v1143
        %v1145 = vrot.slane %v1136, %v1144
        %v1180 = vunpack.c.l.b16 %v1104
        %v1181 = vunpack.c.h.b16 %v1104
        %v1182 = vunpack.c.l.b16 %v1105
        %v1183 = vunpack.c.h.b16 %v1105
        %v1184 = vunpack.c.l.b16 %v1106
        %v1185 = vunpack.c.h.b16 %v1106
        %v1186 = vunpack.c.l.b16 %v1107
        %v1187 = vunpack.c.h.b16 %v1107
        %v1188 = vunpack.c.l.b16 %v1108
        %v1189 = vunpack.c.h.b16 %v1108
        %v1190 = vunpack.c.l.b16 %v1109
        %v1191 = vunpack.c.h.b16 %v1109
        %v1192 = vunpack.c.l.b16 %v1110
        %v1193 = vunpack.c.h.b16 %v1110
        %v1194 = vunpack.c.l.b16 %v1111
        %v1195 = vunpack.c.h.b16 %v1111
        %v1196 = vunpack.c.l.b16 %v1112
        %v1197 = vunpack.c.h.b16 %v1112
        %v1198 = vunpack.c.l.b16 %v1113
        %v1199 = vunpack.c.h.b16 %v1113
        %v1200 = vunpack.c.l.b16 %v1114
        %v1201 = vunpack.c.h.b16 %v1114
        %v1202 = vunpack.c.l.b16 %v1115
        %v1203 = vunpack.c.h.b16 %v1115
        %v1204 = vunpack.c.l.b16 %v1116
        %v1205 = vunpack.c.h.b16 %v1116
        %v1206 = vunpack.c.l.b16 %v1117
        %v1207 = vunpack.c.h.b16 %v1117
        %v1208 = vunpack.c.l.b16 %v1118
        %v1209 = vunpack.c.h.b16 %v1118
        %v1210 = vunpack.c.l.b16 %v1119
        %v1211 = vunpack.c.h.b16 %v1119
        %v1212 = vunpack.c.l.b16 %v1120
        %v1213 = vunpack.c.h.b16 %v1120
        %v1214 = vunpack.c.l.b16 %v1121
        %v1215 = vunpack.c.h.b16 %v1121
        %v1216 = vunpack.c.l.b16 %v1122
        %v1217 = vunpack.c.h.b16 %v1122
        %v1218 = vunpack.c.l.b16 %v1123
        %v1219 = vunpack.c.h.b16 %v1123
        %v1220 = vunpack.c.l.b16 %v1124
        %v1221 = vunpack.c.h.b16 %v1124
        %v1222 = vunpack.c.l.b16 %v1125
        %v1223 = vunpack.c.h.b16 %v1125
        %v1224 = vunpack.c.l.b16 %v1126
        %v1225 = vunpack.c.h.b16 %v1126
        %v1226 = vunpack.c.l.b16 %v1127
        %v1227 = vunpack.c.h.b16 %v1127
        %v1228 = vunpack.c.l.b16 %v1128
        %v1229 = vunpack.c.h.b16 %v1128
        %v1230 = vunpack.c.l.b16 %v1129
        %v1231 = vunpack.c.h.b16 %v1129
        %v1232 = vunpack.c.l.b16 %v1130
        %v1233 = vunpack.c.h.b16 %v1130
        %v1234 = vunpack.c.l.b16 %v1131
        %v1235 = vunpack.c.h.b16 %v1131
        %v1236 = vunpack.c.l.b16 %v1132
        %v1237 = vunpack.c.h.b16 %v1132
        %v1238 = vunpack.c.l.b16 %v1133
        %v1239 = vunpack.c.h.b16 %v1133
        %v1240 = vunpack.c.l.b16 %v1134
        %v1241 = vunpack.c.h.b16 %v1134
        %v1242 = vunpack.c.l.b16 %v1135
        %v1243 = vunpack.c.h.b16 %v1135
        %v1244 = vpack.c.b16 %v1182, %v1180
        %v1245 = vpack.c.b16 %v1183, %v1181
        %v1246 = vpack.c.b16 %v1186, %v1184
        %v1247 = vpack.c.b16 %v1187, %v1185
        %v1248 = vpack.c.b16 %v1190, %v1188
        %v1249 = vpack.c.b16 %v1191, %v1189
        %v1250 = vpack.c.b16 %v1194, %v1192
        %v1251 = vpack.c.b16 %v1195, %v1193
        %v1252 = vpack.c.b16 %v1198, %v1196
        %v1253 = vpack.c.b16 %v1199, %v1197
        %v1254 = vpack.c.b16 %v1202, %v1200
        %v1255 = vpack.c.b16 %v1203, %v1201
        %v1256 = vpack.c.b16 %v1206, %v1204
        %v1257 = vpack.c.b16 %v1207, %v1205
        %v1258 = vpack.c.b16 %v1210, %v1208
        %v1259 = vpack.c.b16 %v1211, %v1209
        %v1260 = vpack.c.b16 %v1214, %v1212
        %v1261 = vpack.c.b16 %v1215, %v1213
        %v1262 = vpack.c.b16 %v1218, %v1216
        %v1263 = vpack.c.b16 %v1219, %v1217
        %v1264 = vpack.c.b16 %v1222, %v1220
        %v1265 = vpack.c.b16 %v1223, %v1221
        %v1266 = vpack.c.b16 %v1226, %v1224
        %v1267 = vpack.c.b16 %v1227, %v1225
        %v1268 = vpack.c.b16 %v1230, %v1228
        %v1269 = vpack.c.b16 %v1231, %v1229
        %v1270 = vpack.c.b16 %v1234, %v1232
        %v1271 = vpack.c.b16 %v1235, %v1233
        %v1272 = vpack.c.b16 %v1238, %v1236
        %v1273 = vpack.c.b16 %v1239, %v1237
        %v1274 = vpack.c.b16 %v1242, %v1240
        %v1275 = vpack.c.b16 %v1243, %v1241
        %1308 = vmatprep.subr.bf16.mxu0 %v1259
        %1309 = vmatpush1.bf16.msra.mxu0 %v1258
        %1310 = vmatprep.subr.bf16.mxu0 %v1257
        %1311 = vmatpush1.bf16.msra.mxu0 %v1256
        %1312 = vmatprep.subr.bf16.mxu0 %v1255
        %1313 = vmatpush1.bf16.msra.mxu0 %v1254
        %1314 = vmatprep.subr.bf16.mxu0 %v1253
        %1315 = vmatpush1.bf16.msra.mxu0 %v1252
        %1316 = vmatprep.subr.bf16.mxu0 %v1251
        %1317 = vmatpush1.bf16.msra.mxu0 %v1250
        %1318 = vmatprep.subr.bf16.mxu0 %v1249
        %1319 = vmatpush1.bf16.msra.mxu0 %v1248
        %1320 = vmatprep.subr.bf16.mxu0 %v1247
        %1321 = vmatpush1.bf16.msra.mxu0 %v1246
        %1322 = vmatprep.subr.bf16.mxu0 %v1245
        %1323 = vmatpush1.bf16.msra.mxu0 %v1244
        %1324 = vmatprep.subr.bf16.mxu0 %v1275
        %1325 = vmatpush2.bf16.msra.mxu0 %v1274
        %1326 = vmatprep.subr.bf16.mxu0 %v1273
        %1327 = vmatpush2.bf16.msra.mxu0 %v1272
        %1328 = vmatprep.subr.bf16.mxu0 %v1271
        %1329 = vmatpush2.bf16.msra.mxu0 %v1270
        %1330 = vmatprep.subr.bf16.mxu0 %v1269
        %1331 = vmatpush2.bf16.msra.mxu0 %v1268
        %1332 = vmatprep.subr.bf16.mxu0 %v1267
        %1333 = vmatpush2.bf16.msra.mxu0 %v1266
        %1334 = vmatprep.subr.bf16.mxu0 %v1265
        %1335 = vmatpush2.bf16.msra.mxu0 %v1264
        %1336 = vmatprep.subr.bf16.mxu0 %v1263
        %1337 = vmatpush2.bf16.msra.mxu0 %v1262
        %1338 = vmatprep.subr.bf16.mxu0 %v1261
        %1339 = vmatpush2.bf16.msra.mxu0 %v1260
        %1340 = vmatprep.mubr.bf16.mxu0 %v1103
        %1341 = vmatmul.mubr.bf16.gmra.mxu0 %v1102
        %v1342 = vpop.f32.mrf.mxu0
        %v1343 = vadd.f32 %v1141, %v1342
        %v1344 = vpop.f32.mrf.mxu0
        %v1345 = vadd.f32 %v1145, %v1344
        %v1346 = vpop.f32.mrf.mxu0
        %v1347 = vpop.f32.mrf.mxu0
        %1348 = vdwg.mxu0
        %v1349 = vmax.f32 %v1343, 0.0
        %v1350 = vmax.f32 %v1345, 0.0
        %v1351 = vpack.c.bf16 %v1349, %v1349
        %v1352 = vpack.c.bf16 %v1350, %v1350
        %v1353 = vld [vmem:[%s5] sm:$0xff]
        %v1354 = vld [vmem:[%s5 + $0x8] sm:$0xff]
        %v1355 = vld [vmem:[%s5 + $0x10] sm:$0xff]
        %v1356 = vld [vmem:[%s5 + $0x18] sm:$0xff]
        %v1357 = vld [vmem:[%s5 + $0x20] sm:$0xff]
        %v1358 = vld [vmem:[%s5 + $0x28] sm:$0xff]
        %v1359 = vld [vmem:[%s5 + $0x30] sm:$0xff]
        %v1360 = vld [vmem:[%s5 + $0x38] sm:$0xff]
        %v1361 = vld [vmem:[%s5 + $0x40] sm:$0xff]
        %v1362 = vld [vmem:[%s5 + $0x48] sm:$0xff]
        %v1363 = vld [vmem:[%s5 + $0x50] sm:$0xff]
        %v1364 = vld [vmem:[%s5 + $0x58] sm:$0xff]
        %v1365 = vld [vmem:[%s5 + $0x60] sm:$0xff]
        %v1366 = vld [vmem:[%s5 + $0x68] sm:$0xff]
        %v1367 = vld [vmem:[%s5 + $0x70] sm:$0xff]
        %v1368 = vld [vmem:[%s5 + $0x78] sm:$0xff]
        %v1369 = vld [vmem:[%s5 + $0x80] sm:$0xff]
        %v1370 = vld [vmem:[%s5 + $0x88] sm:$0xff]
        %v1371 = vld [vmem:[%s5 + $0x90] sm:$0xff]
        %v1372 = vld [vmem:[%s5 + $0x98] sm:$0xff]
        %v1373 = vld [vmem:[%s5 + $0xa0] sm:$0xff]
        %v1374 = vld [vmem:[%s5 + $0xa8] sm:$0xff]
        %v1375 = vld [vmem:[%s5 + $0xb0] sm:$0xff]
        %v1376 = vld [vmem:[%s5 + $0xb8] sm:$0xff]
        %v1377 = vld [vmem:[%s5 + $0xc0] sm:$0xff]
        %v1378 = vld [vmem:[%s5 + $0xc8] sm:$0xff]
        %v1379 = vld [vmem:[%s5 + $0xd0] sm:$0xff]
        %v1380 = vld [vmem:[%s5 + $0xd8] sm:$0xff]
        %v1381 = vld [vmem:[%s5 + $0xe0] sm:$0xff]
        %v1382 = vld [vmem:[%s5 + $0xe8] sm:$0xff]
        %v1383 = vld [vmem:[%s5 + $0xf0] sm:$0xff]
        %v1384 = vld [vmem:[%s5 + $0xf8] sm:$0xff]
        %v1385 = vld [vmem:[%s5 + $0x100] sm:$0xff]
        %v1386 = vld [vmem:[%s5 + $0x108] sm:$0xff]
        %v1387 = vld [vmem:[%s5 + $0x110] sm:$0xff]
        %v1388 = vld [vmem:[%s5 + $0x118] sm:$0xff]
        %v1389 = vld [vmem:[%s5 + $0x120] sm:$0xff]
        %v1390 = vld [vmem:[%s5 + $0x128] sm:$0xff]
        %v1391 = vld [vmem:[%s5 + $0x130] sm:$0xff]
        %v1392 = vld [vmem:[%s5 + $0x138] sm:$0xff]
        %v1393 = vld [vmem:[%s5 + $0x140] sm:$0xff]
        %v1394 = vld [vmem:[%s5 + $0x148] sm:$0xff]
        %v1395 = vld [vmem:[%s5 + $0x150] sm:$0xff]
        %v1396 = vld [vmem:[%s5 + $0x158] sm:$0xff]
        %v1397 = vld [vmem:[%s5 + $0x160] sm:$0xff]
        %v1398 = vld [vmem:[%s5 + $0x168] sm:$0xff]
        %v1399 = vld [vmem:[%s5 + $0x170] sm:$0xff]
        %v1400 = vld [vmem:[%s5 + $0x178] sm:$0xff]
        %v1401 = vld [vmem:[%s5 + $0x180] sm:$0xff]
        %v1402 = vld [vmem:[%s5 + $0x188] sm:$0xff]
        %v1403 = vld [vmem:[%s5 + $0x190] sm:$0xff]
        %v1404 = vld [vmem:[%s5 + $0x198] sm:$0xff]
        %v1405 = vld [vmem:[%s5 + $0x1a0] sm:$0xff]
        %v1406 = vld [vmem:[%s5 + $0x1a8] sm:$0xff]
        %v1407 = vld [vmem:[%s5 + $0x1b0] sm:$0xff]
        %v1408 = vld [vmem:[%s5 + $0x1b8] sm:$0xff]
        %v1409 = vld [vmem:[%s5 + $0x1c0] sm:$0xff]
        %v1410 = vld [vmem:[%s5 + $0x1c8] sm:$0xff]
        %v1411 = vld [vmem:[%s5 + $0x1d0] sm:$0xff]
        %v1412 = vld [vmem:[%s5 + $0x1d8] sm:$0xff]
        %v1413 = vld [vmem:[%s5 + $0x1e0] sm:$0xff]
        %v1414 = vld [vmem:[%s5 + $0x1e8] sm:$0xff]
        %v1415 = vld [vmem:[%s5 + $0x1f0] sm:$0xff]
        %v1416 = vld [vmem:[%s5 + $0x1f8] sm:$0xff]
        %v1417 = vld [vmem:[%s6] sm:$0xf]
        %v1419 = vlaneseq
        %v1420 = vshrl.u32 %v1419, 7
        %v1421 = vsub.s32 0, %v1420
        %v1422 = vrot.slane %v1417, %v1421
        %v1423 = vlaneseq
        %v1424 = vshrl.u32 %v1423, 7
        %v1425 = vsub.s32 1, %v1424
        %v1426 = vrot.slane %v1417, %v1425
        %v1427 = vlaneseq
        %v1428 = vshrl.u32 %v1427, 7
        %v1429 = vsub.s32 2, %v1428
        %v1430 = vrot.slane %v1417, %v1429
        %v1431 = vlaneseq
        %v1432 = vshrl.u32 %v1431, 7
        %v1433 = vsub.s32 3, %v1432
        %v1434 = vrot.slane %v1417, %v1433
        %v1503 = vunpack.c.l.b16 %v1353
        %v1504 = vunpack.c.h.b16 %v1353
        %v1505 = vunpack.c.l.b16 %v1354
        %v1506 = vunpack.c.h.b16 %v1354
        %v1507 = vunpack.c.l.b16 %v1355
        %v1508 = vunpack.c.h.b16 %v1355
        %v1509 = vunpack.c.l.b16 %v1356
        %v1510 = vunpack.c.h.b16 %v1356
        %v1511 = vunpack.c.l.b16 %v1357
        %v1512 = vunpack.c.h.b16 %v1357
        %v1513 = vunpack.c.l.b16 %v1358
        %v1514 = vunpack.c.h.b16 %v1358
        %v1515 = vunpack.c.l.b16 %v1359
        %v1516 = vunpack.c.h.b16 %v1359
        %v1517 = vunpack.c.l.b16 %v1360
        %v1518 = vunpack.c.h.b16 %v1360
        %v1519 = vunpack.c.l.b16 %v1361
        %v1520 = vunpack.c.h.b16 %v1361
        %v1521 = vunpack.c.l.b16 %v1362
        %v1522 = vunpack.c.h.b16 %v1362
        %v1523 = vunpack.c.l.b16 %v1363
        %v1524 = vunpack.c.h.b16 %v1363
        %v1525 = vunpack.c.l.b16 %v1364
        %v1526 = vunpack.c.h.b16 %v1364
        %v1527 = vunpack.c.l.b16 %v1365
        %v1528 = vunpack.c.h.b16 %v1365
        %v1529 = vunpack.c.l.b16 %v1366
        %v1530 = vunpack.c.h.b16 %v1366
        %v1531 = vunpack.c.l.b16 %v1367
        %v1532 = vunpack.c.h.b16 %v1367
        %v1533 = vunpack.c.l.b16 %v1368
        %v1534 = vunpack.c.h.b16 %v1368
        %v1535 = vunpack.c.l.b16 %v1369
        %v1536 = vunpack.c.h.b16 %v1369
        %v1537 = vunpack.c.l.b16 %v1370
        %v1538 = vunpack.c.h.b16 %v1370
        %v1539 = vunpack.c.l.b16 %v1371
        %v1540 = vunpack.c.h.b16 %v1371
        %v1541 = vunpack.c.l.b16 %v1372
        %v1542 = vunpack.c.h.b16 %v1372
        %v1543 = vunpack.c.l.b16 %v1373
        %v1544 = vunpack.c.h.b16 %v1373
        %v1545 = vunpack.c.l.b16 %v1374
        %v1546 = vunpack.c.h.b16 %v1374
        %v1547 = vunpack.c.l.b16 %v1375
        %v1548 = vunpack.c.h.b16 %v1375
        %v1549 = vunpack.c.l.b16 %v1376
        %v1550 = vunpack.c.h.b16 %v1376
        %v1551 = vunpack.c.l.b16 %v1377
        %v1552 = vunpack.c.h.b16 %v1377
        %v1553 = vunpack.c.l.b16 %v1378
        %v1554 = vunpack.c.h.b16 %v1378
        %v1555 = vunpack.c.l.b16 %v1379
        %v1556 = vunpack.c.h.b16 %v1379
        %v1557 = vunpack.c.l.b16 %v1380
        %v1558 = vunpack.c.h.b16 %v1380
        %v1559 = vunpack.c.l.b16 %v1381
        %v1560 = vunpack.c.h.b16 %v1381
        %v1561 = vunpack.c.l.b16 %v1382
        %v1562 = vunpack.c.h.b16 %v1382
        %v1563 = vunpack.c.l.b16 %v1383
        %v1564 = vunpack.c.h.b16 %v1383
        %v1565 = vunpack.c.l.b16 %v1384
        %v1566 = vunpack.c.h.b16 %v1384
        %v1567 = vunpack.c.l.b16 %v1385
        %v1568 = vunpack.c.h.b16 %v1385
        %v1569 = vunpack.c.l.b16 %v1386
        %v1570 = vunpack.c.h.b16 %v1386
        %v1571 = vunpack.c.l.b16 %v1387
        %v1572 = vunpack.c.h.b16 %v1387
        %v1573 = vunpack.c.l.b16 %v1388
        %v1574 = vunpack.c.h.b16 %v1388
        %v1575 = vunpack.c.l.b16 %v1389
        %v1576 = vunpack.c.h.b16 %v1389
        %v1577 = vunpack.c.l.b16 %v1390
        %v1578 = vunpack.c.h.b16 %v1390
        %v1579 = vunpack.c.l.b16 %v1391
        %v1580 = vunpack.c.h.b16 %v1391
        %v1581 = vunpack.c.l.b16 %v1392
        %v1582 = vunpack.c.h.b16 %v1392
        %v1583 = vunpack.c.l.b16 %v1393
        %v1584 = vunpack.c.h.b16 %v1393
        %v1585 = vunpack.c.l.b16 %v1394
        %v1586 = vunpack.c.h.b16 %v1394
        %v1587 = vunpack.c.l.b16 %v1395
        %v1588 = vunpack.c.h.b16 %v1395
        %v1589 = vunpack.c.l.b16 %v1396
        %v1590 = vunpack.c.h.b16 %v1396
        %v1591 = vunpack.c.l.b16 %v1397
        %v1592 = vunpack.c.h.b16 %v1397
        %v1593 = vunpack.c.l.b16 %v1398
        %v1594 = vunpack.c.h.b16 %v1398
        %v1595 = vunpack.c.l.b16 %v1399
        %v1596 = vunpack.c.h.b16 %v1399
        %v1597 = vunpack.c.l.b16 %v1400
        %v1598 = vunpack.c.h.b16 %v1400
        %v1599 = vunpack.c.l.b16 %v1401
        %v1600 = vunpack.c.h.b16 %v1401
        %v1601 = vunpack.c.l.b16 %v1402
        %v1602 = vunpack.c.h.b16 %v1402
        %v1603 = vunpack.c.l.b16 %v1403
        %v1604 = vunpack.c.h.b16 %v1403
        %v1605 = vunpack.c.l.b16 %v1404
        %v1606 = vunpack.c.h.b16 %v1404
        %v1607 = vunpack.c.l.b16 %v1405
        %v1608 = vunpack.c.h.b16 %v1405
        %v1609 = vunpack.c.l.b16 %v1406
        %v1610 = vunpack.c.h.b16 %v1406
        %v1611 = vunpack.c.l.b16 %v1407
        %v1612 = vunpack.c.h.b16 %v1407
        %v1613 = vunpack.c.l.b16 %v1408
        %v1614 = vunpack.c.h.b16 %v1408
        %v1615 = vunpack.c.l.b16 %v1409
        %v1616 = vunpack.c.h.b16 %v1409
        %v1617 = vunpack.c.l.b16 %v1410
        %v1618 = vunpack.c.h.b16 %v1410
        %v1619 = vunpack.c.l.b16 %v1411
        %v1620 = vunpack.c.h.b16 %v1411
        %v1621 = vunpack.c.l.b16 %v1412
        %v1622 = vunpack.c.h.b16 %v1412
        %v1623 = vunpack.c.l.b16 %v1413
        %v1624 = vunpack.c.h.b16 %v1413
        %v1625 = vunpack.c.l.b16 %v1414
        %v1626 = vunpack.c.h.b16 %v1414
        %v1627 = vunpack.c.l.b16 %v1415
        %v1628 = vunpack.c.h.b16 %v1415
        %v1629 = vunpack.c.l.b16 %v1416
        %v1630 = vunpack.c.h.b16 %v1416
        %v1631 = vpack.c.b16 %v1507, %v1503
        %v1632 = vpack.c.b16 %v1508, %v1504
        %v1633 = vpack.c.b16 %v1509, %v1505
        %v1634 = vpack.c.b16 %v1510, %v1506
        %v1635 = vpack.c.b16 %v1515, %v1511
        %v1636 = vpack.c.b16 %v1516, %v1512
        %v1637 = vpack.c.b16 %v1517, %v1513
        %v1638 = vpack.c.b16 %v1518, %v1514
        %v1639 = vpack.c.b16 %v1523, %v1519
        %v1640 = vpack.c.b16 %v1524, %v1520
        %v1641 = vpack.c.b16 %v1525, %v1521
        %v1642 = vpack.c.b16 %v1526, %v1522
        %v1643 = vpack.c.b16 %v1531, %v1527
        %v1644 = vpack.c.b16 %v1532, %v1528
        %v1645 = vpack.c.b16 %v1533, %v1529
        %v1646 = vpack.c.b16 %v1534, %v1530
        %v1647 = vpack.c.b16 %v1539, %v1535
        %v1648 = vpack.c.b16 %v1540, %v1536
        %v1649 = vpack.c.b16 %v1541, %v1537
        %v1650 = vpack.c.b16 %v1542, %v1538
        %v1651 = vpack.c.b16 %v1547, %v1543
        %v1652 = vpack.c.b16 %v1548, %v1544
        %v1653 = vpack.c.b16 %v1549, %v1545
        %v1654 = vpack.c.b16 %v1550, %v1546
        %v1655 = vpack.c.b16 %v1555, %v1551
        %v1656 = vpack.c.b16 %v1556, %v1552
        %v1657 = vpack.c.b16 %v1557, %v1553
        %v1658 = vpack.c.b16 %v1558, %v1554
        %v1659 = vpack.c.b16 %v1563, %v1559
        %v1660 = vpack.c.b16 %v1564, %v1560
        %v1661 = vpack.c.b16 %v1565, %v1561
        %v1662 = vpack.c.b16 %v1566, %v1562
        %v1663 = vpack.c.b16 %v1571, %v1567
        %v1664 = vpack.c.b16 %v1572, %v1568
        %v1665 = vpack.c.b16 %v1573, %v1569
        %v1666 = vpack.c.b16 %v1574, %v1570
        %v1667 = vpack.c.b16 %v1579, %v1575
        %v1668 = vpack.c.b16 %v1580, %v1576
        %v1669 = vpack.c.b16 %v1581, %v1577
        %v1670 = vpack.c.b16 %v1582, %v1578
        %v1671 = vpack.c.b16 %v1587, %v1583
        %v1672 = vpack.c.b16 %v1588, %v1584
        %v1673 = vpack.c.b16 %v1589, %v1585
        %v1674 = vpack.c.b16 %v1590, %v1586
        %v1675 = vpack.c.b16 %v1595, %v1591
        %v1676 = vpack.c.b16 %v1596, %v1592
        %v1677 = vpack.c.b16 %v1597, %v1593
        %v1678 = vpack.c.b16 %v1598, %v1594
        %v1679 = vpack.c.b16 %v1603, %v1599
        %v1680 = vpack.c.b16 %v1604, %v1600
        %v1681 = vpack.c.b16 %v1605, %v1601
        %v1682 = vpack.c.b16 %v1606, %v1602
        %v1683 = vpack.c.b16 %v1611, %v1607
        %v1684 = vpack.c.b16 %v1612, %v1608
        %v1685 = vpack.c.b16 %v1613, %v1609
        %v1686 = vpack.c.b16 %v1614, %v1610
        %v1687 = vpack.c.b16 %v1619, %v1615
        %v1688 = vpack.c.b16 %v1620, %v1616
        %v1689 = vpack.c.b16 %v1621, %v1617
        %v1690 = vpack.c.b16 %v1622, %v1618
        %v1691 = vpack.c.b16 %v1627, %v1623
        %v1692 = vpack.c.b16 %v1628, %v1624
        %v1693 = vpack.c.b16 %v1629, %v1625
        %v1694 = vpack.c.b16 %v1630, %v1626
        %1759 = vmatprep.subr.bf16.mxu0 %v1660
        %1760 = vmatpush1.bf16.msra.mxu0 %v1659
        %1761 = vmatprep.subr.bf16.mxu0 %v1656
        %1762 = vmatpush1.bf16.msra.mxu0 %v1655
        %1763 = vmatprep.subr.bf16.mxu0 %v1652
        %1764 = vmatpush1.bf16.msra.mxu0 %v1651
        %1765 = vmatprep.subr.bf16.mxu0 %v1648
        %1766 = vmatpush1.bf16.msra.mxu0 %v1647
        %1767 = vmatprep.subr.bf16.mxu0 %v1644
        %1768 = vmatpush1.bf16.msra.mxu0 %v1643
        %1769 = vmatprep.subr.bf16.mxu0 %v1640
        %1770 = vmatpush1.bf16.msra.mxu0 %v1639
        %1771 = vmatprep.subr.bf16.mxu0 %v1636
        %1772 = vmatpush1.bf16.msra.mxu0 %v1635
        %1773 = vmatprep.subr.bf16.mxu0 %v1632
        %1774 = vmatpush1.bf16.msra.mxu0 %v1631
        %1775 = vmatprep.subr.bf16.mxu0 %v1692
        %1776 = vmatpush2.bf16.msra.mxu0 %v1691
        %1777 = vmatprep.subr.bf16.mxu0 %v1688
        %1778 = vmatpush2.bf16.msra.mxu0 %v1687
        %1779 = vmatprep.subr.bf16.mxu0 %v1684
        %1780 = vmatpush2.bf16.msra.mxu0 %v1683
        %1781 = vmatprep.subr.bf16.mxu0 %v1680
        %1782 = vmatpush2.bf16.msra.mxu0 %v1679
        %1783 = vmatprep.subr.bf16.mxu0 %v1676
        %1784 = vmatpush2.bf16.msra.mxu0 %v1675
        %1785 = vmatprep.subr.bf16.mxu0 %v1672
        %1786 = vmatpush2.bf16.msra.mxu0 %v1671
        %1787 = vmatprep.subr.bf16.mxu0 %v1668
        %1788 = vmatpush2.bf16.msra.mxu0 %v1667
        %1789 = vmatprep.subr.bf16.mxu0 %v1664
        %1790 = vmatpush2.bf16.msra.mxu0 %v1663
        %1791 = vmatprep.mubr.bf16.mxu0 %v1352
        %1792 = vmatmul.mubr.bf16.gmra.mxu0 %v1351
        %v1793 = vpop.f32.mrf.mxu0
        %v1794 = vadd.f32 %v1422, %v1793
        %v1795 = vpop.f32.mrf.mxu0
        %v1796 = vadd.f32 %v1426, %v1795
        %v1797 = vpop.f32.mrf.mxu0
        %v1798 = vpop.f32.mrf.mxu0
        %1799 = vdwg.mxu0
        %1800 = vmatprep.subr.bf16.mxu0 %v1662
        %1801 = vmatpush1.bf16.msra.mxu0 %v1661
        %1802 = vmatprep.subr.bf16.mxu0 %v1658
        %1803 = vmatpush1.bf16.msra.mxu0 %v1657
        %1804 = vmatprep.subr.bf16.mxu0 %v1654
        %1805 = vmatpush1.bf16.msra.mxu0 %v1653
        %1806 = vmatprep.subr.bf16.mxu0 %v1650
        %1807 = vmatpush1.bf16.msra.mxu0 %v1649
        %1808 = vmatprep.subr.bf16.mxu0 %v1646
        %1809 = vmatpush1.bf16.msra.mxu0 %v1645
        %1810 = vmatprep.subr.bf16.mxu0 %v1642
        %1811 = vmatpush1.bf16.msra.mxu0 %v1641
        %1812 = vmatprep.subr.bf16.mxu0 %v1638
        %1813 = vmatpush1.bf16.msra.mxu0 %v1637
        %1814 = vmatprep.subr.bf16.mxu0 %v1634
        %1815 = vmatpush1.bf16.msra.mxu0 %v1633
        %1816 = vmatprep.subr.bf16.mxu0 %v1694
        %1817 = vmatpush2.bf16.msra.mxu0 %v1693
        %1818 = vmatprep.subr.bf16.mxu0 %v1690
        %1819 = vmatpush2.bf16.msra.mxu0 %v1689
        %1820 = vmatprep.subr.bf16.mxu0 %v1686
        %1821 = vmatpush2.bf16.msra.mxu0 %v1685
        %1822 = vmatprep.subr.bf16.mxu0 %v1682
        %1823 = vmatpush2.bf16.msra.mxu0 %v1681
        %1824 = vmatprep.subr.bf16.mxu0 %v1678
        %1825 = vmatpush2.bf16.msra.mxu0 %v1677
        %1826 = vmatprep.subr.bf16.mxu0 %v1674
        %1827 = vmatpush2.bf16.msra.mxu0 %v1673
        %1828 = vmatprep.subr.bf16.mxu0 %v1670
        %1829 = vmatpush2.bf16.msra.mxu0 %v1669
        %1830 = vmatprep.subr.bf16.mxu0 %v1666
        %1831 = vmatpush2.bf16.msra.mxu0 %v1665
        %1832 = vmatprep.mubr.bf16.mxu0 %v1352
        %1833 = vmatmul.mubr.bf16.gmra.mxu0 %v1351
        %v1834 = vpop.f32.mrf.mxu0
        %v1835 = vadd.f32 %v1430, %v1834
        %v1836 = vpop.f32.mrf.mxu0
        %v1837 = vadd.f32 %v1434, %v1836
        %v1838 = vpop.f32.mrf.mxu0
        %v1839 = vpop.f32.mrf.mxu0
        %1840 = vdwg.mxu0
        %1841 = vst [vmem:[%s316] sm:$0xff] %v1794
        %1842 = vst [vmem:[%s316 + $0x8] sm:$0xff] %v1796
        %1843 = vst [vmem:[%s316 + $0x10] sm:$0xff] %v1835
        %1844 = vst [vmem:[%s316 + $0x18] sm:$0xff] %v1837
        %v1845 = vlaneseq
        %v1846 = vand.u32 %v1845, 127
        %vm1847 = vcmp.lt.s32.totalorder %v1846, 81
        %v1848 = vsel %vm1847, %v1794, -inf
        %1849 = vmax.xlane.f32.xlu0 %v1848
        %v1850 = vpop.xlane.xlu0 %1849
        %v1851 = vsub.f32 %v1848, %v1850
        %v1852 = vmul.f32 %v1851, 1.442695
        %v1853 = vpow.pop %v1852
        %v1854 = vsel %vm1847, %v1853, 0.0
        %1855 = vadd.xlane.f32.xlu0 %v1854
        %v1856 = vpop.xlane.xlu0 %1855
        %v1857 = vrcp.pop %v1856
        %v1858 = vmul.f32 %v1854, %v1857
        %1859 = vst [vmem:[%s306] sm:$0xff] %v1858
        %p1860 = scmp.lt.s32.totalorder %s23, 1
        %s1861 = scalar_select %p1860, %s23, 1
        %s1862 = smul.addr %s1861, 4
        %s1863 = smul.addr %s1862, 8
        %s1864 = scalar_lea.vmem %s7, %s1863
        %s1865 = sand.u32 %s209, 1
        %s1866 = scalar_lea.sflag [#allocation3], %s1865
        %s1867 = sand.u32 %s209, 1
        %s1868 = smul.addr %s1867, 8
        %s1869 = scalar_lea.vmem [#allocation2], %s1868
        // Predicated region
        $region49: #{faster_rcnn_forward.3} parent=47 // pred_check
          %p1870 = pneg %p193
        $region50: #{faster_rcnn_forward.3} parent=47 // pred_check_branch
          %1872 = sbr.rel (%p1870) target = $region52
        $region51: #{faster_rcnn_forward.3} parent=47 // pred_region
          _
        $region52: #{faster_rcnn_forward.3} parent=47 // pred_fallthru
          _
        // Predicated region
        $region53: #{faster_rcnn_forward.3} parent=47 // pred_check
          %p1873 = pneg %p219
        $region54: #{faster_rcnn_forward.3} parent=47 // pred_check_branch
          %1875 = sbr.rel (%p1873) target = $region56
        $region55: #{faster_rcnn_forward.3} parent=47 // pred_region
          %s1877 = ssub.s32 128, 128
          %1878 = vsyncadd %s1866, %s1877
          %s1879 = smul.addr %s23, 128
          %s1880 = scalar_lea.hbm %s8, %s1879
          %s1882 = sshll.u32 %s1869, 4
          %s1883 = int_to_ptr.vmem [resolvable:$true] %s1882
          %1885 = dma.vmem_to_hbm [thread:$0]  %s1883, 128, %s1880, %s1866
        $region56: #{faster_rcnn_forward.3} parent=47 // pred_fallthru
          _
      $region48: #{faster_rcnn_forward.3} parent=5 // pred_fallthru
        _
      %p1886 = scmp.le.s32.totalorder 2, %s18
      // Predicated region
      $region57: #{faster_rcnn_forward.3} parent=5 // pred_check
        %p1887 = pneg %p1886
      $region58: #{faster_rcnn_forward.3} parent=5 // pred_check_branch
        %1889 = sbr.rel (%p1887) target = $region60
      $region59: #{faster_rcnn_forward.3} parent=5 // pred_region
        %s1890 = ssub.s32 %s18, 2
        // Predicated region
        $region61: #{faster_rcnn_forward.3} parent=59 // pred_check
          %p1891 = pneg %p199
        $region62: #{faster_rcnn_forward.3} parent=59 // pred_check_branch
          %1893 = sbr.rel (%p1891) target = $region64
        $region63: #{faster_rcnn_forward.3} parent=59 // pred_region
          %p1894 = scmp.lt.s32.totalorder %s24, 1
          %s1895 = scalar_select %p1894, %s24, 1
          %s1896 = smul.addr %s1895, 4
          %s1897 = smul.addr %s1896, 8
          %s1898 = scalar_lea.vmem %s7, %s1897
        $region64: #{faster_rcnn_forward.3} parent=59 // pred_fallthru
          _
        // Predicated region
        $region65: #{faster_rcnn_forward.3} parent=59 // pred_check
          %p1899 = pneg %p225
        $region66: #{faster_rcnn_forward.3} parent=59 // pred_check_branch
          %1901 = sbr.rel (%p1899) target = $region68
        $region67: #{faster_rcnn_forward.3} parent=59 // pred_region
          %s1902 = sand.u32 %s210, 1
          %s1903 = scalar_lea.sflag [#allocation3], %s1902
          %s1904 = sand.u32 %s210, 1
          %s1905 = smul.addr %s1904, 8
          %s1906 = scalar_lea.vmem [#allocation2], %s1905
          %1907 = dma.done %s1903, 128
        $region68: #{faster_rcnn_forward.3} parent=59 // pred_fallthru
          _
      $region60: #{faster_rcnn_forward.3} parent=5 // pred_fallthru
        _
    $region6: #{faster_rcnn_forward.3} parent=1 // loop_footer
      %s22 = sadd.s32 1, %s18
    $region7: #{faster_rcnn_forward.3} parent=1 // loop_footer_branch
      %17 = sbr.rel target = $region3
    $region8: #{faster_rcnn_forward.3} parent=1 // loop_exit
      _
    %1908 = vsyncpa [#allocation3], 1
    %s1909 = scalar_lea.sflag [#allocation3], 1
    %1910 = vsyncpa %s1909, 1

</llo_original>
